<compile_context>
chip_gen: v6e
topology: v6e:2x2x1
jax: 0.10.0
libtpu: 0.0.40
codegen_flags: <defaults>
</compile_context>

<pallas_src>
import functools

import jax
import jax.numpy as jnp
from jax.experimental import pallas as pl
from jax.experimental.pallas import tpu as pltpu


# ----------------------------- in-kernel helpers --------------------------- #
def _dot_tn(a, b):
    """a^T @ b (contract over axis 0 of both) -- weight-gradient matmul."""
    return jax.lax.dot_general(a, b, (((0,), (0,)), ((), ())),
                               preferred_element_type=jnp.float32)


def _dot_nt(a, b):
    """a @ b^T (contract over axis 1 of both)."""
    return jax.lax.dot_general(a, b, (((1,), (1,)), ((), ())),
                               preferred_element_type=jnp.float32)


def _dot_nn(a, b):
    return jnp.dot(a, b, preferred_element_type=jnp.float32)


def _matmul_tiny_k(x, w):
    """x @ w with a tiny contracting dim (K = input_dim <= 8): unrolled VPU
    broadcast-FMAs instead of a <1%-utilized MXU push/pop on the crit path."""
    acc = x[:, 0:1] * w[0:1, :]
    for k in range(1, x.shape[1]):
        acc = acc + x[:, k:k + 1] * w[k:k + 1, :]
    return acc


# --------------------- fully fused MAML inner-loop kernel ------------------ #
def _maml_inner_loop_kernel(x_ref, y_ref, w1t_ref, w2t_ref, bw_ref,
                            gw1t_ref, gw2t_ref, gbw_ref, loss_ref,
                            *, ns, nq, num_updates, step_size, inv_meta_bs):
    f32 = jnp.float32
    hdim = w2t_ref.shape[0]

    # Whole working set loaded once; everything below stays in VMEM/vregs.
    xs = x_ref[0:ns, :]                  # (Ns, Din) support inputs
    xq = x_ref[ns:ns + nq, :]            # (Nq, Din) query inputs
    ys = y_ref[0:ns, :]                  # (Ns, 1)
    yq = y_ref[ns:ns + nq, :]            # (Nq, 1)

    w1t = w1t_ref[...]                   # (Din, H)  linear1 weight, transposed
    w2t = w2t_ref[...]                   # (H, H)    linear2 weight, transposed
    b1 = bw_ref[0:1, :]                  # (1, H)
    b2 = bw_ref[1:2, :]                  # (1, H)
    w3 = bw_ref[2:3, :]                  # (1, H)    linear3 weight row
    b3 = bw_ref[3:4, 0:1]                # (1, 1)    linear3 bias

    def forward(x, W1t, B1, W2t, B2, W3, B3):
        z1 = _matmul_tiny_k(x, W1t) + B1
        m1 = z1 > 0.0
        h1 = jnp.where(m1, z1, 0.0)
        z2 = _dot_nn(h1, W2t) + B2
        m2 = z2 > 0.0
        h2 = jnp.where(m2, z2, 0.0)
        # out_features == 1: elementwise multiply + lane reduce, no 1-wide MXU.
        pred = jnp.sum(h2 * W3, axis=1, keepdims=True) + B3    # (N, 1)
        return m1, h1, m2, h2, pred

    def loss_grad(x, y, n, W1t, B1, W2t, B2, W3, B3):
        """d MSE / d params at (x, y); also returns residuals needed by HVPs."""
        m1, h1, m2, h2, pred = forward(x, W1t, B1, W2t, B2, W3, B3)
        r = pred - y                                            # (N, 1)
        g3 = (2.0 / n) * r                                      # (N, 1)
        gb3 = jnp.sum(g3, axis=0, keepdims=True)                # (1, 1)
        gw3 = jnp.sum(g3 * h2, axis=0, keepdims=True)           # (1, H)
        gz2 = jnp.where(m2, g3 * W3, 0.0)                       # (N, H)
        gW2 = _dot_tn(h1, gz2)                                  # (H, H)
        gb2 = jnp.sum(gz2, axis=0, keepdims=True)               # (1, H)
        gz1 = jnp.where(m1, _dot_nt(gz2, W2t), 0.0)             # (N, H)
        gW1 = _dot_tn(x, gz1)                                   # (Din, H)
        gb1 = jnp.sum(gz1, axis=0, keepdims=True)               # (1, H)
        res = (m1, h1, m2, h2, g3, gz2, W2t, W3)
        return (gW1, gb1, gW2, gb2, gw3, gb3), r, res

    def hvp(res, V1, vB1, V2, vB2, vW3, vB3):
        """(d^2 L_support / d theta^2) . v using residuals from one inner step
        (forward-over-reverse / Pearlmutter; ReLU masks treated as constant,
        matching JAX/PyTorch second-order semantics)."""
        m1, h1, m2, h2, g3, gz2, W2t, W3 = res
        dz1 = _matmul_tiny_k(xs, V1) + vB1
        dh1 = jnp.where(m1, dz1, 0.0)
        dz2 = _dot_nn(dh1, W2t) + _dot_nn(h1, V2) + vB2
        dh2 = jnp.where(m2, dz2, 0.0)
        dpred = jnp.sum(dh2 * W3 + h2 * vW3, axis=1, keepdims=True) + vB3
        dg3 = (2.0 / ns) * dpred
        hb3 = jnp.sum(dg3, axis=0, keepdims=True)
        hw3 = jnp.sum(dg3 * h2 + g3 * dh2, axis=0, keepdims=True)
        dgz2 = jnp.where(m2, dg3 * W3 + g3 * vW3, 0.0)
        hW2 = _dot_tn(h1, dgz2) + _dot_tn(dh1, gz2)
        hb2 = jnp.sum(dgz2, axis=0, keepdims=True)
        dgz1 = jnp.where(m1, _dot_nt(dgz2, W2t) + _dot_nt(gz2, V2), 0.0)
        hW1 = _dot_tn(xs, dgz1)
        hb1 = jnp.sum(dgz1, axis=0, keepdims=True)
        return hW1, hb1, hW2, hb2, hw3, hb3

    # --- inner adaptation loop (unrolled: num_updates is compile-time static;
    #     the trajectory residuals are kept live for the meta-backward) ---
    fast = (w1t, b1, w2t, b2, w3, b3)
    trajectory = []
    for _ in range(num_updates):
        grads, _, res = loss_grad(xs, ys, ns, *fast)
        trajectory.append(res)
        fast = tuple(p - step_size * g for p, g in zip(fast, grads))

    # --- query loss + its gradient at the adapted weights ---
    (vW1, vb1, vW2, vb2, vw3, vb3), rq, _ = loss_grad(xq, yq, nq, *fast)
    loss_ref[...] = jnp.sum(rq * rq, axis=0, keepdims=True) * (1.0 / nq)

    # --- meta backward: v <- (I - alpha * H_support(theta_t)) v, t = T-1..0 ---
    for res in reversed(trajectory):
        hW1, hb1, hW2, hb2, hw3, hb3 = hvp(res, vW1, vb1, vW2, vb2, vw3, vb3)
        vW1 = vW1 - step_size * hW1
        vb1 = vb1 - step_size * hb1
        vW2 = vW2 - step_size * hW2
        vb2 = vb2 - step_size * hb2
        vw3 = vw3 - step_size * hw3
        vb3 = vb3 - step_size * hb3

    # --- meta-grads of (query_loss / meta_batch_size) w.r.t. initial params ---
    gw1t_ref[...] = vW1 * inv_meta_bs
    gw2t_ref[...] = vW2 * inv_meta_bs
    gbw_ref[0:1, :] = vb1 * inv_meta_bs
    gbw_ref[1:2, :] = vb2 * inv_meta_bs
    gbw_ref[2:3, :] = vw3 * inv_meta_bs
    gbw_ref[3:4, :] = vb3 * inv_meta_bs + jnp.zeros((1, hdim), f32)


# ------------------------------ InnerLoop.forward -------------------------- #
def inner_loop_forward(params, support_x, support_y, query_x, query_y,
                       num_updates, step_size, meta_batch_size):
    ns, din = support_x.shape
    nq = query_x.shape[0]
    h = params["net.linear1.weight"].shape[0]
    f32 = jnp.float32

    # Pack operands: support+query rows in one slab, {b1,b2,w3,b3} in one slab,
    # weights pre-transposed once to natural (K, N) MXU layout.
    x_all = jnp.concatenate([support_x, query_x], axis=0).astype(f32)
    y_all = jnp.concatenate([support_y.reshape(ns, 1),
                             query_y.reshape(nq, 1)], axis=0).astype(f32)
    w1t = params["net.linear1.weight"].T.astype(f32)            # (Din, H)
    w2t = params["net.linear2.weight"].T.astype(f32)            # (H, H)
    b3_row = jnp.zeros((1, h), f32).at[0, 0].set(
        params["net.linear3.bias"].astype(f32)[0])
    bw = jnp.concatenate(
        [params["net.linear1.bias"].reshape(1, h).astype(f32),
         params["net.linear2.bias"].reshape(1, h).astype(f32),
         params["net.linear3.weight"].reshape(1, h).astype(f32),
         b3_row], axis=0)                                        # (4, H)

    kernel = functools.partial(
        _maml_inner_loop_kernel, ns=ns, nq=nq,
        num_updates=int(num_updates), step_size=float(step_size),
        inv_meta_bs=1.0 / float(meta_batch_size))

    vmem = pl.BlockSpec(memory_space=pltpu.MemorySpace.VMEM)
    g_w1t, g_w2t, g_bw, loss2d = pl.pallas_call(
        kernel,
        out_shape=(jax.ShapeDtypeStruct((din, h), f32),   # grad w1 (transposed)
                   jax.ShapeDtypeStruct((h, h), f32),     # grad w2 (transposed)
                   jax.ShapeDtypeStruct((4, h), f32),     # grads b1,b2,w3,b3
                   jax.ShapeDtypeStruct((1, 1), f32)),    # query loss
        in_specs=[vmem] * 5,
        out_specs=(vmem, vmem, vmem, vmem),
    )(x_all, y_all, w1t, w2t, bw)

    query_loss = loss2d[0, 0]
    meta_grads = {
        "net.linear1.weight": g_w1t.T,       # back to PyTorch (out, in) layout
        "net.linear1.bias":   g_bw[0],
        "net.linear2.weight": g_w2t.T,
        "net.linear2.bias":   g_bw[1],
        "net.linear3.weight": g_bw[2:3, :],
        "net.linear3.bias":   g_bw[3, 0:1],
    }
    return query_loss, meta_grads


# ------------------------------ parameter init ----------------------------- #
def init_params(key, input_dim, hidden_dim):
    def linear_init(k, fan_in, fan_out):
        kw, kb = jax.random.split(k)
        bound = float(fan_in) ** -0.5
        w = jax.random.uniform(kw, (fan_out, fan_in), jnp.float32, -bound, bound)
        b = jax.random.uniform(kb, (fan_out,), jnp.float32, -bound, bound)
        return w, b

    k1, k2, k3 = jax.random.split(key, 3)
    w1, b1 = linear_init(k1, input_dim, hidden_dim)
    w2, b2 = linear_init(k2, hidden_dim, hidden_dim)
    w3, b3 = linear_init(k3, hidden_dim, 1)
    return {
        "net.linear1.weight": w1, "net.linear1.bias": b1,
        "net.linear2.weight": w2, "net.linear2.bias": b2,
        "net.linear3.weight": w3, "net.linear3.bias": b3,
    }


# ------------------------- pure-JAX reference (check) ----------------------- #
def _reference_inner_loop(params, sx, sy, qx, qy,
                          num_updates, step_size, meta_batch_size):
    def fwd(p, x):
        h = jax.nn.relu(x @ p["net.linear1.weight"].T + p["net.linear1.bias"])
        h = jax.nn.relu(h @ p["net.linear2.weight"].T + p["net.linear2.bias"])
        return (h @ p["net.linear3.weight"].T + p["net.linear3.bias"])[:, 0]

    def sup_loss(p):
        return jnp.mean((fwd(p, sx) - sy) ** 2)

    def aql(p0):
        fast = dict(p0)
        for _ in range(num_updates):
            g = jax.grad(sup_loss)(fast)
            fast = {k: fast[k] - step_size * g[k] for k in fast}
        return jnp.mean((fwd(fast, qx) - qy) ** 2)

    ql, g = jax.value_and_grad(aql)(params)
    return ql, {k: v / meta_batch_size for k, v in g.items()}


if __name__ == "__main__":
    input_dim, hidden_dim = 4, 32
    n_support, n_query = 8, 8
    num_updates, step_size, meta_batch_size = 3, 0.01, 4

    key = jax.random.PRNGKey(0)
    kp, ksx, ksy, kqx, kqy = jax.random.split(key, 5)
    params = init_params(kp, input_dim, hidden_dim)

    support_x = jax.random.normal(ksx, (n_support, input_dim), jnp.float32)
    support_y = jax.random.normal(ksy, (n_support,), jnp.float32)
    query_x = jax.random.normal(kqx, (n_query, input_dim), jnp.float32)
    query_y = jax.random.normal(kqy, (n_query,), jnp.float32)

    step = jax.jit(
        inner_loop_forward,
        static_argnames=("num_updates", "step_size", "meta_batch_size"),
    )
    query_loss, meta_grads = step(
        params, support_x, support_y, query_x, query_y,
        num_updates=num_updates, step_size=step_size,
        meta_batch_size=meta_batch_size,
    )
    jax.block_until_ready((query_loss, meta_grads))

    # numerical sanity check vs a pure-JAX (no Pallas, autodiff-based) reference
    ref_loss, ref_grads = jax.jit(
        _reference_inner_loop,
        static_argnames=("num_updates", "step_size", "meta_batch_size"),
    )(params, support_x, support_y, query_x, query_y,
      num_updates=num_updates, step_size=step_size,
      meta_batch_size=meta_batch_size)
    jax.block_until_ready((ref_loss, ref_grads))

    assert abs(float(query_loss) - float(ref_loss)) < 1e-3 * (1.0 + abs(float(ref_loss)))
    for k in meta_grads:
        err = float(jnp.max(jnp.abs(meta_grads[k] - ref_grads[k])))
        scale = 1.0 + float(jnp.max(jnp.abs(ref_grads[k])))
        assert err < 2e-3 * scale, (k, err)

    print("KERNEL_OK")
</pallas_src>

<mosaic_0001>
module attributes {stable_mosaic.version = 11 : i64} {
  func.func @_maml_inner_loop_kernel(%arg0: memref<16x4xf32, #tpu.memory_space<vmem>>, %arg1: memref<16x1xf32, #tpu.memory_space<vmem>>, %arg2: memref<4x32xf32, #tpu.memory_space<vmem>>, %arg3: memref<32x32xf32, #tpu.memory_space<vmem>>, %arg4: memref<4x32xf32, #tpu.memory_space<vmem>>, %arg5: memref<4x32xf32, #tpu.memory_space<vmem>>, %arg6: memref<32x32xf32, #tpu.memory_space<vmem>>, %arg7: memref<4x32xf32, #tpu.memory_space<vmem>>, %arg8: memref<1x1xf32, #tpu.memory_space<vmem>>) attributes {dimension_semantics = [], scalar_prefetch = 0 : i64, scratch_operands = 0 : i64, tpu.core_type = #tpu.core_type<tc>} {
    %c0 = arith.constant 0 : index
    %c0_0 = arith.constant 0 : index
    %0 = vector.load %arg0[%c0, %c0_0] : memref<16x4xf32, #tpu.memory_space<vmem>>, vector<8x4xf32>
    %c8 = arith.constant 8 : index
    %c0_1 = arith.constant 0 : index
    %1 = vector.load %arg0[%c8, %c0_1] : memref<16x4xf32, #tpu.memory_space<vmem>>, vector<8x4xf32>
    %c0_2 = arith.constant 0 : index
    %c0_3 = arith.constant 0 : index
    %2 = vector.load %arg1[%c0_2, %c0_3] : memref<16x1xf32, #tpu.memory_space<vmem>>, vector<8x1xf32>
    %c8_4 = arith.constant 8 : index
    %c0_5 = arith.constant 0 : index
    %3 = vector.load %arg1[%c8_4, %c0_5] : memref<16x1xf32, #tpu.memory_space<vmem>>, vector<8x1xf32>
    %c0_6 = arith.constant 0 : index
    %c0_7 = arith.constant 0 : index
    %4 = vector.load %arg2[%c0_6, %c0_7] : memref<4x32xf32, #tpu.memory_space<vmem>>, vector<4x32xf32>
    %c0_8 = arith.constant 0 : index
    %c0_9 = arith.constant 0 : index
    %5 = vector.load %arg3[%c0_8, %c0_9] : memref<32x32xf32, #tpu.memory_space<vmem>>, vector<32x32xf32>
    %c0_10 = arith.constant 0 : index
    %c0_11 = arith.constant 0 : index
    %6 = vector.load %arg4[%c0_10, %c0_11] : memref<4x32xf32, #tpu.memory_space<vmem>>, vector<1x32xf32>
    %c1 = arith.constant 1 : index
    %c0_12 = arith.constant 0 : index
    %7 = vector.load %arg4[%c1, %c0_12] : memref<4x32xf32, #tpu.memory_space<vmem>>, vector<1x32xf32>
    %c2 = arith.constant 2 : index
    %c0_13 = arith.constant 0 : index
    %8 = vector.load %arg4[%c2, %c0_13] : memref<4x32xf32, #tpu.memory_space<vmem>>, vector<1x32xf32>
    %c3 = arith.constant 3 : index
    %c0_14 = arith.constant 0 : index
    %9 = vector.load %arg4[%c3, %c0_14] : memref<4x32xf32, #tpu.memory_space<vmem>>, vector<1x1xf32>
    %10 = vector.extract_strided_slice %0 {offsets = [0, 0], sizes = [8, 1], strides = [1, 1]} : vector<8x4xf32> to vector<8x1xf32>
    %11 = vector.extract_strided_slice %4 {offsets = [0, 0], sizes = [1, 32], strides = [1, 1]} : vector<4x32xf32> to vector<1x32xf32>
    %12 = vector.broadcast %10 : vector<8x1xf32> to vector<8x32xf32>
    %13 = vector.broadcast %11 : vector<1x32xf32> to vector<8x32xf32>
    %14 = arith.mulf %12, %13 : vector<8x32xf32>
    %15 = vector.extract_strided_slice %0 {offsets = [0, 1], sizes = [8, 1], strides = [1, 1]} : vector<8x4xf32> to vector<8x1xf32>
    %16 = vector.extract_strided_slice %4 {offsets = [1, 0], sizes = [1, 32], strides = [1, 1]} : vector<4x32xf32> to vector<1x32xf32>
    %17 = vector.broadcast %15 : vector<8x1xf32> to vector<8x32xf32>
    %18 = vector.broadcast %16 : vector<1x32xf32> to vector<8x32xf32>
    %19 = arith.mulf %17, %18 : vector<8x32xf32>
    %20 = arith.addf %14, %19 : vector<8x32xf32>
    %21 = vector.extract_strided_slice %0 {offsets = [0, 2], sizes = [8, 1], strides = [1, 1]} : vector<8x4xf32> to vector<8x1xf32>
    %22 = vector.extract_strided_slice %4 {offsets = [2, 0], sizes = [1, 32], strides = [1, 1]} : vector<4x32xf32> to vector<1x32xf32>
    %23 = vector.broadcast %21 : vector<8x1xf32> to vector<8x32xf32>
    %24 = vector.broadcast %22 : vector<1x32xf32> to vector<8x32xf32>
    %25 = arith.mulf %23, %24 : vector<8x32xf32>
    %26 = arith.addf %20, %25 : vector<8x32xf32>
    %27 = vector.extract_strided_slice %0 {offsets = [0, 3], sizes = [8, 1], strides = [1, 1]} : vector<8x4xf32> to vector<8x1xf32>
    %28 = vector.extract_strided_slice %4 {offsets = [3, 0], sizes = [1, 32], strides = [1, 1]} : vector<4x32xf32> to vector<1x32xf32>
    %29 = vector.broadcast %27 : vector<8x1xf32> to vector<8x32xf32>
    %30 = vector.broadcast %28 : vector<1x32xf32> to vector<8x32xf32>
    %31 = arith.mulf %29, %30 : vector<8x32xf32>
    %32 = arith.addf %26, %31 : vector<8x32xf32>
    %33 = vector.broadcast %6 : vector<1x32xf32> to vector<8x32xf32>
    %34 = arith.addf %32, %33 : vector<8x32xf32>
    %cst = arith.constant 0.000000e+00 : f32
    %35 = vector.broadcast %cst : f32 to vector<8x32xf32>
    %36 = arith.cmpf ogt, %34, %35 : vector<8x32xf32>
    %cst_15 = arith.constant 0.000000e+00 : f32
    %37 = vector.broadcast %cst_15 : f32 to vector<8x32xf32>
    %38 = arith.select %36, %34, %37 : vector<8x32xi1>, vector<8x32xf32>
    %cst_16 = arith.constant dense<0.000000e+00> : vector<8x32xf32>
    %39 = tpu.matmul %38, %5, %cst_16 {dimension_numbers = #tpu.dot_dimension_numbers<[1], [0], [0], [1], [0, 0, 1, 1], [], []>} : vector<8x32xf32>, vector<32x32xf32>, vector<8x32xf32> -> vector<8x32xf32>
    %40 = vector.broadcast %7 : vector<1x32xf32> to vector<8x32xf32>
    %41 = arith.addf %39, %40 : vector<8x32xf32>
    %cst_17 = arith.constant 0.000000e+00 : f32
    %42 = vector.broadcast %cst_17 : f32 to vector<8x32xf32>
    %43 = arith.cmpf ogt, %41, %42 : vector<8x32xf32>
    %cst_18 = arith.constant 0.000000e+00 : f32
    %44 = vector.broadcast %cst_18 : f32 to vector<8x32xf32>
    %45 = arith.select %43, %41, %44 : vector<8x32xi1>, vector<8x32xf32>
    %46 = vector.broadcast %8 : vector<1x32xf32> to vector<8x32xf32>
    %47 = arith.mulf %45, %46 : vector<8x32xf32>
    %cst_19 = arith.constant dense<0.000000e+00> : vector<8xf32>
    %48 = vector.multi_reduction <add>, %47, %cst_19 [1] : vector<8x32xf32> to vector<8xf32>
    %49 = vector.shape_cast %48 : vector<8xf32> to vector<8x1xf32>
    %50 = vector.broadcast %9 : vector<1x1xf32> to vector<8x1xf32>
    %51 = arith.addf %49, %50 : vector<8x1xf32>
    %52 = arith.subf %51, %2 : vector<8x1xf32>
    %cst_20 = arith.constant 2.500000e-01 : f32
    %53 = vector.broadcast %cst_20 : f32 to vector<8x1xf32>
    %54 = arith.mulf %53, %52 : vector<8x1xf32>
    %cst_21 = arith.constant dense<0.000000e+00> : vector<1xf32>
    %55 = vector.multi_reduction <add>, %54, %cst_21 [0] : vector<8x1xf32> to vector<1xf32>
    %56 = vector.shape_cast %55 : vector<1xf32> to vector<1x1xf32>
    %57 = vector.broadcast %54 : vector<8x1xf32> to vector<8x32xf32>
    %58 = arith.mulf %57, %45 : vector<8x32xf32>
    %cst_22 = arith.constant dense<0.000000e+00> : vector<32xf32>
    %59 = vector.multi_reduction <add>, %58, %cst_22 [0] : vector<8x32xf32> to vector<32xf32>
    %60 = vector.shape_cast %59 : vector<32xf32> to vector<1x32xf32>
    %61 = vector.broadcast %54 : vector<8x1xf32> to vector<8x32xf32>
    %62 = vector.broadcast %8 : vector<1x32xf32> to vector<8x32xf32>
    %63 = arith.mulf %61, %62 : vector<8x32xf32>
    %cst_23 = arith.constant 0.000000e+00 : f32
    %64 = vector.broadcast %cst_23 : f32 to vector<8x32xf32>
    %65 = arith.select %43, %63, %64 : vector<8x32xi1>, vector<8x32xf32>
    %cst_24 = arith.constant dense<0.000000e+00> : vector<32x32xf32>
    %66 = tpu.matmul %38, %65, %cst_24 {dimension_numbers = #tpu.dot_dimension_numbers<[0], [0], [1], [1], [0, 1, 1, 1], [], []>} : vector<8x32xf32>, vector<8x32xf32>, vector<32x32xf32> -> vector<32x32xf32>
    %cst_25 = arith.constant dense<0.000000e+00> : vector<32xf32>
    %67 = vector.multi_reduction <add>, %65, %cst_25 [0] : vector<8x32xf32> to vector<32xf32>
    %68 = vector.shape_cast %67 : vector<32xf32> to vector<1x32xf32>
    %cst_26 = arith.constant dense<0.000000e+00> : vector<8x32xf32>
    %69 = tpu.matmul %65, %5, %cst_26 {dimension_numbers = #tpu.dot_dimension_numbers<[1], [1], [0], [0], [0, 0, 1, 0], [], []>} : vector<8x32xf32>, vector<32x32xf32>, vector<8x32xf32> -> vector<8x32xf32>
    %cst_27 = arith.constant 0.000000e+00 : f32
    %70 = vector.broadcast %cst_27 : f32 to vector<8x32xf32>
    %71 = arith.select %36, %69, %70 : vector<8x32xi1>, vector<8x32xf32>
    %cst_28 = arith.constant dense<0.000000e+00> : vector<4x32xf32>
    %72 = tpu.matmul %0, %71, %cst_28 {dimension_numbers = #tpu.dot_dimension_numbers<[0], [0], [1], [1], [0, 1, 1, 1], [], []>} : vector<8x4xf32>, vector<8x32xf32>, vector<4x32xf32> -> vector<4x32xf32>
    %cst_29 = arith.constant dense<0.000000e+00> : vector<32xf32>
    %73 = vector.multi_reduction <add>, %71, %cst_29 [0] : vector<8x32xf32> to vector<32xf32>
    %74 = vector.shape_cast %73 : vector<32xf32> to vector<1x32xf32>
    %cst_30 = arith.constant 0.00999999977 : f32
    %75 = vector.broadcast %cst_30 : f32 to vector<4x32xf32>
    %76 = arith.mulf %75, %72 : vector<4x32xf32>
    %77 = arith.subf %4, %76 : vector<4x32xf32>
    %cst_31 = arith.constant 0.00999999977 : f32
    %78 = vector.broadcast %cst_31 : f32 to vector<1x32xf32>
    %79 = arith.mulf %78, %74 : vector<1x32xf32>
    %80 = arith.subf %6, %79 : vector<1x32xf32>
    %cst_32 = arith.constant 0.00999999977 : f32
    %81 = vector.broadcast %cst_32 : f32 to vector<32x32xf32>
    %82 = arith.mulf %81, %66 : vector<32x32xf32>
    %83 = arith.subf %5, %82 : vector<32x32xf32>
    %cst_33 = arith.constant 0.00999999977 : f32
    %84 = vector.broadcast %cst_33 : f32 to vector<1x32xf32>
    %85 = arith.mulf %84, %68 : vector<1x32xf32>
    %86 = arith.subf %7, %85 : vector<1x32xf32>
    %cst_34 = arith.constant 0.00999999977 : f32
    %87 = vector.broadcast %cst_34 : f32 to vector<1x32xf32>
    %88 = arith.mulf %87, %60 : vector<1x32xf32>
    %89 = arith.subf %8, %88 : vector<1x32xf32>
    %cst_35 = arith.constant 0.00999999977 : f32
    %90 = vector.broadcast %cst_35 : f32 to vector<1x1xf32>
    %91 = arith.mulf %90, %56 : vector<1x1xf32>
    %92 = arith.subf %9, %91 : vector<1x1xf32>
    %93 = vector.extract_strided_slice %0 {offsets = [0, 0], sizes = [8, 1], strides = [1, 1]} : vector<8x4xf32> to vector<8x1xf32>
    %94 = vector.extract_strided_slice %77 {offsets = [0, 0], sizes = [1, 32], strides = [1, 1]} : vector<4x32xf32> to vector<1x32xf32>
    %95 = vector.broadcast %93 : vector<8x1xf32> to vector<8x32xf32>
    %96 = vector.broadcast %94 : vector<1x32xf32> to vector<8x32xf32>
    %97 = arith.mulf %95, %96 : vector<8x32xf32>
    %98 = vector.extract_strided_slice %0 {offsets = [0, 1], sizes = [8, 1], strides = [1, 1]} : vector<8x4xf32> to vector<8x1xf32>
    %99 = vector.extract_strided_slice %77 {offsets = [1, 0], sizes = [1, 32], strides = [1, 1]} : vector<4x32xf32> to vector<1x32xf32>
    %100 = vector.broadcast %98 : vector<8x1xf32> to vector<8x32xf32>
    %101 = vector.broadcast %99 : vector<1x32xf32> to vector<8x32xf32>
    %102 = arith.mulf %100, %101 : vector<8x32xf32>
    %103 = arith.addf %97, %102 : vector<8x32xf32>
    %104 = vector.extract_strided_slice %0 {offsets = [0, 2], sizes = [8, 1], strides = [1, 1]} : vector<8x4xf32> to vector<8x1xf32>
    %105 = vector.extract_strided_slice %77 {offsets = [2, 0], sizes = [1, 32], strides = [1, 1]} : vector<4x32xf32> to vector<1x32xf32>
    %106 = vector.broadcast %104 : vector<8x1xf32> to vector<8x32xf32>
    %107 = vector.broadcast %105 : vector<1x32xf32> to vector<8x32xf32>
    %108 = arith.mulf %106, %107 : vector<8x32xf32>
    %109 = arith.addf %103, %108 : vector<8x32xf32>
    %110 = vector.extract_strided_slice %0 {offsets = [0, 3], sizes = [8, 1], strides = [1, 1]} : vector<8x4xf32> to vector<8x1xf32>
    %111 = vector.extract_strided_slice %77 {offsets = [3, 0], sizes = [1, 32], strides = [1, 1]} : vector<4x32xf32> to vector<1x32xf32>
    %112 = vector.broadcast %110 : vector<8x1xf32> to vector<8x32xf32>
    %113 = vector.broadcast %111 : vector<1x32xf32> to vector<8x32xf32>
    %114 = arith.mulf %112, %113 : vector<8x32xf32>
    %115 = arith.addf %109, %114 : vector<8x32xf32>
    %116 = vector.broadcast %80 : vector<1x32xf32> to vector<8x32xf32>
    %117 = arith.addf %115, %116 : vector<8x32xf32>
    %cst_36 = arith.constant 0.000000e+00 : f32
    %118 = vector.broadcast %cst_36 : f32 to vector<8x32xf32>
    %119 = arith.cmpf ogt, %117, %118 : vector<8x32xf32>
    %cst_37 = arith.constant 0.000000e+00 : f32
    %120 = vector.broadcast %cst_37 : f32 to vector<8x32xf32>
    %121 = arith.select %119, %117, %120 : vector<8x32xi1>, vector<8x32xf32>
    %cst_38 = arith.constant dense<0.000000e+00> : vector<8x32xf32>
    %122 = tpu.matmul %121, %83, %cst_38 {dimension_numbers = #tpu.dot_dimension_numbers<[1], [0], [0], [1], [0, 0, 1, 1], [], []>} : vector<8x32xf32>, vector<32x32xf32>, vector<8x32xf32> -> vector<8x32xf32>
    %123 = vector.broadcast %86 : vector<1x32xf32> to vector<8x32xf32>
    %124 = arith.addf %122, %123 : vector<8x32xf32>
    %cst_39 = arith.constant 0.000000e+00 : f32
    %125 = vector.broadcast %cst_39 : f32 to vector<8x32xf32>
    %126 = arith.cmpf ogt, %124, %125 : vector<8x32xf32>
    %cst_40 = arith.constant 0.000000e+00 : f32
    %127 = vector.broadcast %cst_40 : f32 to vector<8x32xf32>
    %128 = arith.select %126, %124, %127 : vector<8x32xi1>, vector<8x32xf32>
    %129 = vector.broadcast %89 : vector<1x32xf32> to vector<8x32xf32>
    %130 = arith.mulf %128, %129 : vector<8x32xf32>
    %cst_41 = arith.constant dense<0.000000e+00> : vector<8xf32>
    %131 = vector.multi_reduction <add>, %130, %cst_41 [1] : vector<8x32xf32> to vector<8xf32>
    %132 = vector.shape_cast %131 : vector<8xf32> to vector<8x1xf32>
    %133 = vector.broadcast %92 : vector<1x1xf32> to vector<8x1xf32>
    %134 = arith.addf %132, %133 : vector<8x1xf32>
    %135 = arith.subf %134, %2 : vector<8x1xf32>
    %cst_42 = arith.constant 2.500000e-01 : f32
    %136 = vector.broadcast %cst_42 : f32 to vector<8x1xf32>
    %137 = arith.mulf %136, %135 : vector<8x1xf32>
    %cst_43 = arith.constant dense<0.000000e+00> : vector<1xf32>
    %138 = vector.multi_reduction <add>, %137, %cst_43 [0] : vector<8x1xf32> to vector<1xf32>
    %139 = vector.shape_cast %138 : vector<1xf32> to vector<1x1xf32>
    %140 = vector.broadcast %137 : vector<8x1xf32> to vector<8x32xf32>
    %141 = arith.mulf %140, %128 : vector<8x32xf32>
    %cst_44 = arith.constant dense<0.000000e+00> : vector<32xf32>
    %142 = vector.multi_reduction <add>, %141, %cst_44 [0] : vector<8x32xf32> to vector<32xf32>
    %143 = vector.shape_cast %142 : vector<32xf32> to vector<1x32xf32>
    %144 = vector.broadcast %137 : vector<8x1xf32> to vector<8x32xf32>
    %145 = vector.broadcast %89 : vector<1x32xf32> to vector<8x32xf32>
    %146 = arith.mulf %144, %145 : vector<8x32xf32>
    %cst_45 = arith.constant 0.000000e+00 : f32
    %147 = vector.broadcast %cst_45 : f32 to vector<8x32xf32>
    %148 = arith.select %126, %146, %147 : vector<8x32xi1>, vector<8x32xf32>
    %cst_46 = arith.constant dense<0.000000e+00> : vector<32x32xf32>
    %149 = tpu.matmul %121, %148, %cst_46 {dimension_numbers = #tpu.dot_dimension_numbers<[0], [0], [1], [1], [0, 1, 1, 1], [], []>} : vector<8x32xf32>, vector<8x32xf32>, vector<32x32xf32> -> vector<32x32xf32>
    %cst_47 = arith.constant dense<0.000000e+00> : vector<32xf32>
    %150 = vector.multi_reduction <add>, %148, %cst_47 [0] : vector<8x32xf32> to vector<32xf32>
    %151 = vector.shape_cast %150 : vector<32xf32> to vector<1x32xf32>
    %cst_48 = arith.constant dense<0.000000e+00> : vector<8x32xf32>
    %152 = tpu.matmul %148, %83, %cst_48 {dimension_numbers = #tpu.dot_dimension_numbers<[1], [1], [0], [0], [0, 0, 1, 0], [], []>} : vector<8x32xf32>, vector<32x32xf32>, vector<8x32xf32> -> vector<8x32xf32>
    %cst_49 = arith.constant 0.000000e+00 : f32
    %153 = vector.broadcast %cst_49 : f32 to vector<8x32xf32>
    %154 = arith.select %119, %152, %153 : vector<8x32xi1>, vector<8x32xf32>
    %cst_50 = arith.constant dense<0.000000e+00> : vector<4x32xf32>
    %155 = tpu.matmul %0, %154, %cst_50 {dimension_numbers = #tpu.dot_dimension_numbers<[0], [0], [1], [1], [0, 1, 1, 1], [], []>} : vector<8x4xf32>, vector<8x32xf32>, vector<4x32xf32> -> vector<4x32xf32>
    %cst_51 = arith.constant dense<0.000000e+00> : vector<32xf32>
    %156 = vector.multi_reduction <add>, %154, %cst_51 [0] : vector<8x32xf32> to vector<32xf32>
    %157 = vector.shape_cast %156 : vector<32xf32> to vector<1x32xf32>
    %cst_52 = arith.constant 0.00999999977 : f32
    %158 = vector.broadcast %cst_52 : f32 to vector<4x32xf32>
    %159 = arith.mulf %158, %155 : vector<4x32xf32>
    %160 = arith.subf %77, %159 : vector<4x32xf32>
    %cst_53 = arith.constant 0.00999999977 : f32
    %161 = vector.broadcast %cst_53 : f32 to vector<1x32xf32>
    %162 = arith.mulf %161, %157 : vector<1x32xf32>
    %163 = arith.subf %80, %162 : vector<1x32xf32>
    %cst_54 = arith.constant 0.00999999977 : f32
    %164 = vector.broadcast %cst_54 : f32 to vector<32x32xf32>
    %165 = arith.mulf %164, %149 : vector<32x32xf32>
    %166 = arith.subf %83, %165 : vector<32x32xf32>
    %cst_55 = arith.constant 0.00999999977 : f32
    %167 = vector.broadcast %cst_55 : f32 to vector<1x32xf32>
    %168 = arith.mulf %167, %151 : vector<1x32xf32>
    %169 = arith.subf %86, %168 : vector<1x32xf32>
    %cst_56 = arith.constant 0.00999999977 : f32
    %170 = vector.broadcast %cst_56 : f32 to vector<1x32xf32>
    %171 = arith.mulf %170, %143 : vector<1x32xf32>
    %172 = arith.subf %89, %171 : vector<1x32xf32>
    %cst_57 = arith.constant 0.00999999977 : f32
    %173 = vector.broadcast %cst_57 : f32 to vector<1x1xf32>
    %174 = arith.mulf %173, %139 : vector<1x1xf32>
    %175 = arith.subf %92, %174 : vector<1x1xf32>
    %176 = vector.extract_strided_slice %0 {offsets = [0, 0], sizes = [8, 1], strides = [1, 1]} : vector<8x4xf32> to vector<8x1xf32>
    %177 = vector.extract_strided_slice %160 {offsets = [0, 0], sizes = [1, 32], strides = [1, 1]} : vector<4x32xf32> to vector<1x32xf32>
    %178 = vector.broadcast %176 : vector<8x1xf32> to vector<8x32xf32>
    %179 = vector.broadcast %177 : vector<1x32xf32> to vector<8x32xf32>
    %180 = arith.mulf %178, %179 : vector<8x32xf32>
    %181 = vector.extract_strided_slice %0 {offsets = [0, 1], sizes = [8, 1], strides = [1, 1]} : vector<8x4xf32> to vector<8x1xf32>
    %182 = vector.extract_strided_slice %160 {offsets = [1, 0], sizes = [1, 32], strides = [1, 1]} : vector<4x32xf32> to vector<1x32xf32>
    %183 = vector.broadcast %181 : vector<8x1xf32> to vector<8x32xf32>
    %184 = vector.broadcast %182 : vector<1x32xf32> to vector<8x32xf32>
    %185 = arith.mulf %183, %184 : vector<8x32xf32>
    %186 = arith.addf %180, %185 : vector<8x32xf32>
    %187 = vector.extract_strided_slice %0 {offsets = [0, 2], sizes = [8, 1], strides = [1, 1]} : vector<8x4xf32> to vector<8x1xf32>
    %188 = vector.extract_strided_slice %160 {offsets = [2, 0], sizes = [1, 32], strides = [1, 1]} : vector<4x32xf32> to vector<1x32xf32>
    %189 = vector.broadcast %187 : vector<8x1xf32> to vector<8x32xf32>
    %190 = vector.broadcast %188 : vector<1x32xf32> to vector<8x32xf32>
    %191 = arith.mulf %189, %190 : vector<8x32xf32>
    %192 = arith.addf %186, %191 : vector<8x32xf32>
    %193 = vector.extract_strided_slice %0 {offsets = [0, 3], sizes = [8, 1], strides = [1, 1]} : vector<8x4xf32> to vector<8x1xf32>
    %194 = vector.extract_strided_slice %160 {offsets = [3, 0], sizes = [1, 32], strides = [1, 1]} : vector<4x32xf32> to vector<1x32xf32>
    %195 = vector.broadcast %193 : vector<8x1xf32> to vector<8x32xf32>
    %196 = vector.broadcast %194 : vector<1x32xf32> to vector<8x32xf32>
    %197 = arith.mulf %195, %196 : vector<8x32xf32>
    %198 = arith.addf %192, %197 : vector<8x32xf32>
    %199 = vector.broadcast %163 : vector<1x32xf32> to vector<8x32xf32>
    %200 = arith.addf %198, %199 : vector<8x32xf32>
    %cst_58 = arith.constant 0.000000e+00 : f32
    %201 = vector.broadcast %cst_58 : f32 to vector<8x32xf32>
    %202 = arith.cmpf ogt, %200, %201 : vector<8x32xf32>
    %cst_59 = arith.constant 0.000000e+00 : f32
    %203 = vector.broadcast %cst_59 : f32 to vector<8x32xf32>
    %204 = arith.select %202, %200, %203 : vector<8x32xi1>, vector<8x32xf32>
    %cst_60 = arith.constant dense<0.000000e+00> : vector<8x32xf32>
    %205 = tpu.matmul %204, %166, %cst_60 {dimension_numbers = #tpu.dot_dimension_numbers<[1], [0], [0], [1], [0, 0, 1, 1], [], []>} : vector<8x32xf32>, vector<32x32xf32>, vector<8x32xf32> -> vector<8x32xf32>
    %206 = vector.broadcast %169 : vector<1x32xf32> to vector<8x32xf32>
    %207 = arith.addf %205, %206 : vector<8x32xf32>
    %cst_61 = arith.constant 0.000000e+00 : f32
    %208 = vector.broadcast %cst_61 : f32 to vector<8x32xf32>
    %209 = arith.cmpf ogt, %207, %208 : vector<8x32xf32>
    %cst_62 = arith.constant 0.000000e+00 : f32
    %210 = vector.broadcast %cst_62 : f32 to vector<8x32xf32>
    %211 = arith.select %209, %207, %210 : vector<8x32xi1>, vector<8x32xf32>
    %212 = vector.broadcast %172 : vector<1x32xf32> to vector<8x32xf32>
    %213 = arith.mulf %211, %212 : vector<8x32xf32>
    %cst_63 = arith.constant dense<0.000000e+00> : vector<8xf32>
    %214 = vector.multi_reduction <add>, %213, %cst_63 [1] : vector<8x32xf32> to vector<8xf32>
    %215 = vector.shape_cast %214 : vector<8xf32> to vector<8x1xf32>
    %216 = vector.broadcast %175 : vector<1x1xf32> to vector<8x1xf32>
    %217 = arith.addf %215, %216 : vector<8x1xf32>
    %218 = arith.subf %217, %2 : vector<8x1xf32>
    %cst_64 = arith.constant 2.500000e-01 : f32
    %219 = vector.broadcast %cst_64 : f32 to vector<8x1xf32>
    %220 = arith.mulf %219, %218 : vector<8x1xf32>
    %cst_65 = arith.constant dense<0.000000e+00> : vector<1xf32>
    %221 = vector.multi_reduction <add>, %220, %cst_65 [0] : vector<8x1xf32> to vector<1xf32>
    %222 = vector.shape_cast %221 : vector<1xf32> to vector<1x1xf32>
    %223 = vector.broadcast %220 : vector<8x1xf32> to vector<8x32xf32>
    %224 = arith.mulf %223, %211 : vector<8x32xf32>
    %cst_66 = arith.constant dense<0.000000e+00> : vector<32xf32>
    %225 = vector.multi_reduction <add>, %224, %cst_66 [0] : vector<8x32xf32> to vector<32xf32>
    %226 = vector.shape_cast %225 : vector<32xf32> to vector<1x32xf32>
    %227 = vector.broadcast %220 : vector<8x1xf32> to vector<8x32xf32>
    %228 = vector.broadcast %172 : vector<1x32xf32> to vector<8x32xf32>
    %229 = arith.mulf %227, %228 : vector<8x32xf32>
    %cst_67 = arith.constant 0.000000e+00 : f32
    %230 = vector.broadcast %cst_67 : f32 to vector<8x32xf32>
    %231 = arith.select %209, %229, %230 : vector<8x32xi1>, vector<8x32xf32>
    %cst_68 = arith.constant dense<0.000000e+00> : vector<32x32xf32>
    %232 = tpu.matmul %204, %231, %cst_68 {dimension_numbers = #tpu.dot_dimension_numbers<[0], [0], [1], [1], [0, 1, 1, 1], [], []>} : vector<8x32xf32>, vector<8x32xf32>, vector<32x32xf32> -> vector<32x32xf32>
    %cst_69 = arith.constant dense<0.000000e+00> : vector<32xf32>
    %233 = vector.multi_reduction <add>, %231, %cst_69 [0] : vector<8x32xf32> to vector<32xf32>
    %234 = vector.shape_cast %233 : vector<32xf32> to vector<1x32xf32>
    %cst_70 = arith.constant dense<0.000000e+00> : vector<8x32xf32>
    %235 = tpu.matmul %231, %166, %cst_70 {dimension_numbers = #tpu.dot_dimension_numbers<[1], [1], [0], [0], [0, 0, 1, 0], [], []>} : vector<8x32xf32>, vector<32x32xf32>, vector<8x32xf32> -> vector<8x32xf32>
    %cst_71 = arith.constant 0.000000e+00 : f32
    %236 = vector.broadcast %cst_71 : f32 to vector<8x32xf32>
    %237 = arith.select %202, %235, %236 : vector<8x32xi1>, vector<8x32xf32>
    %cst_72 = arith.constant dense<0.000000e+00> : vector<4x32xf32>
    %238 = tpu.matmul %0, %237, %cst_72 {dimension_numbers = #tpu.dot_dimension_numbers<[0], [0], [1], [1], [0, 1, 1, 1], [], []>} : vector<8x4xf32>, vector<8x32xf32>, vector<4x32xf32> -> vector<4x32xf32>
    %cst_73 = arith.constant dense<0.000000e+00> : vector<32xf32>
    %239 = vector.multi_reduction <add>, %237, %cst_73 [0] : vector<8x32xf32> to vector<32xf32>
    %240 = vector.shape_cast %239 : vector<32xf32> to vector<1x32xf32>
    %cst_74 = arith.constant 0.00999999977 : f32
    %241 = vector.broadcast %cst_74 : f32 to vector<4x32xf32>
    %242 = arith.mulf %241, %238 : vector<4x32xf32>
    %243 = arith.subf %160, %242 : vector<4x32xf32>
    %cst_75 = arith.constant 0.00999999977 : f32
    %244 = vector.broadcast %cst_75 : f32 to vector<1x32xf32>
    %245 = arith.mulf %244, %240 : vector<1x32xf32>
    %246 = arith.subf %163, %245 : vector<1x32xf32>
    %cst_76 = arith.constant 0.00999999977 : f32
    %247 = vector.broadcast %cst_76 : f32 to vector<32x32xf32>
    %248 = arith.mulf %247, %232 : vector<32x32xf32>
    %249 = arith.subf %166, %248 : vector<32x32xf32>
    %cst_77 = arith.constant 0.00999999977 : f32
    %250 = vector.broadcast %cst_77 : f32 to vector<1x32xf32>
    %251 = arith.mulf %250, %234 : vector<1x32xf32>
    %252 = arith.subf %169, %251 : vector<1x32xf32>
    %cst_78 = arith.constant 0.00999999977 : f32
    %253 = vector.broadcast %cst_78 : f32 to vector<1x32xf32>
    %254 = arith.mulf %253, %226 : vector<1x32xf32>
    %255 = arith.subf %172, %254 : vector<1x32xf32>
    %cst_79 = arith.constant 0.00999999977 : f32
    %256 = vector.broadcast %cst_79 : f32 to vector<1x1xf32>
    %257 = arith.mulf %256, %222 : vector<1x1xf32>
    %258 = arith.subf %175, %257 : vector<1x1xf32>
    %259 = vector.extract_strided_slice %1 {offsets = [0, 0], sizes = [8, 1], strides = [1, 1]} : vector<8x4xf32> to vector<8x1xf32>
    %260 = vector.extract_strided_slice %243 {offsets = [0, 0], sizes = [1, 32], strides = [1, 1]} : vector<4x32xf32> to vector<1x32xf32>
    %261 = vector.broadcast %259 : vector<8x1xf32> to vector<8x32xf32>
    %262 = vector.broadcast %260 : vector<1x32xf32> to vector<8x32xf32>
    %263 = arith.mulf %261, %262 : vector<8x32xf32>
    %264 = vector.extract_strided_slice %1 {offsets = [0, 1], sizes = [8, 1], strides = [1, 1]} : vector<8x4xf32> to vector<8x1xf32>
    %265 = vector.extract_strided_slice %243 {offsets = [1, 0], sizes = [1, 32], strides = [1, 1]} : vector<4x32xf32> to vector<1x32xf32>
    %266 = vector.broadcast %264 : vector<8x1xf32> to vector<8x32xf32>
    %267 = vector.broadcast %265 : vector<1x32xf32> to vector<8x32xf32>
    %268 = arith.mulf %266, %267 : vector<8x32xf32>
    %269 = arith.addf %263, %268 : vector<8x32xf32>
    %270 = vector.extract_strided_slice %1 {offsets = [0, 2], sizes = [8, 1], strides = [1, 1]} : vector<8x4xf32> to vector<8x1xf32>
    %271 = vector.extract_strided_slice %243 {offsets = [2, 0], sizes = [1, 32], strides = [1, 1]} : vector<4x32xf32> to vector<1x32xf32>
    %272 = vector.broadcast %270 : vector<8x1xf32> to vector<8x32xf32>
    %273 = vector.broadcast %271 : vector<1x32xf32> to vector<8x32xf32>
    %274 = arith.mulf %272, %273 : vector<8x32xf32>
    %275 = arith.addf %269, %274 : vector<8x32xf32>
    %276 = vector.extract_strided_slice %1 {offsets = [0, 3], sizes = [8, 1], strides = [1, 1]} : vector<8x4xf32> to vector<8x1xf32>
    %277 = vector.extract_strided_slice %243 {offsets = [3, 0], sizes = [1, 32], strides = [1, 1]} : vector<4x32xf32> to vector<1x32xf32>
    %278 = vector.broadcast %276 : vector<8x1xf32> to vector<8x32xf32>
    %279 = vector.broadcast %277 : vector<1x32xf32> to vector<8x32xf32>
    %280 = arith.mulf %278, %279 : vector<8x32xf32>
    %281 = arith.addf %275, %280 : vector<8x32xf32>
    %282 = vector.broadcast %246 : vector<1x32xf32> to vector<8x32xf32>
    %283 = arith.addf %281, %282 : vector<8x32xf32>
    %cst_80 = arith.constant 0.000000e+00 : f32
    %284 = vector.broadcast %cst_80 : f32 to vector<8x32xf32>
    %285 = arith.cmpf ogt, %283, %284 : vector<8x32xf32>
    %cst_81 = arith.constant 0.000000e+00 : f32
    %286 = vector.broadcast %cst_81 : f32 to vector<8x32xf32>
    %287 = arith.select %285, %283, %286 : vector<8x32xi1>, vector<8x32xf32>
    %cst_82 = arith.constant dense<0.000000e+00> : vector<8x32xf32>
    %288 = tpu.matmul %287, %249, %cst_82 {dimension_numbers = #tpu.dot_dimension_numbers<[1], [0], [0], [1], [0, 0, 1, 1], [], []>} : vector<8x32xf32>, vector<32x32xf32>, vector<8x32xf32> -> vector<8x32xf32>
    %289 = vector.broadcast %252 : vector<1x32xf32> to vector<8x32xf32>
    %290 = arith.addf %288, %289 : vector<8x32xf32>
    %cst_83 = arith.constant 0.000000e+00 : f32
    %291 = vector.broadcast %cst_83 : f32 to vector<8x32xf32>
    %292 = arith.cmpf ogt, %290, %291 : vector<8x32xf32>
    %cst_84 = arith.constant 0.000000e+00 : f32
    %293 = vector.broadcast %cst_84 : f32 to vector<8x32xf32>
    %294 = arith.select %292, %290, %293 : vector<8x32xi1>, vector<8x32xf32>
    %295 = vector.broadcast %255 : vector<1x32xf32> to vector<8x32xf32>
    %296 = arith.mulf %294, %295 : vector<8x32xf32>
    %cst_85 = arith.constant dense<0.000000e+00> : vector<8xf32>
    %297 = vector.multi_reduction <add>, %296, %cst_85 [1] : vector<8x32xf32> to vector<8xf32>
    %298 = vector.shape_cast %297 : vector<8xf32> to vector<8x1xf32>
    %299 = vector.broadcast %258 : vector<1x1xf32> to vector<8x1xf32>
    %300 = arith.addf %298, %299 : vector<8x1xf32>
    %301 = arith.subf %300, %3 : vector<8x1xf32>
    %cst_86 = arith.constant 2.500000e-01 : f32
    %302 = vector.broadcast %cst_86 : f32 to vector<8x1xf32>
    %303 = arith.mulf %302, %301 : vector<8x1xf32>
    %cst_87 = arith.constant dense<0.000000e+00> : vector<1xf32>
    %304 = vector.multi_reduction <add>, %303, %cst_87 [0] : vector<8x1xf32> to vector<1xf32>
    %305 = vector.shape_cast %304 : vector<1xf32> to vector<1x1xf32>
    %306 = vector.broadcast %303 : vector<8x1xf32> to vector<8x32xf32>
    %307 = arith.mulf %306, %294 : vector<8x32xf32>
    %cst_88 = arith.constant dense<0.000000e+00> : vector<32xf32>
    %308 = vector.multi_reduction <add>, %307, %cst_88 [0] : vector<8x32xf32> to vector<32xf32>
    %309 = vector.shape_cast %308 : vector<32xf32> to vector<1x32xf32>
    %310 = vector.broadcast %303 : vector<8x1xf32> to vector<8x32xf32>
    %311 = vector.broadcast %255 : vector<1x32xf32> to vector<8x32xf32>
    %312 = arith.mulf %310, %311 : vector<8x32xf32>
    %cst_89 = arith.constant 0.000000e+00 : f32
    %313 = vector.broadcast %cst_89 : f32 to vector<8x32xf32>
    %314 = arith.select %292, %312, %313 : vector<8x32xi1>, vector<8x32xf32>
    %cst_90 = arith.constant dense<0.000000e+00> : vector<32x32xf32>
    %315 = tpu.matmul %287, %314, %cst_90 {dimension_numbers = #tpu.dot_dimension_numbers<[0], [0], [1], [1], [0, 1, 1, 1], [], []>} : vector<8x32xf32>, vector<8x32xf32>, vector<32x32xf32> -> vector<32x32xf32>
    %cst_91 = arith.constant dense<0.000000e+00> : vector<32xf32>
    %316 = vector.multi_reduction <add>, %314, %cst_91 [0] : vector<8x32xf32> to vector<32xf32>
    %317 = vector.shape_cast %316 : vector<32xf32> to vector<1x32xf32>
    %cst_92 = arith.constant dense<0.000000e+00> : vector<8x32xf32>
    %318 = tpu.matmul %314, %249, %cst_92 {dimension_numbers = #tpu.dot_dimension_numbers<[1], [1], [0], [0], [0, 0, 1, 0], [], []>} : vector<8x32xf32>, vector<32x32xf32>, vector<8x32xf32> -> vector<8x32xf32>
    %cst_93 = arith.constant 0.000000e+00 : f32
    %319 = vector.broadcast %cst_93 : f32 to vector<8x32xf32>
    %320 = arith.select %285, %318, %319 : vector<8x32xi1>, vector<8x32xf32>
    %cst_94 = arith.constant dense<0.000000e+00> : vector<4x32xf32>
    %321 = tpu.matmul %1, %320, %cst_94 {dimension_numbers = #tpu.dot_dimension_numbers<[0], [0], [1], [1], [0, 1, 1, 1], [], []>} : vector<8x4xf32>, vector<8x32xf32>, vector<4x32xf32> -> vector<4x32xf32>
    %cst_95 = arith.constant dense<0.000000e+00> : vector<32xf32>
    %322 = vector.multi_reduction <add>, %320, %cst_95 [0] : vector<8x32xf32> to vector<32xf32>
    %323 = vector.shape_cast %322 : vector<32xf32> to vector<1x32xf32>
    %324 = arith.mulf %301, %301 : vector<8x1xf32>
    %cst_96 = arith.constant dense<0.000000e+00> : vector<1xf32>
    %325 = vector.multi_reduction <add>, %324, %cst_96 [0] : vector<8x1xf32> to vector<1xf32>
    %326 = vector.shape_cast %325 : vector<1xf32> to vector<1x1xf32>
    %cst_97 = arith.constant 1.250000e-01 : f32
    %327 = vector.broadcast %cst_97 : f32 to vector<1x1xf32>
    %328 = arith.mulf %326, %327 : vector<1x1xf32>
    %c0_98 = arith.constant 0 : index
    %c0_99 = arith.constant 0 : index
    %329 = vector.load %arg8[%c0_98, %c0_99] : memref<1x1xf32, #tpu.memory_space<vmem>>, vector<1x1xf32>
    tpu.vector_store %arg8[%c0_98, %c0_99], %328 {strides = array<i32>} : memref<1x1xf32, #tpu.memory_space<vmem>>, vector<1x1xf32>,
    %330 = vector.extract_strided_slice %0 {offsets = [0, 0], sizes = [8, 1], strides = [1, 1]} : vector<8x4xf32> to vector<8x1xf32>
    %331 = vector.extract_strided_slice %321 {offsets = [0, 0], sizes = [1, 32], strides = [1, 1]} : vector<4x32xf32> to vector<1x32xf32>
    %332 = vector.broadcast %330 : vector<8x1xf32> to vector<8x32xf32>
    %333 = vector.broadcast %331 : vector<1x32xf32> to vector<8x32xf32>
    %334 = arith.mulf %332, %333 : vector<8x32xf32>
    %335 = vector.extract_strided_slice %0 {offsets = [0, 1], sizes = [8, 1], strides = [1, 1]} : vector<8x4xf32> to vector<8x1xf32>
    %336 = vector.extract_strided_slice %321 {offsets = [1, 0], sizes = [1, 32], strides = [1, 1]} : vector<4x32xf32> to vector<1x32xf32>
    %337 = vector.broadcast %335 : vector<8x1xf32> to vector<8x32xf32>
    %338 = vector.broadcast %336 : vector<1x32xf32> to vector<8x32xf32>
    %339 = arith.mulf %337, %338 : vector<8x32xf32>
    %340 = arith.addf %334, %339 : vector<8x32xf32>
    %341 = vector.extract_strided_slice %0 {offsets = [0, 2], sizes = [8, 1], strides = [1, 1]} : vector<8x4xf32> to vector<8x1xf32>
    %342 = vector.extract_strided_slice %321 {offsets = [2, 0], sizes = [1, 32], strides = [1, 1]} : vector<4x32xf32> to vector<1x32xf32>
    %343 = vector.broadcast %341 : vector<8x1xf32> to vector<8x32xf32>
    %344 = vector.broadcast %342 : vector<1x32xf32> to vector<8x32xf32>
    %345 = arith.mulf %343, %344 : vector<8x32xf32>
    %346 = arith.addf %340, %345 : vector<8x32xf32>
    %347 = vector.extract_strided_slice %0 {offsets = [0, 3], sizes = [8, 1], strides = [1, 1]} : vector<8x4xf32> to vector<8x1xf32>
    %348 = vector.extract_strided_slice %321 {offsets = [3, 0], sizes = [1, 32], strides = [1, 1]} : vector<4x32xf32> to vector<1x32xf32>
    %349 = vector.broadcast %347 : vector<8x1xf32> to vector<8x32xf32>
    %350 = vector.broadcast %348 : vector<1x32xf32> to vector<8x32xf32>
    %351 = arith.mulf %349, %350 : vector<8x32xf32>
    %352 = arith.addf %346, %351 : vector<8x32xf32>
    %353 = vector.broadcast %323 : vector<1x32xf32> to vector<8x32xf32>
    %354 = arith.addf %352, %353 : vector<8x32xf32>
    %cst_100 = arith.constant 0.000000e+00 : f32
    %355 = vector.broadcast %cst_100 : f32 to vector<8x32xf32>
    %356 = arith.select %202, %354, %355 : vector<8x32xi1>, vector<8x32xf32>
    %cst_101 = arith.constant dense<0.000000e+00> : vector<8x32xf32>
    %357 = tpu.matmul %356, %166, %cst_101 {dimension_numbers = #tpu.dot_dimension_numbers<[1], [0], [0], [1], [0, 0, 1, 1], [], []>} : vector<8x32xf32>, vector<32x32xf32>, vector<8x32xf32> -> vector<8x32xf32>
    %cst_102 = arith.constant dense<0.000000e+00> : vector<8x32xf32>
    %358 = tpu.matmul %204, %315, %cst_102 {dimension_numbers = #tpu.dot_dimension_numbers<[1], [0], [0], [1], [0, 0, 1, 1], [], []>} : vector<8x32xf32>, vector<32x32xf32>, vector<8x32xf32> -> vector<8x32xf32>
    %359 = arith.addf %357, %358 : vector<8x32xf32>
    %360 = vector.broadcast %317 : vector<1x32xf32> to vector<8x32xf32>
    %361 = arith.addf %359, %360 : vector<8x32xf32>
    %cst_103 = arith.constant 0.000000e+00 : f32
    %362 = vector.broadcast %cst_103 : f32 to vector<8x32xf32>
    %363 = arith.select %209, %361, %362 : vector<8x32xi1>, vector<8x32xf32>
    %364 = vector.broadcast %172 : vector<1x32xf32> to vector<8x32xf32>
    %365 = arith.mulf %363, %364 : vector<8x32xf32>
    %366 = vector.broadcast %309 : vector<1x32xf32> to vector<8x32xf32>
    %367 = arith.mulf %211, %366 : vector<8x32xf32>
    %368 = arith.addf %365, %367 : vector<8x32xf32>
    %cst_104 = arith.constant dense<0.000000e+00> : vector<8xf32>
    %369 = vector.multi_reduction <add>, %368, %cst_104 [1] : vector<8x32xf32> to vector<8xf32>
    %370 = vector.shape_cast %369 : vector<8xf32> to vector<8x1xf32>
    %371 = vector.broadcast %305 : vector<1x1xf32> to vector<8x1xf32>
    %372 = arith.addf %370, %371 : vector<8x1xf32>
    %cst_105 = arith.constant 2.500000e-01 : f32
    %373 = vector.broadcast %cst_105 : f32 to vector<8x1xf32>
    %374 = arith.mulf %373, %372 : vector<8x1xf32>
    %cst_106 = arith.constant dense<0.000000e+00> : vector<1xf32>
    %375 = vector.multi_reduction <add>, %374, %cst_106 [0] : vector<8x1xf32> to vector<1xf32>
    %376 = vector.shape_cast %375 : vector<1xf32> to vector<1x1xf32>
    %377 = vector.broadcast %374 : vector<8x1xf32> to vector<8x32xf32>
    %378 = arith.mulf %377, %211 : vector<8x32xf32>
    %379 = vector.broadcast %220 : vector<8x1xf32> to vector<8x32xf32>
    %380 = arith.mulf %379, %363 : vector<8x32xf32>
    %381 = arith.addf %378, %380 : vector<8x32xf32>
    %cst_107 = arith.constant dense<0.000000e+00> : vector<32xf32>
    %382 = vector.multi_reduction <add>, %381, %cst_107 [0] : vector<8x32xf32> to vector<32xf32>
    %383 = vector.shape_cast %382 : vector<32xf32> to vector<1x32xf32>
    %384 = vector.broadcast %374 : vector<8x1xf32> to vector<8x32xf32>
    %385 = vector.broadcast %172 : vector<1x32xf32> to vector<8x32xf32>
    %386 = arith.mulf %384, %385 : vector<8x32xf32>
    %387 = vector.broadcast %220 : vector<8x1xf32> to vector<8x32xf32>
    %388 = vector.broadcast %309 : vector<1x32xf32> to vector<8x32xf32>
    %389 = arith.mulf %387, %388 : vector<8x32xf32>
    %390 = arith.addf %386, %389 : vector<8x32xf32>
    %cst_108 = arith.constant 0.000000e+00 : f32
    %391 = vector.broadcast %cst_108 : f32 to vector<8x32xf32>
    %392 = arith.select %209, %390, %391 : vector<8x32xi1>, vector<8x32xf32>
    %cst_109 = arith.constant dense<0.000000e+00> : vector<32x32xf32>
    %393 = tpu.matmul %204, %392, %cst_109 {dimension_numbers = #tpu.dot_dimension_numbers<[0], [0], [1], [1], [0, 1, 1, 1], [], []>} : vector<8x32xf32>, vector<8x32xf32>, vector<32x32xf32> -> vector<32x32xf32>
    %cst_110 = arith.constant dense<0.000000e+00> : vector<32x32xf32>
    %394 = tpu.matmul %356, %231, %cst_110 {dimension_numbers = #tpu.dot_dimension_numbers<[0], [0], [1], [1], [0, 1, 1, 1], [], []>} : vector<8x32xf32>, vector<8x32xf32>, vector<32x32xf32> -> vector<32x32xf32>
    %395 = arith.addf %393, %394 : vector<32x32xf32>
    %cst_111 = arith.constant dense<0.000000e+00> : vector<32xf32>
    %396 = vector.multi_reduction <add>, %392, %cst_111 [0] : vector<8x32xf32> to vector<32xf32>
    %397 = vector.shape_cast %396 : vector<32xf32> to vector<1x32xf32>
    %cst_112 = arith.constant dense<0.000000e+00> : vector<8x32xf32>
    %398 = tpu.matmul %392, %166, %cst_112 {dimension_numbers = #tpu.dot_dimension_numbers<[1], [1], [0], [0], [0, 0, 1, 0], [], []>} : vector<8x32xf32>, vector<32x32xf32>, vector<8x32xf32> -> vector<8x32xf32>
    %cst_113 = arith.constant dense<0.000000e+00> : vector<8x32xf32>
    %399 = tpu.matmul %231, %315, %cst_113 {dimension_numbers = #tpu.dot_dimension_numbers<[1], [1], [0], [0], [0, 0, 1, 0], [], []>} : vector<8x32xf32>, vector<32x32xf32>, vector<8x32xf32> -> vector<8x32xf32>
    %400 = arith.addf %398, %399 : vector<8x32xf32>
    %cst_114 = arith.constant 0.000000e+00 : f32
    %401 = vector.broadcast %cst_114 : f32 to vector<8x32xf32>
    %402 = arith.select %202, %400, %401 : vector<8x32xi1>, vector<8x32xf32>
    %cst_115 = arith.constant dense<0.000000e+00> : vector<4x32xf32>
    %403 = tpu.matmul %0, %402, %cst_115 {dimension_numbers = #tpu.dot_dimension_numbers<[0], [0], [1], [1], [0, 1, 1, 1], [], []>} : vector<8x4xf32>, vector<8x32xf32>, vector<4x32xf32> -> vector<4x32xf32>
    %cst_116 = arith.constant dense<0.000000e+00> : vector<32xf32>
    %404 = vector.multi_reduction <add>, %402, %cst_116 [0] : vector<8x32xf32> to vector<32xf32>
    %405 = vector.shape_cast %404 : vector<32xf32> to vector<1x32xf32>
    %cst_117 = arith.constant 0.00999999977 : f32
    %406 = vector.broadcast %cst_117 : f32 to vector<4x32xf32>
    %407 = arith.mulf %406, %403 : vector<4x32xf32>
    %408 = arith.subf %321, %407 : vector<4x32xf32>
    %cst_118 = arith.constant 0.00999999977 : f32
    %409 = vector.broadcast %cst_118 : f32 to vector<1x32xf32>
    %410 = arith.mulf %409, %405 : vector<1x32xf32>
    %411 = arith.subf %323, %410 : vector<1x32xf32>
    %cst_119 = arith.constant 0.00999999977 : f32
    %412 = vector.broadcast %cst_119 : f32 to vector<32x32xf32>
    %413 = arith.mulf %412, %395 : vector<32x32xf32>
    %414 = arith.subf %315, %413 : vector<32x32xf32>
    %cst_120 = arith.constant 0.00999999977 : f32
    %415 = vector.broadcast %cst_120 : f32 to vector<1x32xf32>
    %416 = arith.mulf %415, %397 : vector<1x32xf32>
    %417 = arith.subf %317, %416 : vector<1x32xf32>
    %cst_121 = arith.constant 0.00999999977 : f32
    %418 = vector.broadcast %cst_121 : f32 to vector<1x32xf32>
    %419 = arith.mulf %418, %383 : vector<1x32xf32>
    %420 = arith.subf %309, %419 : vector<1x32xf32>
    %cst_122 = arith.constant 0.00999999977 : f32
    %421 = vector.broadcast %cst_122 : f32 to vector<1x1xf32>
    %422 = arith.mulf %421, %376 : vector<1x1xf32>
    %423 = arith.subf %305, %422 : vector<1x1xf32>
    %424 = vector.extract_strided_slice %0 {offsets = [0, 0], sizes = [8, 1], strides = [1, 1]} : vector<8x4xf32> to vector<8x1xf32>
    %425 = vector.extract_strided_slice %408 {offsets = [0, 0], sizes = [1, 32], strides = [1, 1]} : vector<4x32xf32> to vector<1x32xf32>
    %426 = vector.broadcast %424 : vector<8x1xf32> to vector<8x32xf32>
    %427 = vector.broadcast %425 : vector<1x32xf32> to vector<8x32xf32>
    %428 = arith.mulf %426, %427 : vector<8x32xf32>
    %429 = vector.extract_strided_slice %0 {offsets = [0, 1], sizes = [8, 1], strides = [1, 1]} : vector<8x4xf32> to vector<8x1xf32>
    %430 = vector.extract_strided_slice %408 {offsets = [1, 0], sizes = [1, 32], strides = [1, 1]} : vector<4x32xf32> to vector<1x32xf32>
    %431 = vector.broadcast %429 : vector<8x1xf32> to vector<8x32xf32>
    %432 = vector.broadcast %430 : vector<1x32xf32> to vector<8x32xf32>
    %433 = arith.mulf %431, %432 : vector<8x32xf32>
    %434 = arith.addf %428, %433 : vector<8x32xf32>
    %435 = vector.extract_strided_slice %0 {offsets = [0, 2], sizes = [8, 1], strides = [1, 1]} : vector<8x4xf32> to vector<8x1xf32>
    %436 = vector.extract_strided_slice %408 {offsets = [2, 0], sizes = [1, 32], strides = [1, 1]} : vector<4x32xf32> to vector<1x32xf32>
    %437 = vector.broadcast %435 : vector<8x1xf32> to vector<8x32xf32>
    %438 = vector.broadcast %436 : vector<1x32xf32> to vector<8x32xf32>
    %439 = arith.mulf %437, %438 : vector<8x32xf32>
    %440 = arith.addf %434, %439 : vector<8x32xf32>
    %441 = vector.extract_strided_slice %0 {offsets = [0, 3], sizes = [8, 1], strides = [1, 1]} : vector<8x4xf32> to vector<8x1xf32>
    %442 = vector.extract_strided_slice %408 {offsets = [3, 0], sizes = [1, 32], strides = [1, 1]} : vector<4x32xf32> to vector<1x32xf32>
    %443 = vector.broadcast %441 : vector<8x1xf32> to vector<8x32xf32>
    %444 = vector.broadcast %442 : vector<1x32xf32> to vector<8x32xf32>
    %445 = arith.mulf %443, %444 : vector<8x32xf32>
    %446 = arith.addf %440, %445 : vector<8x32xf32>
    %447 = vector.broadcast %411 : vector<1x32xf32> to vector<8x32xf32>
    %448 = arith.addf %446, %447 : vector<8x32xf32>
    %cst_123 = arith.constant 0.000000e+00 : f32
    %449 = vector.broadcast %cst_123 : f32 to vector<8x32xf32>
    %450 = arith.select %119, %448, %449 : vector<8x32xi1>, vector<8x32xf32>
    %cst_124 = arith.constant dense<0.000000e+00> : vector<8x32xf32>
    %451 = tpu.matmul %450, %83, %cst_124 {dimension_numbers = #tpu.dot_dimension_numbers<[1], [0], [0], [1], [0, 0, 1, 1], [], []>} : vector<8x32xf32>, vector<32x32xf32>, vector<8x32xf32> -> vector<8x32xf32>
    %cst_125 = arith.constant dense<0.000000e+00> : vector<8x32xf32>
    %452 = tpu.matmul %121, %414, %cst_125 {dimension_numbers = #tpu.dot_dimension_numbers<[1], [0], [0], [1], [0, 0, 1, 1], [], []>} : vector<8x32xf32>, vector<32x32xf32>, vector<8x32xf32> -> vector<8x32xf32>
    %453 = arith.addf %451, %452 : vector<8x32xf32>
    %454 = vector.broadcast %417 : vector<1x32xf32> to vector<8x32xf32>
    %455 = arith.addf %453, %454 : vector<8x32xf32>
    %cst_126 = arith.constant 0.000000e+00 : f32
    %456 = vector.broadcast %cst_126 : f32 to vector<8x32xf32>
    %457 = arith.select %126, %455, %456 : vector<8x32xi1>, vector<8x32xf32>
    %458 = vector.broadcast %89 : vector<1x32xf32> to vector<8x32xf32>
    %459 = arith.mulf %457, %458 : vector<8x32xf32>
    %460 = vector.broadcast %420 : vector<1x32xf32> to vector<8x32xf32>
    %461 = arith.mulf %128, %460 : vector<8x32xf32>
    %462 = arith.addf %459, %461 : vector<8x32xf32>
    %cst_127 = arith.constant dense<0.000000e+00> : vector<8xf32>
    %463 = vector.multi_reduction <add>, %462, %cst_127 [1] : vector<8x32xf32> to vector<8xf32>
    %464 = vector.shape_cast %463 : vector<8xf32> to vector<8x1xf32>
    %465 = vector.broadcast %423 : vector<1x1xf32> to vector<8x1xf32>
    %466 = arith.addf %464, %465 : vector<8x1xf32>
    %cst_128 = arith.constant 2.500000e-01 : f32
    %467 = vector.broadcast %cst_128 : f32 to vector<8x1xf32>
    %468 = arith.mulf %467, %466 : vector<8x1xf32>
    %cst_129 = arith.constant dense<0.000000e+00> : vector<1xf32>
    %469 = vector.multi_reduction <add>, %468, %cst_129 [0] : vector<8x1xf32> to vector<1xf32>
    %470 = vector.shape_cast %469 : vector<1xf32> to vector<1x1xf32>
    %471 = vector.broadcast %468 : vector<8x1xf32> to vector<8x32xf32>
    %472 = arith.mulf %471, %128 : vector<8x32xf32>
    %473 = vector.broadcast %137 : vector<8x1xf32> to vector<8x32xf32>
    %474 = arith.mulf %473, %457 : vector<8x32xf32>
    %475 = arith.addf %472, %474 : vector<8x32xf32>
    %cst_130 = arith.constant dense<0.000000e+00> : vector<32xf32>
    %476 = vector.multi_reduction <add>, %475, %cst_130 [0] : vector<8x32xf32> to vector<32xf32>
    %477 = vector.shape_cast %476 : vector<32xf32> to vector<1x32xf32>
    %478 = vector.broadcast %468 : vector<8x1xf32> to vector<8x32xf32>
    %479 = vector.broadcast %89 : vector<1x32xf32> to vector<8x32xf32>
    %480 = arith.mulf %478, %479 : vector<8x32xf32>
    %481 = vector.broadcast %137 : vector<8x1xf32> to vector<8x32xf32>
    %482 = vector.broadcast %420 : vector<1x32xf32> to vector<8x32xf32>
    %483 = arith.mulf %481, %482 : vector<8x32xf32>
    %484 = arith.addf %480, %483 : vector<8x32xf32>
    %cst_131 = arith.constant 0.000000e+00 : f32
    %485 = vector.broadcast %cst_131 : f32 to vector<8x32xf32>
    %486 = arith.select %126, %484, %485 : vector<8x32xi1>, vector<8x32xf32>
    %cst_132 = arith.constant dense<0.000000e+00> : vector<32x32xf32>
    %487 = tpu.matmul %121, %486, %cst_132 {dimension_numbers = #tpu.dot_dimension_numbers<[0], [0], [1], [1], [0, 1, 1, 1], [], []>} : vector<8x32xf32>, vector<8x32xf32>, vector<32x32xf32> -> vector<32x32xf32>
    %cst_133 = arith.constant dense<0.000000e+00> : vector<32x32xf32>
    %488 = tpu.matmul %450, %148, %cst_133 {dimension_numbers = #tpu.dot_dimension_numbers<[0], [0], [1], [1], [0, 1, 1, 1], [], []>} : vector<8x32xf32>, vector<8x32xf32>, vector<32x32xf32> -> vector<32x32xf32>
    %489 = arith.addf %487, %488 : vector<32x32xf32>
    %cst_134 = arith.constant dense<0.000000e+00> : vector<32xf32>
    %490 = vector.multi_reduction <add>, %486, %cst_134 [0] : vector<8x32xf32> to vector<32xf32>
    %491 = vector.shape_cast %490 : vector<32xf32> to vector<1x32xf32>
    %cst_135 = arith.constant dense<0.000000e+00> : vector<8x32xf32>
    %492 = tpu.matmul %486, %83, %cst_135 {dimension_numbers = #tpu.dot_dimension_numbers<[1], [1], [0], [0], [0, 0, 1, 0], [], []>} : vector<8x32xf32>, vector<32x32xf32>, vector<8x32xf32> -> vector<8x32xf32>
    %cst_136 = arith.constant dense<0.000000e+00> : vector<8x32xf32>
    %493 = tpu.matmul %148, %414, %cst_136 {dimension_numbers = #tpu.dot_dimension_numbers<[1], [1], [0], [0], [0, 0, 1, 0], [], []>} : vector<8x32xf32>, vector<32x32xf32>, vector<8x32xf32> -> vector<8x32xf32>
    %494 = arith.addf %492, %493 : vector<8x32xf32>
    %cst_137 = arith.constant 0.000000e+00 : f32
    %495 = vector.broadcast %cst_137 : f32 to vector<8x32xf32>
    %496 = arith.select %119, %494, %495 : vector<8x32xi1>, vector<8x32xf32>
    %cst_138 = arith.constant dense<0.000000e+00> : vector<4x32xf32>
    %497 = tpu.matmul %0, %496, %cst_138 {dimension_numbers = #tpu.dot_dimension_numbers<[0], [0], [1], [1], [0, 1, 1, 1], [], []>} : vector<8x4xf32>, vector<8x32xf32>, vector<4x32xf32> -> vector<4x32xf32>
    %cst_139 = arith.constant dense<0.000000e+00> : vector<32xf32>
    %498 = vector.multi_reduction <add>, %496, %cst_139 [0] : vector<8x32xf32> to vector<32xf32>
    %499 = vector.shape_cast %498 : vector<32xf32> to vector<1x32xf32>
    %cst_140 = arith.constant 0.00999999977 : f32
    %500 = vector.broadcast %cst_140 : f32 to vector<4x32xf32>
    %501 = arith.mulf %500, %497 : vector<4x32xf32>
    %502 = arith.subf %408, %501 : vector<4x32xf32>
    %cst_141 = arith.constant 0.00999999977 : f32
    %503 = vector.broadcast %cst_141 : f32 to vector<1x32xf32>
    %504 = arith.mulf %503, %499 : vector<1x32xf32>
    %505 = arith.subf %411, %504 : vector<1x32xf32>
    %cst_142 = arith.constant 0.00999999977 : f32
    %506 = vector.broadcast %cst_142 : f32 to vector<32x32xf32>
    %507 = arith.mulf %506, %489 : vector<32x32xf32>
    %508 = arith.subf %414, %507 : vector<32x32xf32>
    %cst_143 = arith.constant 0.00999999977 : f32
    %509 = vector.broadcast %cst_143 : f32 to vector<1x32xf32>
    %510 = arith.mulf %509, %491 : vector<1x32xf32>
    %511 = arith.subf %417, %510 : vector<1x32xf32>
    %cst_144 = arith.constant 0.00999999977 : f32
    %512 = vector.broadcast %cst_144 : f32 to vector<1x32xf32>
    %513 = arith.mulf %512, %477 : vector<1x32xf32>
    %514 = arith.subf %420, %513 : vector<1x32xf32>
    %cst_145 = arith.constant 0.00999999977 : f32
    %515 = vector.broadcast %cst_145 : f32 to vector<1x1xf32>
    %516 = arith.mulf %515, %470 : vector<1x1xf32>
    %517 = arith.subf %423, %516 : vector<1x1xf32>
    %518 = vector.extract_strided_slice %0 {offsets = [0, 0], sizes = [8, 1], strides = [1, 1]} : vector<8x4xf32> to vector<8x1xf32>
    %519 = vector.extract_strided_slice %502 {offsets = [0, 0], sizes = [1, 32], strides = [1, 1]} : vector<4x32xf32> to vector<1x32xf32>
    %520 = vector.broadcast %518 : vector<8x1xf32> to vector<8x32xf32>
    %521 = vector.broadcast %519 : vector<1x32xf32> to vector<8x32xf32>
    %522 = arith.mulf %520, %521 : vector<8x32xf32>
    %523 = vector.extract_strided_slice %0 {offsets = [0, 1], sizes = [8, 1], strides = [1, 1]} : vector<8x4xf32> to vector<8x1xf32>
    %524 = vector.extract_strided_slice %502 {offsets = [1, 0], sizes = [1, 32], strides = [1, 1]} : vector<4x32xf32> to vector<1x32xf32>
    %525 = vector.broadcast %523 : vector<8x1xf32> to vector<8x32xf32>
    %526 = vector.broadcast %524 : vector<1x32xf32> to vector<8x32xf32>
    %527 = arith.mulf %525, %526 : vector<8x32xf32>
    %528 = arith.addf %522, %527 : vector<8x32xf32>
    %529 = vector.extract_strided_slice %0 {offsets = [0, 2], sizes = [8, 1], strides = [1, 1]} : vector<8x4xf32> to vector<8x1xf32>
    %530 = vector.extract_strided_slice %502 {offsets = [2, 0], sizes = [1, 32], strides = [1, 1]} : vector<4x32xf32> to vector<1x32xf32>
    %531 = vector.broadcast %529 : vector<8x1xf32> to vector<8x32xf32>
    %532 = vector.broadcast %530 : vector<1x32xf32> to vector<8x32xf32>
    %533 = arith.mulf %531, %532 : vector<8x32xf32>
    %534 = arith.addf %528, %533 : vector<8x32xf32>
    %535 = vector.extract_strided_slice %0 {offsets = [0, 3], sizes = [8, 1], strides = [1, 1]} : vector<8x4xf32> to vector<8x1xf32>
    %536 = vector.extract_strided_slice %502 {offsets = [3, 0], sizes = [1, 32], strides = [1, 1]} : vector<4x32xf32> to vector<1x32xf32>
    %537 = vector.broadcast %535 : vector<8x1xf32> to vector<8x32xf32>
    %538 = vector.broadcast %536 : vector<1x32xf32> to vector<8x32xf32>
    %539 = arith.mulf %537, %538 : vector<8x32xf32>
    %540 = arith.addf %534, %539 : vector<8x32xf32>
    %541 = vector.broadcast %505 : vector<1x32xf32> to vector<8x32xf32>
    %542 = arith.addf %540, %541 : vector<8x32xf32>
    %cst_146 = arith.constant 0.000000e+00 : f32
    %543 = vector.broadcast %cst_146 : f32 to vector<8x32xf32>
    %544 = arith.select %36, %542, %543 : vector<8x32xi1>, vector<8x32xf32>
    %cst_147 = arith.constant dense<0.000000e+00> : vector<8x32xf32>
    %545 = tpu.matmul %544, %5, %cst_147 {dimension_numbers = #tpu.dot_dimension_numbers<[1], [0], [0], [1], [0, 0, 1, 1], [], []>} : vector<8x32xf32>, vector<32x32xf32>, vector<8x32xf32> -> vector<8x32xf32>
    %cst_148 = arith.constant dense<0.000000e+00> : vector<8x32xf32>
    %546 = tpu.matmul %38, %508, %cst_148 {dimension_numbers = #tpu.dot_dimension_numbers<[1], [0], [0], [1], [0, 0, 1, 1], [], []>} : vector<8x32xf32>, vector<32x32xf32>, vector<8x32xf32> -> vector<8x32xf32>
    %547 = arith.addf %545, %546 : vector<8x32xf32>
    %548 = vector.broadcast %511 : vector<1x32xf32> to vector<8x32xf32>
    %549 = arith.addf %547, %548 : vector<8x32xf32>
    %cst_149 = arith.constant 0.000000e+00 : f32
    %550 = vector.broadcast %cst_149 : f32 to vector<8x32xf32>
    %551 = arith.select %43, %549, %550 : vector<8x32xi1>, vector<8x32xf32>
    %552 = vector.broadcast %8 : vector<1x32xf32> to vector<8x32xf32>
    %553 = arith.mulf %551, %552 : vector<8x32xf32>
    %554 = vector.broadcast %514 : vector<1x32xf32> to vector<8x32xf32>
    %555 = arith.mulf %45, %554 : vector<8x32xf32>
    %556 = arith.addf %553, %555 : vector<8x32xf32>
    %cst_150 = arith.constant dense<0.000000e+00> : vector<8xf32>
    %557 = vector.multi_reduction <add>, %556, %cst_150 [1] : vector<8x32xf32> to vector<8xf32>
    %558 = vector.shape_cast %557 : vector<8xf32> to vector<8x1xf32>
    %559 = vector.broadcast %517 : vector<1x1xf32> to vector<8x1xf32>
    %560 = arith.addf %558, %559 : vector<8x1xf32>
    %cst_151 = arith.constant 2.500000e-01 : f32
    %561 = vector.broadcast %cst_151 : f32 to vector<8x1xf32>
    %562 = arith.mulf %561, %560 : vector<8x1xf32>
    %cst_152 = arith.constant dense<0.000000e+00> : vector<1xf32>
    %563 = vector.multi_reduction <add>, %562, %cst_152 [0] : vector<8x1xf32> to vector<1xf32>
    %564 = vector.shape_cast %563 : vector<1xf32> to vector<1x1xf32>
    %565 = vector.broadcast %562 : vector<8x1xf32> to vector<8x32xf32>
    %566 = arith.mulf %565, %45 : vector<8x32xf32>
    %567 = vector.broadcast %54 : vector<8x1xf32> to vector<8x32xf32>
    %568 = arith.mulf %567, %551 : vector<8x32xf32>
    %569 = arith.addf %566, %568 : vector<8x32xf32>
    %cst_153 = arith.constant dense<0.000000e+00> : vector<32xf32>
    %570 = vector.multi_reduction <add>, %569, %cst_153 [0] : vector<8x32xf32> to vector<32xf32>
    %571 = vector.shape_cast %570 : vector<32xf32> to vector<1x32xf32>
    %572 = vector.broadcast %562 : vector<8x1xf32> to vector<8x32xf32>
    %573 = vector.broadcast %8 : vector<1x32xf32> to vector<8x32xf32>
    %574 = arith.mulf %572, %573 : vector<8x32xf32>
    %575 = vector.broadcast %54 : vector<8x1xf32> to vector<8x32xf32>
    %576 = vector.broadcast %514 : vector<1x32xf32> to vector<8x32xf32>
    %577 = arith.mulf %575, %576 : vector<8x32xf32>
    %578 = arith.addf %574, %577 : vector<8x32xf32>
    %cst_154 = arith.constant 0.000000e+00 : f32
    %579 = vector.broadcast %cst_154 : f32 to vector<8x32xf32>
    %580 = arith.select %43, %578, %579 : vector<8x32xi1>, vector<8x32xf32>
    %cst_155 = arith.constant dense<0.000000e+00> : vector<32x32xf32>
    %581 = tpu.matmul %38, %580, %cst_155 {dimension_numbers = #tpu.dot_dimension_numbers<[0], [0], [1], [1], [0, 1, 1, 1], [], []>} : vector<8x32xf32>, vector<8x32xf32>, vector<32x32xf32> -> vector<32x32xf32>
    %cst_156 = arith.constant dense<0.000000e+00> : vector<32x32xf32>
    %582 = tpu.matmul %544, %65, %cst_156 {dimension_numbers = #tpu.dot_dimension_numbers<[0], [0], [1], [1], [0, 1, 1, 1], [], []>} : vector<8x32xf32>, vector<8x32xf32>, vector<32x32xf32> -> vector<32x32xf32>
    %583 = arith.addf %581, %582 : vector<32x32xf32>
    %cst_157 = arith.constant dense<0.000000e+00> : vector<32xf32>
    %584 = vector.multi_reduction <add>, %580, %cst_157 [0] : vector<8x32xf32> to vector<32xf32>
    %585 = vector.shape_cast %584 : vector<32xf32> to vector<1x32xf32>
    %cst_158 = arith.constant dense<0.000000e+00> : vector<8x32xf32>
    %586 = tpu.matmul %580, %5, %cst_158 {dimension_numbers = #tpu.dot_dimension_numbers<[1], [1], [0], [0], [0, 0, 1, 0], [], []>} : vector<8x32xf32>, vector<32x32xf32>, vector<8x32xf32> -> vector<8x32xf32>
    %cst_159 = arith.constant dense<0.000000e+00> : vector<8x32xf32>
    %587 = tpu.matmul %65, %508, %cst_159 {dimension_numbers = #tpu.dot_dimension_numbers<[1], [1], [0], [0], [0, 0, 1, 0], [], []>} : vector<8x32xf32>, vector<32x32xf32>, vector<8x32xf32> -> vector<8x32xf32>
    %588 = arith.addf %586, %587 : vector<8x32xf32>
    %cst_160 = arith.constant 0.000000e+00 : f32
    %589 = vector.broadcast %cst_160 : f32 to vector<8x32xf32>
    %590 = arith.select %36, %588, %589 : vector<8x32xi1>, vector<8x32xf32>
    %cst_161 = arith.constant dense<0.000000e+00> : vector<4x32xf32>
    %591 = tpu.matmul %0, %590, %cst_161 {dimension_numbers = #tpu.dot_dimension_numbers<[0], [0], [1], [1], [0, 1, 1, 1], [], []>} : vector<8x4xf32>, vector<8x32xf32>, vector<4x32xf32> -> vector<4x32xf32>
    %cst_162 = arith.constant dense<0.000000e+00> : vector<32xf32>
    %592 = vector.multi_reduction <add>, %590, %cst_162 [0] : vector<8x32xf32> to vector<32xf32>
    %593 = vector.shape_cast %592 : vector<32xf32> to vector<1x32xf32>
    %cst_163 = arith.constant 0.00999999977 : f32
    %594 = vector.broadcast %cst_163 : f32 to vector<4x32xf32>
    %595 = arith.mulf %594, %591 : vector<4x32xf32>
    %596 = arith.subf %502, %595 : vector<4x32xf32>
    %cst_164 = arith.constant 0.00999999977 : f32
    %597 = vector.broadcast %cst_164 : f32 to vector<1x32xf32>
    %598 = arith.mulf %597, %593 : vector<1x32xf32>
    %599 = arith.subf %505, %598 : vector<1x32xf32>
    %cst_165 = arith.constant 0.00999999977 : f32
    %600 = vector.broadcast %cst_165 : f32 to vector<32x32xf32>
    %601 = arith.mulf %600, %583 : vector<32x32xf32>
    %602 = arith.subf %508, %601 : vector<32x32xf32>
    %cst_166 = arith.constant 0.00999999977 : f32
    %603 = vector.broadcast %cst_166 : f32 to vector<1x32xf32>
    %604 = arith.mulf %603, %585 : vector<1x32xf32>
    %605 = arith.subf %511, %604 : vector<1x32xf32>
    %cst_167 = arith.constant 0.00999999977 : f32
    %606 = vector.broadcast %cst_167 : f32 to vector<1x32xf32>
    %607 = arith.mulf %606, %571 : vector<1x32xf32>
    %608 = arith.subf %514, %607 : vector<1x32xf32>
    %cst_168 = arith.constant 0.00999999977 : f32
    %609 = vector.broadcast %cst_168 : f32 to vector<1x1xf32>
    %610 = arith.mulf %609, %564 : vector<1x1xf32>
    %611 = arith.subf %517, %610 : vector<1x1xf32>
    %cst_169 = arith.constant 2.500000e-01 : f32
    %612 = vector.broadcast %cst_169 : f32 to vector<4x32xf32>
    %613 = arith.mulf %596, %612 : vector<4x32xf32>
    %c0_170 = arith.constant 0 : index
    %c0_171 = arith.constant 0 : index
    %614 = vector.load %arg5[%c0_170, %c0_171] : memref<4x32xf32, #tpu.memory_space<vmem>>, vector<4x32xf32>
    tpu.vector_store %arg5[%c0_170, %c0_171], %613 {strides = array<i32>} : memref<4x32xf32, #tpu.memory_space<vmem>>, vector<4x32xf32>,
    %cst_172 = arith.constant 2.500000e-01 : f32
    %615 = vector.broadcast %cst_172 : f32 to vector<32x32xf32>
    %616 = arith.mulf %602, %615 : vector<32x32xf32>
    %c0_173 = arith.constant 0 : index
    %c0_174 = arith.constant 0 : index
    %617 = vector.load %arg6[%c0_173, %c0_174] : memref<32x32xf32, #tpu.memory_space<vmem>>, vector<32x32xf32>
    tpu.vector_store %arg6[%c0_173, %c0_174], %616 {strides = array<i32>} : memref<32x32xf32, #tpu.memory_space<vmem>>, vector<32x32xf32>,
    %cst_175 = arith.constant 2.500000e-01 : f32
    %618 = vector.broadcast %cst_175 : f32 to vector<1x32xf32>
    %619 = arith.mulf %599, %618 : vector<1x32xf32>
    %c0_176 = arith.constant 0 : index
    %c0_177 = arith.constant 0 : index
    %620 = vector.load %arg7[%c0_176, %c0_177] : memref<4x32xf32, #tpu.memory_space<vmem>>, vector<1x32xf32>
    tpu.vector_store %arg7[%c0_176, %c0_177], %619 {strides = array<i32>} : memref<4x32xf32, #tpu.memory_space<vmem>>, vector<1x32xf32>,
    %cst_178 = arith.constant 2.500000e-01 : f32
    %621 = vector.broadcast %cst_178 : f32 to vector<1x32xf32>
    %622 = arith.mulf %605, %621 : vector<1x32xf32>
    %c1_179 = arith.constant 1 : index
    %c0_180 = arith.constant 0 : index
    %623 = vector.load %arg7[%c1_179, %c0_180] : memref<4x32xf32, #tpu.memory_space<vmem>>, vector<1x32xf32>
    tpu.vector_store %arg7[%c1_179, %c0_180], %622 {strides = array<i32>} : memref<4x32xf32, #tpu.memory_space<vmem>>, vector<1x32xf32>,
    %cst_181 = arith.constant 2.500000e-01 : f32
    %624 = vector.broadcast %cst_181 : f32 to vector<1x32xf32>
    %625 = arith.mulf %608, %624 : vector<1x32xf32>
    %c2_182 = arith.constant 2 : index
    %c0_183 = arith.constant 0 : index
    %626 = vector.load %arg7[%c2_182, %c0_183] : memref<4x32xf32, #tpu.memory_space<vmem>>, vector<1x32xf32>
    tpu.vector_store %arg7[%c2_182, %c0_183], %625 {strides = array<i32>} : memref<4x32xf32, #tpu.memory_space<vmem>>, vector<1x32xf32>,
    %cst_184 = arith.constant 2.500000e-01 : f32
    %627 = vector.broadcast %cst_184 : f32 to vector<1x1xf32>
    %628 = arith.mulf %611, %627 : vector<1x1xf32>
    %cst_185 = arith.constant 0.000000e+00 : f32
    %629 = vector.broadcast %cst_185 : f32 to vector<1x32xf32>
    %630 = vector.broadcast %628 : vector<1x1xf32> to vector<1x32xf32>
    %631 = arith.addf %630, %629 : vector<1x32xf32>
    %c3_186 = arith.constant 3 : index
    %c0_187 = arith.constant 0 : index
    %632 = vector.load %arg7[%c3_186, %c0_187] : memref<4x32xf32, #tpu.memory_space<vmem>>, vector<1x32xf32>
    tpu.vector_store %arg7[%c3_186, %c0_187], %631 {strides = array<i32>} : memref<4x32xf32, #tpu.memory_space<vmem>>, vector<1x32xf32>,
    return
  }
}

</mosaic_0001>

<llo_original>
// kernel: inner_loop_forward.1
$region0: #{inner_loop_forward.1}
  #allocation0 [shape = 'u32[]', space=smem, size = 0x4, offset = 0x4, fixed_abs, tag = 'smem constant byte address 0x4 - core index']
  #allocation1 [shape = 'u32[144,128]{1,0:T(1,128)}', space=vmem, size = 0x12000, scoped, tag = 'internal scratch']
  %s0 = inlined_call_operand.vmem [shape: f32[16,4], index: 0, kind: input, shape index: {}]
  %s1 = inlined_call_operand.vmem [shape: f32[16,1], index: 1, kind: input, shape index: {}]
  %s2 = inlined_call_operand.vmem [shape: f32[4,32], index: 2, kind: input, shape index: {}]
  %s3 = inlined_call_operand.vmem [shape: f32[32,32], index: 3, kind: input, shape index: {}]
  %s4 = inlined_call_operand.vmem [shape: f32[4,32], index: 4, kind: input, shape index: {}]
  %s5 = inlined_call_operand.hbm [shape: f32[4,32], index: 5, kind: output, shape index: {0}]
  %s6 = inlined_call_operand.vmem [shape: f32[32,32], index: 6, kind: output, shape index: {1}]
  %s7 = inlined_call_operand.vmem [shape: f32[4,32], index: 7, kind: output, shape index: {2}]
  %s8 = inlined_call_operand.hbm [shape: f32[1,1], index: 8, kind: output, shape index: {3}]
  %9 = xla_tuple %s5, %s6, %s7, %s8
  %s10 = sld [smem:[#allocation0]]
  $region54: #{inner_loop_forward.1} parent=0
    _
  %s12 = ssub.s32 1, %s10
  %s13 = scalar_select 0, %s12, %s10
  $region1: #{inner_loop_forward.1} parent=0
    #allocation2 [shape = 'u8[2048]{0}', space=vmem, size = 0x800, scoped, tag = 'output window, operand 0, single buffered']
    #allocation3 [shape = 's32[1]{0}', space=sflag, size = 0x4, scoped, tag = 'scoped memory for inner_loop_forward.1']
    #allocation4 [shape = 'u8[512]{0}', space=vmem, size = 0x400, scoped, tag = 'output window, operand 3, single buffered']
    #allocation5 [shape = 's32[1]{0}', space=sflag, size = 0x4, scoped, tag = 'scoped memory for inner_loop_forward.1']
    %14 = vsyncpa [#allocation3], 0
    %15 = vsyncpa [#allocation5], 0
    // Predicated region
    $region2: #{inner_loop_forward.1} parent=1 // pred_check
      _
    $region3: #{inner_loop_forward.1} parent=1 // pred_check_branch
      %17 = sbr.rel (0) target = $region5
    $region4: #{inner_loop_forward.1} parent=1 // pred_region
      _
    $region5: #{inner_loop_forward.1} parent=1 // pred_fallthru
      _
    // Predicated region
    $region6: #{inner_loop_forward.1} parent=1 // pred_check
      _
    $region7: #{inner_loop_forward.1} parent=1 // pred_check_branch
      %19 = sbr.rel (0) target = $region9
    $region8: #{inner_loop_forward.1} parent=1 // pred_region
      _
    $region9: #{inner_loop_forward.1} parent=1 // pred_fallthru
      _
    // Predicated region
    $region10: #{inner_loop_forward.1} parent=1 // pred_check
      _
    $region11: #{inner_loop_forward.1} parent=1 // pred_check_branch
      %21 = sbr.rel (0) target = $region13
    $region12: #{inner_loop_forward.1} parent=1 // pred_region
      _
    $region13: #{inner_loop_forward.1} parent=1 // pred_fallthru
      _
    // Predicated region
    $region14: #{inner_loop_forward.1} parent=1 // pred_check
      _
    $region15: #{inner_loop_forward.1} parent=1 // pred_check_branch
      %23 = sbr.rel (0) target = $region17
    $region16: #{inner_loop_forward.1} parent=1 // pred_region
      _
    $region17: #{inner_loop_forward.1} parent=1 // pred_fallthru
      _
    // Predicated region
    $region18: #{inner_loop_forward.1} parent=1 // pred_check
      _
    $region19: #{inner_loop_forward.1} parent=1 // pred_check_branch
      %25 = sbr.rel (0) target = $region21
    $region20: #{inner_loop_forward.1} parent=1 // pred_region
      _
    $region21: #{inner_loop_forward.1} parent=1 // pred_fallthru
      _
    %v26 = vld [vmem:[%s0] sm:$0xff]
    %v27 = vld [vmem:[%s0 + $0x8] sm:$0xff]
    %v28 = vld [vmem:[%s1] sm:$0xff]
    %v29 = vld [vmem:[%s1 + $0x8] sm:$0xff]
    %v30 = vld [vmem:[%s2] sm:$0xf]
    %v31 = vld [vmem:[%s3] sm:$0xff]
    %v32 = vld [vmem:[%s3 + $0x8] sm:$0xff]
    %v33 = vld [vmem:[%s3 + $0x10] sm:$0xff]
    %v34 = vld [vmem:[%s3 + $0x18] sm:$0xff]
    %v35 = vld [vmem:[%s4] sm:$0x1]
    %v36 = vld [vmem:[%s4 + $0x1] sm:$0x1]
    %v37 = vld [vmem:[%s4 + $0x2] sm:$0x1]
    %v38 = vld [vmem:[%s4 + $0x3] sm:$0x1]
    %40 = vset.pattern.permute.xlu0 0
    %41 = vperm.xlu0 %40, %v26
    %v42 = vpop.permute.xlu0 %41
    %v44 = vlaneseq
    %v45 = vshrl.u32 %v44, 7
    %v46 = vsub.s32 0, %v45
    %v47 = vrot.slane %v30, %v46
    %v48 = vmul.f32 %v42, %v47
    %49 = vset.pattern.permute.xlu0 1
    %50 = vperm.xlu0 %49, %v26
    %v51 = vpop.permute.xlu0 %50
    %v53 = vlaneseq
    %v54 = vshrl.u32 %v53, 7
    %v55 = vsub.s32 1, %v54
    %v56 = vrot.slane %v30, %v55
    %v57 = vmul.f32 %v51, %v56
    %v58 = vadd.f32 %v48, %v57
    %59 = vset.pattern.permute.xlu0 2
    %60 = vperm.xlu0 %59, %v26
    %v61 = vpop.permute.xlu0 %60
    %v63 = vlaneseq
    %v64 = vshrl.u32 %v63, 7
    %v65 = vsub.s32 2, %v64
    %v66 = vrot.slane %v30, %v65
    %v67 = vmul.f32 %v61, %v66
    %v68 = vadd.f32 %v58, %v67
    %69 = vset.pattern.permute.xlu0 3
    %70 = vperm.xlu0 %69, %v26
    %v71 = vpop.permute.xlu0 %70
    %v73 = vlaneseq
    %v74 = vshrl.u32 %v73, 7
    %v75 = vsub.s32 3, %v74
    %v76 = vrot.slane %v30, %v75
    %v77 = vmul.f32 %v71, %v76
    %v78 = vadd.f32 %v68, %v77
    %v79 = vlaneseq
    %v80 = vshrl.u32 %v79, 7
    %v81 = vsub.s32 0, %v80
    %v82 = vrot.slane %v35, %v81
    %v83 = vadd.f32 %v78, %v82
    %vm84 = vcmp.gt.f32.partialorder %v83, 0.0
    %v85 = vsel %vm84, %v83, 0.0
    %v86 = vlaneseq
    %v87 = vshrl.u32 %v86, 7
    %v88 = vsub.s32 0, %v87
    %v89 = vrot.slane %v36, %v88
    %vm90 = vcmask 261120
    %v92 = vsel %vm90, %v85, 0
    %94 = vmatprep.subr.mxu0 0.0
    %95 = vmatpush1.msra.mxu0 0.0
    %96 = vmatprep.subr.mxu0 0.0
    %97 = vmatpush1.msra.mxu0 0.0
    %98 = vmatprep.subr.mxu0 0.0
    %99 = vmatpush1.msra.mxu0 0.0
    %100 = vmatprep.subr.mxu0 0.0
    %101 = vmatpush1.msra.mxu0 0.0
    %102 = vmatprep.subr.mxu0 0.0
    %103 = vmatpush1.msra.mxu0 0.0
    %104 = vmatprep.subr.mxu0 0.0
    %105 = vmatpush1.msra.mxu0 0.0
    %106 = vmatprep.subr.mxu0 0.0
    %107 = vmatpush1.msra.mxu0 0.0
    %108 = vmatprep.subr.mxu0 0.0
    %109 = vmatpush1.msra.mxu0 0.0
    %110 = vmatprep.subr.mxu0 0.0
    %111 = vmatpush1.msra.mxu0 0.0
    %112 = vmatprep.subr.mxu0 0.0
    %113 = vmatpush1.msra.mxu0 0.0
    %114 = vmatprep.subr.mxu0 0.0
    %115 = vmatpush1.msra.mxu0 0.0
    %116 = vmatprep.subr.mxu0 0.0
    %117 = vmatpush1.msra.mxu0 0.0
    %118 = vmatprep.subr.mxu0 0.0
    %119 = vmatpush1.msra.mxu0 %v34
    %120 = vmatprep.subr.mxu0 0.0
    %121 = vmatpush1.msra.mxu0 %v33
    %122 = vmatprep.subr.mxu0 0.0
    %123 = vmatpush1.msra.mxu0 %v32
    %124 = vmatprep.subr.mxu0 0.0
    %125 = vmatpush1.msra.mxu0 %v31
    %126 = vmatprep.subr.mxu0 0.0
    %127 = vmatpush2.msra.mxu0 0.0
    %128 = vmatprep.subr.mxu0 0.0
    %129 = vmatpush2.msra.mxu0 0.0
    %130 = vmatprep.subr.mxu0 0.0
    %131 = vmatpush2.msra.mxu0 0.0
    %132 = vmatprep.subr.mxu0 0.0
    %133 = vmatpush2.msra.mxu0 0.0
    %134 = vmatprep.subr.mxu0 0.0
    %135 = vmatpush2.msra.mxu0 0.0
    %136 = vmatprep.subr.mxu0 0.0
    %137 = vmatpush2.msra.mxu0 0.0
    %138 = vmatprep.subr.mxu0 0.0
    %139 = vmatpush2.msra.mxu0 0.0
    %140 = vmatprep.subr.mxu0 0.0
    %141 = vmatpush2.msra.mxu0 0.0
    %142 = vmatprep.subr.mxu0 0.0
    %143 = vmatpush2.msra.mxu0 0.0
    %144 = vmatprep.subr.mxu0 0.0
    %145 = vmatpush2.msra.mxu0 0.0
    %146 = vmatprep.subr.mxu0 0.0
    %147 = vmatpush2.msra.mxu0 0.0
    %148 = vmatprep.subr.mxu0 0.0
    %149 = vmatpush2.msra.mxu0 0.0
    %150 = vmatprep.subr.mxu0 0.0
    %151 = vmatpush2.msra.mxu0 0.0
    %152 = vmatprep.subr.mxu0 0.0
    %153 = vmatpush2.msra.mxu0 0.0
    %154 = vmatprep.subr.mxu0 0.0
    %155 = vmatpush2.msra.mxu0 0.0
    %156 = vmatprep.subr.mxu0 0.0
    %157 = vmatpush2.msra.mxu0 0.0
    %158 = vmatprep.mubr.f32.mxu0 0.0
    %159 = vmatmul.mubr.f32.gmra.mxu0 %v92
    %v160 = vpop.f32.mrf.mxu0
    %v161 = vadd.f32 %v89, %v160
    %v162 = vpop.f32.mrf.mxu0
    %163 = vdwg.mxu0
    %vm164 = vcmp.gt.f32.partialorder %v161, 0.0
    %v165 = vsel %vm164, %v161, 0.0
    %v166 = vlaneseq
    %v167 = vshrl.u32 %v166, 7
    %v168 = vsub.s32 0, %v167
    %v169 = vrot.slane %v37, %v168
    %v170 = vmul.f32 %v165, %v169
    %v171 = vsel %vm90, %v170, 0.0
    %172 = vadd.xlane.f32.xlu0 %v171
    %v173 = vpop.xlane.xlu0 %172
    %v174 = vlaneseq
    %v175 = vshrl.u32 %v174, 7
    %v176 = vsub.s32 0, %v175
    %v177 = vrot.slane %v38, %v176
    %v178 = vadd.f32 %v173, %v177
    %v179 = vsub.f32 %v178, %v28
    %v180 = vmul.f32 %v179, 0.25
    %vm181 = vcmask 7168
    %v182 = vsel %vm181, %v180, 0.0
    %v183 = vrot.slane %v182, 4
    %v184 = vadd.f32 %v182, %v183
    %v185 = vrot.slane %v184, 2
    %v186 = vadd.f32 %v184, %v185
    %v187 = vrot.slane %v186, 1
    %v188 = vadd.f32 %v186, %v187
    %190 = vset.pattern.permute.xlu0 0
    %191 = vperm.xlu0 %190, %v180
    %v192 = vpop.permute.xlu0 %191
    %v194 = vmul.f32 %v192, %v165
    %v195 = vsel %vm90, %v194, 0.0
    %v196 = vrot.slane %v195, 4
    %v197 = vadd.f32 %v195, %v196
    %v198 = vrot.slane %v197, 2
    %v199 = vadd.f32 %v197, %v198
    %v200 = vrot.slane %v199, 1
    %v201 = vadd.f32 %v199, %v200
    %v202 = vmul.f32 %v192, %v169
    %v203 = vsel %vm164, %v202, 0.0
    %204 = vxpose.xlu0.b32.start [1/16] %v85, 128
    %205 = vxpose.xlu0.b32.cont [2/16] 0.0, 128
    %206 = vxpose.xlu0.b32.cont [3/16] 0.0, 128
    %207 = vxpose.xlu0.b32.cont [4/16] 0.0, 128
    %208 = vxpose.xlu0.b32.cont [5/16] 0.0, 128
    %209 = vxpose.xlu0.b32.cont [6/16] 0.0, 128
    %210 = vxpose.xlu0.b32.cont [7/16] 0.0, 128
    %211 = vxpose.xlu0.b32.cont [8/16] 0.0, 128
    %212 = vxpose.xlu0.b32.cont [9/16] 0.0, 128
    %213 = vxpose.xlu0.b32.cont [10/16] 0.0, 128
    %214 = vxpose.xlu0.b32.cont [11/16] 0.0, 128
    %215 = vxpose.xlu0.b32.cont [12/16] 0.0, 128
    %216 = vxpose.xlu0.b32.cont [13/16] 0.0, 128
    %217 = vxpose.xlu0.b32.cont [14/16] 0.0, 128
    %218 = vxpose.xlu0.b32.cont [15/16] 0.0, 128
    %219 = vxpose.xlu0.b32.end [16/16] 0.0, 128
    %v220 = vpop.trf.xlu0
    %v221 = vpop.trf.xlu0
    %v222 = vpop.trf.xlu0
    %v223 = vpop.trf.xlu0
    %v224 = vpop.trf.xlu0
    %v225 = vpop.trf.xlu0
    %v226 = vpop.trf.xlu0
    %v227 = vpop.trf.xlu0
    %v228 = vpop.trf.xlu0
    %v229 = vpop.trf.xlu0
    %v230 = vpop.trf.xlu0
    %v231 = vpop.trf.xlu0
    %v232 = vpop.trf.xlu0
    %v233 = vpop.trf.xlu0
    %v234 = vpop.trf.xlu0
    %v235 = vpop.trf.xlu0
    %vm236 = vcmask 64512
    %v238 = vsel %vm236, %v220, 0
    %v241 = vsel %vm236, %v221, 0
    %v244 = vsel %vm236, %v222, 0
    %v247 = vsel %vm236, %v223, 0
    %249 = vmatprep.subr.mxu0 0.0
    %250 = vmatpush1.msra.mxu0 0.0
    %251 = vmatprep.subr.mxu0 0.0
    %252 = vmatpush1.msra.mxu0 0.0
    %253 = vmatprep.subr.mxu0 0.0
    %254 = vmatpush1.msra.mxu0 0.0
    %255 = vmatprep.subr.mxu0 0.0
    %256 = vmatpush1.msra.mxu0 0.0
    %257 = vmatprep.subr.mxu0 0.0
    %258 = vmatpush1.msra.mxu0 0.0
    %259 = vmatprep.subr.mxu0 0.0
    %260 = vmatpush1.msra.mxu0 0.0
    %261 = vmatprep.subr.mxu0 0.0
    %262 = vmatpush1.msra.mxu0 0.0
    %263 = vmatprep.subr.mxu0 0.0
    %264 = vmatpush1.msra.mxu0 0.0
    %265 = vmatprep.subr.mxu0 0.0
    %266 = vmatpush1.msra.mxu0 0.0
    %267 = vmatprep.subr.mxu0 0.0
    %268 = vmatpush1.msra.mxu0 0.0
    %269 = vmatprep.subr.mxu0 0.0
    %270 = vmatpush1.msra.mxu0 0.0
    %271 = vmatprep.subr.mxu0 0.0
    %272 = vmatpush1.msra.mxu0 0.0
    %273 = vmatprep.subr.mxu0 0.0
    %274 = vmatpush1.msra.mxu0 0.0
    %275 = vmatprep.subr.mxu0 0.0
    %276 = vmatpush1.msra.mxu0 0.0
    %277 = vmatprep.subr.mxu0 0.0
    %278 = vmatpush1.msra.mxu0 0.0
    %279 = vmatprep.subr.mxu0 0.0
    %280 = vmatpush1.msra.mxu0 %v203
    %281 = vmatprep.subr.mxu0 0.0
    %282 = vmatpush2.msra.mxu0 0.0
    %283 = vmatprep.subr.mxu0 0.0
    %284 = vmatpush2.msra.mxu0 0.0
    %285 = vmatprep.subr.mxu0 0.0
    %286 = vmatpush2.msra.mxu0 0.0
    %287 = vmatprep.subr.mxu0 0.0
    %288 = vmatpush2.msra.mxu0 0.0
    %289 = vmatprep.subr.mxu0 0.0
    %290 = vmatpush2.msra.mxu0 0.0
    %291 = vmatprep.subr.mxu0 0.0
    %292 = vmatpush2.msra.mxu0 0.0
    %293 = vmatprep.subr.mxu0 0.0
    %294 = vmatpush2.msra.mxu0 0.0
    %295 = vmatprep.subr.mxu0 0.0
    %296 = vmatpush2.msra.mxu0 0.0
    %297 = vmatprep.subr.mxu0 0.0
    %298 = vmatpush2.msra.mxu0 0.0
    %299 = vmatprep.subr.mxu0 0.0
    %300 = vmatpush2.msra.mxu0 0.0
    %301 = vmatprep.subr.mxu0 0.0
    %302 = vmatpush2.msra.mxu0 0.0
    %303 = vmatprep.subr.mxu0 0.0
    %304 = vmatpush2.msra.mxu0 0.0
    %305 = vmatprep.subr.mxu0 0.0
    %306 = vmatpush2.msra.mxu0 0.0
    %307 = vmatprep.subr.mxu0 0.0
    %308 = vmatpush2.msra.mxu0 0.0
    %309 = vmatprep.subr.mxu0 0.0
    %310 = vmatpush2.msra.mxu0 0.0
    %311 = vmatprep.subr.mxu0 0.0
    %312 = vmatpush2.msra.mxu0 0.0
    %313 = vmatprep.mubr.f32.mxu0 0.0
    %314 = vmatmul.mubr.f32.gmra.mxu0 %v238
    %v315 = vpop.f32.mrf.mxu0
    %v316 = vadd.f32 0.0, %v315
    %v317 = vpop.f32.mrf.mxu0
    %318 = vmatprep.mubr.f32.mxu0 0.0
    %319 = vmatmul.mubr.f32.gmra.mxu0 %v241
    %v320 = vpop.f32.mrf.mxu0
    %v321 = vadd.f32 0.0, %v320
    %v322 = vpop.f32.mrf.mxu0
    %323 = vmatprep.mubr.f32.mxu0 0.0
    %324 = vmatmul.mubr.f32.gmra.mxu0 %v244
    %v325 = vpop.f32.mrf.mxu0
    %v326 = vadd.f32 0.0, %v325
    %v327 = vpop.f32.mrf.mxu0
    %328 = vmatprep.mubr.f32.mxu0 0.0
    %329 = vmatmul.mubr.f32.gmra.mxu0 %v247
    %v330 = vpop.f32.mrf.mxu0
    %v331 = vadd.f32 0.0, %v330
    %v332 = vpop.f32.mrf.mxu0
    %333 = vdwg.mxu0
    %v334 = vsel %vm90, %v203, 0.0
    %v335 = vrot.slane %v334, 4
    %v336 = vadd.f32 %v334, %v335
    %v337 = vrot.slane %v336, 2
    %v338 = vadd.f32 %v336, %v337
    %v339 = vrot.slane %v338, 1
    %v340 = vadd.f32 %v338, %v339
    %v342 = vsel %vm90, %v203, 0
    %v345 = vsel %vm90, %v31, 0
    %v348 = vsel %vm90, %v32, 0
    %v351 = vsel %vm90, %v33, 0
    %v354 = vsel %vm90, %v34, 0
    %356 = vmatprep.subr.mxu0 0.0
    %357 = vmatpush1.xpose.msra.mxu0 0.0
    %358 = vmatprep.subr.mxu0 0.0
    %359 = vmatpush1.xpose.msra.mxu0 0.0
    %360 = vmatprep.subr.mxu0 0.0
    %361 = vmatpush1.xpose.msra.mxu0 0.0
    %362 = vmatprep.subr.mxu0 0.0
    %363 = vmatpush1.xpose.msra.mxu0 0.0
    %364 = vmatprep.subr.mxu0 0.0
    %365 = vmatpush1.xpose.msra.mxu0 0.0
    %366 = vmatprep.subr.mxu0 0.0
    %367 = vmatpush1.xpose.msra.mxu0 0.0
    %368 = vmatprep.subr.mxu0 0.0
    %369 = vmatpush1.xpose.msra.mxu0 0.0
    %370 = vmatprep.subr.mxu0 0.0
    %371 = vmatpush1.xpose.msra.mxu0 0.0
    %372 = vmatprep.subr.mxu0 0.0
    %373 = vmatpush1.xpose.msra.mxu0 0.0
    %374 = vmatprep.subr.mxu0 0.0
    %375 = vmatpush1.xpose.msra.mxu0 0.0
    %376 = vmatprep.subr.mxu0 0.0
    %377 = vmatpush1.xpose.msra.mxu0 0.0
    %378 = vmatprep.subr.mxu0 0.0
    %379 = vmatpush1.xpose.msra.mxu0 0.0
    %380 = vmatprep.subr.mxu0 0.0
    %381 = vmatpush1.xpose.msra.mxu0 %v354
    %382 = vmatprep.subr.mxu0 0.0
    %383 = vmatpush1.xpose.msra.mxu0 %v351
    %384 = vmatprep.subr.mxu0 0.0
    %385 = vmatpush1.xpose.msra.mxu0 %v348
    %386 = vmatprep.subr.mxu0 0.0
    %387 = vmatpush1.xpose.msra.mxu0 %v345
    %388 = vmatprep.subr.mxu0 0.0
    %389 = vmatpush2.xpose.msra.mxu0 0.0
    %390 = vmatprep.subr.mxu0 0.0
    %391 = vmatpush2.xpose.msra.mxu0 0.0
    %392 = vmatprep.subr.mxu0 0.0
    %393 = vmatpush2.xpose.msra.mxu0 0.0
    %394 = vmatprep.subr.mxu0 0.0
    %395 = vmatpush2.xpose.msra.mxu0 0.0
    %396 = vmatprep.subr.mxu0 0.0
    %397 = vmatpush2.xpose.msra.mxu0 0.0
    %398 = vmatprep.subr.mxu0 0.0
    %399 = vmatpush2.xpose.msra.mxu0 0.0
    %400 = vmatprep.subr.mxu0 0.0
    %401 = vmatpush2.xpose.msra.mxu0 0.0
    %402 = vmatprep.subr.mxu0 0.0
    %403 = vmatpush2.xpose.msra.mxu0 0.0
    %404 = vmatprep.subr.mxu0 0.0
    %405 = vmatpush2.xpose.msra.mxu0 0.0
    %406 = vmatprep.subr.mxu0 0.0
    %407 = vmatpush2.xpose.msra.mxu0 0.0
    %408 = vmatprep.subr.mxu0 0.0
    %409 = vmatpush2.xpose.msra.mxu0 0.0
    %410 = vmatprep.subr.mxu0 0.0
    %411 = vmatpush2.xpose.msra.mxu0 0.0
    %412 = vmatprep.subr.mxu0 0.0
    %413 = vmatpush2.xpose.msra.mxu0 0.0
    %414 = vmatprep.subr.mxu0 0.0
    %415 = vmatpush2.xpose.msra.mxu0 0.0
    %416 = vmatprep.subr.mxu0 0.0
    %417 = vmatpush2.xpose.msra.mxu0 0.0
    %418 = vmatprep.subr.mxu0 0.0
    %419 = vmatpush2.xpose.msra.mxu0 0.0
    %420 = vmatprep.mubr.f32.mxu0 0.0
    %421 = vmatmul.mubr.f32.gmra.mxu0 %v342
    %v422 = vpop.f32.mrf.mxu0
    %v423 = vadd.f32 0.0, %v422
    %v424 = vpop.f32.mrf.mxu0
    %425 = vdwg.mxu0
    %v426 = vsel %vm84, %v423, 0.0
    %427 = vxpose.xlu0.b32.start [1/16] %v26, 128
    %428 = vxpose.xlu0.b32.cont [2/16] 0.0, 128
    %429 = vxpose.xlu0.b32.cont [3/16] 0.0, 128
    %430 = vxpose.xlu0.b32.cont [4/16] 0.0, 128
    %431 = vxpose.xlu0.b32.cont [5/16] 0.0, 128
    %432 = vxpose.xlu0.b32.cont [6/16] 0.0, 128
    %433 = vxpose.xlu0.b32.cont [7/16] 0.0, 128
    %434 = vxpose.xlu0.b32.cont [8/16] 0.0, 128
    %435 = vxpose.xlu0.b32.cont [9/16] 0.0, 128
    %436 = vxpose.xlu0.b32.cont [10/16] 0.0, 128
    %437 = vxpose.xlu0.b32.cont [11/16] 0.0, 128
    %438 = vxpose.xlu0.b32.cont [12/16] 0.0, 128
    %439 = vxpose.xlu0.b32.cont [13/16] 0.0, 128
    %440 = vxpose.xlu0.b32.cont [14/16] 0.0, 128
    %441 = vxpose.xlu0.b32.cont [15/16] 0.0, 128
    %442 = vxpose.xlu0.b32.end [16/16] 0.0, 128
    %v443 = vpop.trf.xlu0
    %v444 = vpop.trf.xlu0
    %v445 = vpop.trf.xlu0
    %v446 = vpop.trf.xlu0
    %v447 = vpop.trf.xlu0
    %v448 = vpop.trf.xlu0
    %v449 = vpop.trf.xlu0
    %v450 = vpop.trf.xlu0
    %v451 = vpop.trf.xlu0
    %v452 = vpop.trf.xlu0
    %v453 = vpop.trf.xlu0
    %v454 = vpop.trf.xlu0
    %v455 = vpop.trf.xlu0
    %v456 = vpop.trf.xlu0
    %v457 = vpop.trf.xlu0
    %v458 = vpop.trf.xlu0
    %v460 = vsel %vm236, %v443, 0
    %462 = vmatprep.subr.mxu0 0.0
    %463 = vmatpush1.msra.mxu0 0.0
    %464 = vmatprep.subr.mxu0 0.0
    %465 = vmatpush1.msra.mxu0 0.0
    %466 = vmatprep.subr.mxu0 0.0
    %467 = vmatpush1.msra.mxu0 0.0
    %468 = vmatprep.subr.mxu0 0.0
    %469 = vmatpush1.msra.mxu0 0.0
    %470 = vmatprep.subr.mxu0 0.0
    %471 = vmatpush1.msra.mxu0 0.0
    %472 = vmatprep.subr.mxu0 0.0
    %473 = vmatpush1.msra.mxu0 0.0
    %474 = vmatprep.subr.mxu0 0.0
    %475 = vmatpush1.msra.mxu0 0.0
    %476 = vmatprep.subr.mxu0 0.0
    %477 = vmatpush1.msra.mxu0 0.0
    %478 = vmatprep.subr.mxu0 0.0
    %479 = vmatpush1.msra.mxu0 0.0
    %480 = vmatprep.subr.mxu0 0.0
    %481 = vmatpush1.msra.mxu0 0.0
    %482 = vmatprep.subr.mxu0 0.0
    %483 = vmatpush1.msra.mxu0 0.0
    %484 = vmatprep.subr.mxu0 0.0
    %485 = vmatpush1.msra.mxu0 0.0
    %486 = vmatprep.subr.mxu0 0.0
    %487 = vmatpush1.msra.mxu0 0.0
    %488 = vmatprep.subr.mxu0 0.0
    %489 = vmatpush1.msra.mxu0 0.0
    %490 = vmatprep.subr.mxu0 0.0
    %491 = vmatpush1.msra.mxu0 0.0
    %492 = vmatprep.subr.mxu0 0.0
    %493 = vmatpush1.msra.mxu0 %v426
    %494 = vmatprep.subr.mxu0 0.0
    %495 = vmatpush2.msra.mxu0 0.0
    %496 = vmatprep.subr.mxu0 0.0
    %497 = vmatpush2.msra.mxu0 0.0
    %498 = vmatprep.subr.mxu0 0.0
    %499 = vmatpush2.msra.mxu0 0.0
    %500 = vmatprep.subr.mxu0 0.0
    %501 = vmatpush2.msra.mxu0 0.0
    %502 = vmatprep.subr.mxu0 0.0
    %503 = vmatpush2.msra.mxu0 0.0
    %504 = vmatprep.subr.mxu0 0.0
    %505 = vmatpush2.msra.mxu0 0.0
    %506 = vmatprep.subr.mxu0 0.0
    %507 = vmatpush2.msra.mxu0 0.0
    %508 = vmatprep.subr.mxu0 0.0
    %509 = vmatpush2.msra.mxu0 0.0
    %510 = vmatprep.subr.mxu0 0.0
    %511 = vmatpush2.msra.mxu0 0.0
    %512 = vmatprep.subr.mxu0 0.0
    %513 = vmatpush2.msra.mxu0 0.0
    %514 = vmatprep.subr.mxu0 0.0
    %515 = vmatpush2.msra.mxu0 0.0
    %516 = vmatprep.subr.mxu0 0.0
    %517 = vmatpush2.msra.mxu0 0.0
    %518 = vmatprep.subr.mxu0 0.0
    %519 = vmatpush2.msra.mxu0 0.0
    %520 = vmatprep.subr.mxu0 0.0
    %521 = vmatpush2.msra.mxu0 0.0
    %522 = vmatprep.subr.mxu0 0.0
    %523 = vmatpush2.msra.mxu0 0.0
    %524 = vmatprep.subr.mxu0 0.0
    %525 = vmatpush2.msra.mxu0 0.0
    %526 = vmatprep.mubr.f32.mxu0 0.0
    %527 = vmatmul.mubr.f32.gmra.mxu0 %v460
    %v528 = vpop.f32.mrf.mxu0
    %v529 = vadd.f32 0.0, %v528
    %v530 = vpop.f32.mrf.mxu0
    %531 = vdwg.mxu0
    %v532 = vsel %vm90, %v426, 0.0
    %v533 = vrot.slane %v532, 4
    %v534 = vadd.f32 %v532, %v533
    %v535 = vrot.slane %v534, 2
    %v536 = vadd.f32 %v534, %v535
    %v537 = vrot.slane %v536, 1
    %v538 = vadd.f32 %v536, %v537
    %v539 = vmul.f32 %v529, 0.01
    %v540 = vsub.f32 %v30, %v539
    %v541 = vmul.f32 %v538, 0.01
    %v542 = vsub.f32 %v35, %v541
    %v543 = vmul.f32 %v316, 0.01
    %v544 = vmul.f32 %v321, 0.01
    %v545 = vmul.f32 %v326, 0.01
    %v546 = vmul.f32 %v331, 0.01
    %v547 = vsub.f32 %v31, %v543
    %v548 = vsub.f32 %v32, %v544
    %v549 = vsub.f32 %v33, %v545
    %v550 = vsub.f32 %v34, %v546
    %v551 = vmul.f32 %v340, 0.01
    %v552 = vsub.f32 %v36, %v551
    %v553 = vmul.f32 %v201, 0.01
    %v554 = vsub.f32 %v37, %v553
    %v555 = vmul.f32 %v188, 0.01
    %v556 = vsub.f32 %v38, %v555
    %v557 = vlaneseq
    %v558 = vshrl.u32 %v557, 7
    %v559 = vsub.s32 0, %v558
    %v560 = vrot.slane %v540, %v559
    %v561 = vmul.f32 %v42, %v560
    %v562 = vlaneseq
    %v563 = vshrl.u32 %v562, 7
    %v564 = vsub.s32 1, %v563
    %v565 = vrot.slane %v540, %v564
    %v566 = vmul.f32 %v51, %v565
    %v567 = vadd.f32 %v561, %v566
    %v568 = vlaneseq
    %v569 = vshrl.u32 %v568, 7
    %v570 = vsub.s32 2, %v569
    %v571 = vrot.slane %v540, %v570
    %v572 = vmul.f32 %v61, %v571
    %v573 = vadd.f32 %v567, %v572
    %v574 = vlaneseq
    %v575 = vshrl.u32 %v574, 7
    %v576 = vsub.s32 3, %v575
    %v577 = vrot.slane %v540, %v576
    %v578 = vmul.f32 %v71, %v577
    %v579 = vadd.f32 %v573, %v578
    %v580 = vlaneseq
    %v581 = vshrl.u32 %v580, 7
    %v582 = vsub.s32 0, %v581
    %v583 = vrot.slane %v542, %v582
    %v584 = vadd.f32 %v579, %v583
    %vm585 = vcmp.gt.f32.partialorder %v584, 0.0
    %v586 = vsel %vm585, %v584, 0.0
    %v587 = vlaneseq
    %v588 = vshrl.u32 %v587, 7
    %v589 = vsub.s32 0, %v588
    %v590 = vrot.slane %v552, %v589
    %v592 = vsel %vm90, %v586, 0
    %594 = vmatprep.subr.mxu0 0.0
    %595 = vmatpush1.msra.mxu0 0.0
    %596 = vmatprep.subr.mxu0 0.0
    %597 = vmatpush1.msra.mxu0 0.0
    %598 = vmatprep.subr.mxu0 0.0
    %599 = vmatpush1.msra.mxu0 0.0
    %600 = vmatprep.subr.mxu0 0.0
    %601 = vmatpush1.msra.mxu0 0.0
    %602 = vmatprep.subr.mxu0 0.0
    %603 = vmatpush1.msra.mxu0 0.0
    %604 = vmatprep.subr.mxu0 0.0
    %605 = vmatpush1.msra.mxu0 0.0
    %606 = vmatprep.subr.mxu0 0.0
    %607 = vmatpush1.msra.mxu0 0.0
    %608 = vmatprep.subr.mxu0 0.0
    %609 = vmatpush1.msra.mxu0 0.0
    %610 = vmatprep.subr.mxu0 0.0
    %611 = vmatpush1.msra.mxu0 0.0
    %612 = vmatprep.subr.mxu0 0.0
    %613 = vmatpush1.msra.mxu0 0.0
    %614 = vmatprep.subr.mxu0 0.0
    %615 = vmatpush1.msra.mxu0 0.0
    %616 = vmatprep.subr.mxu0 0.0
    %617 = vmatpush1.msra.mxu0 0.0
    %618 = vmatprep.subr.mxu0 0.0
    %619 = vmatpush1.msra.mxu0 %v550
    %620 = vmatprep.subr.mxu0 0.0
    %621 = vmatpush1.msra.mxu0 %v549
    %622 = vmatprep.subr.mxu0 0.0
    %623 = vmatpush1.msra.mxu0 %v548
    %624 = vmatprep.subr.mxu0 0.0
    %625 = vmatpush1.msra.mxu0 %v547
    %626 = vmatprep.subr.mxu0 0.0
    %627 = vmatpush2.msra.mxu0 0.0
    %628 = vmatprep.subr.mxu0 0.0
    %629 = vmatpush2.msra.mxu0 0.0
    %630 = vmatprep.subr.mxu0 0.0
    %631 = vmatpush2.msra.mxu0 0.0
    %632 = vmatprep.subr.mxu0 0.0
    %633 = vmatpush2.msra.mxu0 0.0
    %634 = vmatprep.subr.mxu0 0.0
    %635 = vmatpush2.msra.mxu0 0.0
    %636 = vmatprep.subr.mxu0 0.0
    %637 = vmatpush2.msra.mxu0 0.0
    %638 = vmatprep.subr.mxu0 0.0
    %639 = vmatpush2.msra.mxu0 0.0
    %640 = vmatprep.subr.mxu0 0.0
    %641 = vmatpush2.msra.mxu0 0.0
    %642 = vmatprep.subr.mxu0 0.0
    %643 = vmatpush2.msra.mxu0 0.0
    %644 = vmatprep.subr.mxu0 0.0
    %645 = vmatpush2.msra.mxu0 0.0
    %646 = vmatprep.subr.mxu0 0.0
    %647 = vmatpush2.msra.mxu0 0.0
    %648 = vmatprep.subr.mxu0 0.0
    %649 = vmatpush2.msra.mxu0 0.0
    %650 = vmatprep.subr.mxu0 0.0
    %651 = vmatpush2.msra.mxu0 0.0
    %652 = vmatprep.subr.mxu0 0.0
    %653 = vmatpush2.msra.mxu0 0.0
    %654 = vmatprep.subr.mxu0 0.0
    %655 = vmatpush2.msra.mxu0 0.0
    %656 = vmatprep.subr.mxu0 0.0
    %657 = vmatpush2.msra.mxu0 0.0
    %658 = vmatprep.mubr.f32.mxu0 0.0
    %659 = vmatmul.mubr.f32.gmra.mxu0 %v592
    %v660 = vpop.f32.mrf.mxu0
    %v661 = vadd.f32 %v590, %v660
    %v662 = vpop.f32.mrf.mxu0
    %663 = vdwg.mxu0
    %vm664 = vcmp.gt.f32.partialorder %v661, 0.0
    %v665 = vsel %vm664, %v661, 0.0
    %v666 = vlaneseq
    %v667 = vshrl.u32 %v666, 7
    %v668 = vsub.s32 0, %v667
    %v669 = vrot.slane %v554, %v668
    %v670 = vmul.f32 %v665, %v669
    %v671 = vsel %vm90, %v670, 0.0
    %672 = vadd.xlane.f32.xlu0 %v671
    %v673 = vpop.xlane.xlu0 %672
    %v674 = vlaneseq
    %v675 = vshrl.u32 %v674, 7
    %v676 = vsub.s32 0, %v675
    %v677 = vrot.slane %v556, %v676
    %v678 = vadd.f32 %v673, %v677
    %v679 = vsub.f32 %v678, %v28
    %v680 = vmul.f32 %v679, 0.25
    %v681 = vsel %vm181, %v680, 0.0
    %v682 = vrot.slane %v681, 4
    %v683 = vadd.f32 %v681, %v682
    %v684 = vrot.slane %v683, 2
    %v685 = vadd.f32 %v683, %v684
    %v686 = vrot.slane %v685, 1
    %v687 = vadd.f32 %v685, %v686
    %689 = vset.pattern.permute.xlu0 0
    %690 = vperm.xlu0 %689, %v680
    %v691 = vpop.permute.xlu0 %690
    %v693 = vmul.f32 %v691, %v665
    %v694 = vsel %vm90, %v693, 0.0
    %v695 = vrot.slane %v694, 4
    %v696 = vadd.f32 %v694, %v695
    %v697 = vrot.slane %v696, 2
    %v698 = vadd.f32 %v696, %v697
    %v699 = vrot.slane %v698, 1
    %v700 = vadd.f32 %v698, %v699
    %v701 = vmul.f32 %v691, %v669
    %v702 = vsel %vm664, %v701, 0.0
    %703 = vxpose.xlu0.b32.start [1/16] %v586, 128
    %704 = vxpose.xlu0.b32.cont [2/16] 0.0, 128
    %705 = vxpose.xlu0.b32.cont [3/16] 0.0, 128
    %706 = vxpose.xlu0.b32.cont [4/16] 0.0, 128
    %707 = vxpose.xlu0.b32.cont [5/16] 0.0, 128
    %708 = vxpose.xlu0.b32.cont [6/16] 0.0, 128
    %709 = vxpose.xlu0.b32.cont [7/16] 0.0, 128
    %710 = vxpose.xlu0.b32.cont [8/16] 0.0, 128
    %711 = vxpose.xlu0.b32.cont [9/16] 0.0, 128
    %712 = vxpose.xlu0.b32.cont [10/16] 0.0, 128
    %713 = vxpose.xlu0.b32.cont [11/16] 0.0, 128
    %714 = vxpose.xlu0.b32.cont [12/16] 0.0, 128
    %715 = vxpose.xlu0.b32.cont [13/16] 0.0, 128
    %716 = vxpose.xlu0.b32.cont [14/16] 0.0, 128
    %717 = vxpose.xlu0.b32.cont [15/16] 0.0, 128
    %718 = vxpose.xlu0.b32.end [16/16] 0.0, 128
    %v719 = vpop.trf.xlu0
    %v720 = vpop.trf.xlu0
    %v721 = vpop.trf.xlu0
    %v722 = vpop.trf.xlu0
    %v723 = vpop.trf.xlu0
    %v724 = vpop.trf.xlu0
    %v725 = vpop.trf.xlu0
    %v726 = vpop.trf.xlu0
    %v727 = vpop.trf.xlu0
    %v728 = vpop.trf.xlu0
    %v729 = vpop.trf.xlu0
    %v730 = vpop.trf.xlu0
    %v731 = vpop.trf.xlu0
    %v732 = vpop.trf.xlu0
    %v733 = vpop.trf.xlu0
    %v734 = vpop.trf.xlu0
    %v736 = vsel %vm236, %v719, 0
    %v739 = vsel %vm236, %v720, 0
    %v742 = vsel %vm236, %v721, 0
    %v745 = vsel %vm236, %v722, 0
    %747 = vmatprep.subr.mxu0 0.0
    %748 = vmatpush1.msra.mxu0 0.0
    %749 = vmatprep.subr.mxu0 0.0
    %750 = vmatpush1.msra.mxu0 0.0
    %751 = vmatprep.subr.mxu0 0.0
    %752 = vmatpush1.msra.mxu0 0.0
    %753 = vmatprep.subr.mxu0 0.0
    %754 = vmatpush1.msra.mxu0 0.0
    %755 = vmatprep.subr.mxu0 0.0
    %756 = vmatpush1.msra.mxu0 0.0
    %757 = vmatprep.subr.mxu0 0.0
    %758 = vmatpush1.msra.mxu0 0.0
    %759 = vmatprep.subr.mxu0 0.0
    %760 = vmatpush1.msra.mxu0 0.0
    %761 = vmatprep.subr.mxu0 0.0
    %762 = vmatpush1.msra.mxu0 0.0
    %763 = vmatprep.subr.mxu0 0.0
    %764 = vmatpush1.msra.mxu0 0.0
    %765 = vmatprep.subr.mxu0 0.0
    %766 = vmatpush1.msra.mxu0 0.0
    %767 = vmatprep.subr.mxu0 0.0
    %768 = vmatpush1.msra.mxu0 0.0
    %769 = vmatprep.subr.mxu0 0.0
    %770 = vmatpush1.msra.mxu0 0.0
    %771 = vmatprep.subr.mxu0 0.0
    %772 = vmatpush1.msra.mxu0 0.0
    %773 = vmatprep.subr.mxu0 0.0
    %774 = vmatpush1.msra.mxu0 0.0
    %775 = vmatprep.subr.mxu0 0.0
    %776 = vmatpush1.msra.mxu0 0.0
    %777 = vmatprep.subr.mxu0 0.0
    %778 = vmatpush1.msra.mxu0 %v702
    %779 = vmatprep.subr.mxu0 0.0
    %780 = vmatpush2.msra.mxu0 0.0
    %781 = vmatprep.subr.mxu0 0.0
    %782 = vmatpush2.msra.mxu0 0.0
    %783 = vmatprep.subr.mxu0 0.0
    %784 = vmatpush2.msra.mxu0 0.0
    %785 = vmatprep.subr.mxu0 0.0
    %786 = vmatpush2.msra.mxu0 0.0
    %787 = vmatprep.subr.mxu0 0.0
    %788 = vmatpush2.msra.mxu0 0.0
    %789 = vmatprep.subr.mxu0 0.0
    %790 = vmatpush2.msra.mxu0 0.0
    %791 = vmatprep.subr.mxu0 0.0
    %792 = vmatpush2.msra.mxu0 0.0
    %793 = vmatprep.subr.mxu0 0.0
    %794 = vmatpush2.msra.mxu0 0.0
    %795 = vmatprep.subr.mxu0 0.0
    %796 = vmatpush2.msra.mxu0 0.0
    %797 = vmatprep.subr.mxu0 0.0
    %798 = vmatpush2.msra.mxu0 0.0
    %799 = vmatprep.subr.mxu0 0.0
    %800 = vmatpush2.msra.mxu0 0.0
    %801 = vmatprep.subr.mxu0 0.0
    %802 = vmatpush2.msra.mxu0 0.0
    %803 = vmatprep.subr.mxu0 0.0
    %804 = vmatpush2.msra.mxu0 0.0
    %805 = vmatprep.subr.mxu0 0.0
    %806 = vmatpush2.msra.mxu0 0.0
    %807 = vmatprep.subr.mxu0 0.0
    %808 = vmatpush2.msra.mxu0 0.0
    %809 = vmatprep.subr.mxu0 0.0
    %810 = vmatpush2.msra.mxu0 0.0
    %811 = vmatprep.mubr.f32.mxu0 0.0
    %812 = vmatmul.mubr.f32.gmra.mxu0 %v736
    %v813 = vpop.f32.mrf.mxu0
    %v814 = vadd.f32 0.0, %v813
    %v815 = vpop.f32.mrf.mxu0
    %816 = vmatprep.mubr.f32.mxu0 0.0
    %817 = vmatmul.mubr.f32.gmra.mxu0 %v739
    %v818 = vpop.f32.mrf.mxu0
    %v819 = vadd.f32 0.0, %v818
    %v820 = vpop.f32.mrf.mxu0
    %821 = vmatprep.mubr.f32.mxu0 0.0
    %822 = vmatmul.mubr.f32.gmra.mxu0 %v742
    %v823 = vpop.f32.mrf.mxu0
    %v824 = vadd.f32 0.0, %v823
    %v825 = vpop.f32.mrf.mxu0
    %826 = vmatprep.mubr.f32.mxu0 0.0
    %827 = vmatmul.mubr.f32.gmra.mxu0 %v745
    %v828 = vpop.f32.mrf.mxu0
    %v829 = vadd.f32 0.0, %v828
    %v830 = vpop.f32.mrf.mxu0
    %831 = vdwg.mxu0
    %v832 = vsel %vm90, %v702, 0.0
    %v833 = vrot.slane %v832, 4
    %v834 = vadd.f32 %v832, %v833
    %v835 = vrot.slane %v834, 2
    %v836 = vadd.f32 %v834, %v835
    %v837 = vrot.slane %v836, 1
    %v838 = vadd.f32 %v836, %v837
    %v840 = vsel %vm90, %v702, 0
    %v843 = vsel %vm90, %v547, 0
    %v846 = vsel %vm90, %v548, 0
    %v849 = vsel %vm90, %v549, 0
    %v852 = vsel %vm90, %v550, 0
    %854 = vmatprep.subr.mxu0 0.0
    %855 = vmatpush1.xpose.msra.mxu0 0.0
    %856 = vmatprep.subr.mxu0 0.0
    %857 = vmatpush1.xpose.msra.mxu0 0.0
    %858 = vmatprep.subr.mxu0 0.0
    %859 = vmatpush1.xpose.msra.mxu0 0.0
    %860 = vmatprep.subr.mxu0 0.0
    %861 = vmatpush1.xpose.msra.mxu0 0.0
    %862 = vmatprep.subr.mxu0 0.0
    %863 = vmatpush1.xpose.msra.mxu0 0.0
    %864 = vmatprep.subr.mxu0 0.0
    %865 = vmatpush1.xpose.msra.mxu0 0.0
    %866 = vmatprep.subr.mxu0 0.0
    %867 = vmatpush1.xpose.msra.mxu0 0.0
    %868 = vmatprep.subr.mxu0 0.0
    %869 = vmatpush1.xpose.msra.mxu0 0.0
    %870 = vmatprep.subr.mxu0 0.0
    %871 = vmatpush1.xpose.msra.mxu0 0.0
    %872 = vmatprep.subr.mxu0 0.0
    %873 = vmatpush1.xpose.msra.mxu0 0.0
    %874 = vmatprep.subr.mxu0 0.0
    %875 = vmatpush1.xpose.msra.mxu0 0.0
    %876 = vmatprep.subr.mxu0 0.0
    %877 = vmatpush1.xpose.msra.mxu0 0.0
    %878 = vmatprep.subr.mxu0 0.0
    %879 = vmatpush1.xpose.msra.mxu0 %v852
    %880 = vmatprep.subr.mxu0 0.0
    %881 = vmatpush1.xpose.msra.mxu0 %v849
    %882 = vmatprep.subr.mxu0 0.0
    %883 = vmatpush1.xpose.msra.mxu0 %v846
    %884 = vmatprep.subr.mxu0 0.0
    %885 = vmatpush1.xpose.msra.mxu0 %v843
    %886 = vmatprep.subr.mxu0 0.0
    %887 = vmatpush2.xpose.msra.mxu0 0.0
    %888 = vmatprep.subr.mxu0 0.0
    %889 = vmatpush2.xpose.msra.mxu0 0.0
    %890 = vmatprep.subr.mxu0 0.0
    %891 = vmatpush2.xpose.msra.mxu0 0.0
    %892 = vmatprep.subr.mxu0 0.0
    %893 = vmatpush2.xpose.msra.mxu0 0.0
    %894 = vmatprep.subr.mxu0 0.0
    %895 = vmatpush2.xpose.msra.mxu0 0.0
    %896 = vmatprep.subr.mxu0 0.0
    %897 = vmatpush2.xpose.msra.mxu0 0.0
    %898 = vmatprep.subr.mxu0 0.0
    %899 = vmatpush2.xpose.msra.mxu0 0.0
    %900 = vmatprep.subr.mxu0 0.0
    %901 = vmatpush2.xpose.msra.mxu0 0.0
    %902 = vmatprep.subr.mxu0 0.0
    %903 = vmatpush2.xpose.msra.mxu0 0.0
    %904 = vmatprep.subr.mxu0 0.0
    %905 = vmatpush2.xpose.msra.mxu0 0.0
    %906 = vmatprep.subr.mxu0 0.0
    %907 = vmatpush2.xpose.msra.mxu0 0.0
    %908 = vmatprep.subr.mxu0 0.0
    %909 = vmatpush2.xpose.msra.mxu0 0.0
    %910 = vmatprep.subr.mxu0 0.0
    %911 = vmatpush2.xpose.msra.mxu0 0.0
    %912 = vmatprep.subr.mxu0 0.0
    %913 = vmatpush2.xpose.msra.mxu0 0.0
    %914 = vmatprep.subr.mxu0 0.0
    %915 = vmatpush2.xpose.msra.mxu0 0.0
    %916 = vmatprep.subr.mxu0 0.0
    %917 = vmatpush2.xpose.msra.mxu0 0.0
    %918 = vmatprep.mubr.f32.mxu0 0.0
    %919 = vmatmul.mubr.f32.gmra.mxu0 %v840
    %v920 = vpop.f32.mrf.mxu0
    %v921 = vadd.f32 0.0, %v920
    %v922 = vpop.f32.mrf.mxu0
    %923 = vdwg.mxu0
    %v924 = vsel %vm585, %v921, 0.0
    %925 = vmatprep.subr.mxu0 0.0
    %926 = vmatpush1.msra.mxu0 0.0
    %927 = vmatprep.subr.mxu0 0.0
    %928 = vmatpush1.msra.mxu0 0.0
    %929 = vmatprep.subr.mxu0 0.0
    %930 = vmatpush1.msra.mxu0 0.0
    %931 = vmatprep.subr.mxu0 0.0
    %932 = vmatpush1.msra.mxu0 0.0
    %933 = vmatprep.subr.mxu0 0.0
    %934 = vmatpush1.msra.mxu0 0.0
    %935 = vmatprep.subr.mxu0 0.0
    %936 = vmatpush1.msra.mxu0 0.0
    %937 = vmatprep.subr.mxu0 0.0
    %938 = vmatpush1.msra.mxu0 0.0
    %939 = vmatprep.subr.mxu0 0.0
    %940 = vmatpush1.msra.mxu0 0.0
    %941 = vmatprep.subr.mxu0 0.0
    %942 = vmatpush1.msra.mxu0 0.0
    %943 = vmatprep.subr.mxu0 0.0
    %944 = vmatpush1.msra.mxu0 0.0
    %945 = vmatprep.subr.mxu0 0.0
    %946 = vmatpush1.msra.mxu0 0.0
    %947 = vmatprep.subr.mxu0 0.0
    %948 = vmatpush1.msra.mxu0 0.0
    %949 = vmatprep.subr.mxu0 0.0
    %950 = vmatpush1.msra.mxu0 0.0
    %951 = vmatprep.subr.mxu0 0.0
    %952 = vmatpush1.msra.mxu0 0.0
    %953 = vmatprep.subr.mxu0 0.0
    %954 = vmatpush1.msra.mxu0 0.0
    %955 = vmatprep.subr.mxu0 0.0
    %956 = vmatpush1.msra.mxu0 %v924
    %957 = vmatprep.subr.mxu0 0.0
    %958 = vmatpush2.msra.mxu0 0.0
    %959 = vmatprep.subr.mxu0 0.0
    %960 = vmatpush2.msra.mxu0 0.0
    %961 = vmatprep.subr.mxu0 0.0
    %962 = vmatpush2.msra.mxu0 0.0
    %963 = vmatprep.subr.mxu0 0.0
    %964 = vmatpush2.msra.mxu0 0.0
    %965 = vmatprep.subr.mxu0 0.0
    %966 = vmatpush2.msra.mxu0 0.0
    %967 = vmatprep.subr.mxu0 0.0
    %968 = vmatpush2.msra.mxu0 0.0
    %969 = vmatprep.subr.mxu0 0.0
    %970 = vmatpush2.msra.mxu0 0.0
    %971 = vmatprep.subr.mxu0 0.0
    %972 = vmatpush2.msra.mxu0 0.0
    %973 = vmatprep.subr.mxu0 0.0
    %974 = vmatpush2.msra.mxu0 0.0
    %975 = vmatprep.subr.mxu0 0.0
    %976 = vmatpush2.msra.mxu0 0.0
    %977 = vmatprep.subr.mxu0 0.0
    %978 = vmatpush2.msra.mxu0 0.0
    %979 = vmatprep.subr.mxu0 0.0
    %980 = vmatpush2.msra.mxu0 0.0
    %981 = vmatprep.subr.mxu0 0.0
    %982 = vmatpush2.msra.mxu0 0.0
    %983 = vmatprep.subr.mxu0 0.0
    %984 = vmatpush2.msra.mxu0 0.0
    %985 = vmatprep.subr.mxu0 0.0
    %986 = vmatpush2.msra.mxu0 0.0
    %987 = vmatprep.subr.mxu0 0.0
    %988 = vmatpush2.msra.mxu0 0.0
    %989 = vmatprep.mubr.f32.mxu0 0.0
    %990 = vmatmul.mubr.f32.gmra.mxu0 %v460
    %v991 = vpop.f32.mrf.mxu0
    %v992 = vadd.f32 0.0, %v991
    %v993 = vpop.f32.mrf.mxu0
    %994 = vdwg.mxu0
    %v995 = vsel %vm90, %v924, 0.0
    %v996 = vrot.slane %v995, 4
    %v997 = vadd.f32 %v995, %v996
    %v998 = vrot.slane %v997, 2
    %v999 = vadd.f32 %v997, %v998
    %v1000 = vrot.slane %v999, 1
    %v1001 = vadd.f32 %v999, %v1000
    %v1002 = vmul.f32 %v992, 0.01
    %v1003 = vsub.f32 %v540, %v1002
    %v1004 = vmul.f32 %v1001, 0.01
    %v1005 = vsub.f32 %v542, %v1004
    %v1006 = vmul.f32 %v814, 0.01
    %v1007 = vmul.f32 %v819, 0.01
    %v1008 = vmul.f32 %v824, 0.01
    %v1009 = vmul.f32 %v829, 0.01
    %v1010 = vsub.f32 %v547, %v1006
    %v1011 = vsub.f32 %v548, %v1007
    %v1012 = vsub.f32 %v549, %v1008
    %v1013 = vsub.f32 %v550, %v1009
    %v1014 = vmul.f32 %v838, 0.01
    %v1015 = vsub.f32 %v552, %v1014
    %v1016 = vmul.f32 %v700, 0.01
    %v1017 = vsub.f32 %v554, %v1016
    %v1018 = vmul.f32 %v687, 0.01
    %v1019 = vsub.f32 %v556, %v1018
    %v1020 = vlaneseq
    %v1021 = vshrl.u32 %v1020, 7
    %v1022 = vsub.s32 0, %v1021
    %v1023 = vrot.slane %v1003, %v1022
    %v1024 = vmul.f32 %v42, %v1023
    %v1025 = vlaneseq
    %v1026 = vshrl.u32 %v1025, 7
    %v1027 = vsub.s32 1, %v1026
    %v1028 = vrot.slane %v1003, %v1027
    %v1029 = vmul.f32 %v51, %v1028
    %v1030 = vadd.f32 %v1024, %v1029
    %v1031 = vlaneseq
    %v1032 = vshrl.u32 %v1031, 7
    %v1033 = vsub.s32 2, %v1032
    %v1034 = vrot.slane %v1003, %v1033
    %v1035 = vmul.f32 %v61, %v1034
    %v1036 = vadd.f32 %v1030, %v1035
    %v1037 = vlaneseq
    %v1038 = vshrl.u32 %v1037, 7
    %v1039 = vsub.s32 3, %v1038
    %v1040 = vrot.slane %v1003, %v1039
    %v1041 = vmul.f32 %v71, %v1040
    %v1042 = vadd.f32 %v1036, %v1041
    %v1043 = vlaneseq
    %v1044 = vshrl.u32 %v1043, 7
    %v1045 = vsub.s32 0, %v1044
    %v1046 = vrot.slane %v1005, %v1045
    %v1047 = vadd.f32 %v1042, %v1046
    %vm1048 = vcmp.gt.f32.partialorder %v1047, 0.0
    %v1049 = vsel %vm1048, %v1047, 0.0
    %v1050 = vlaneseq
    %v1051 = vshrl.u32 %v1050, 7
    %v1052 = vsub.s32 0, %v1051
    %v1053 = vrot.slane %v1015, %v1052
    %v1055 = vsel %vm90, %v1049, 0
    %1057 = vmatprep.subr.mxu0 0.0
    %1058 = vmatpush1.msra.mxu0 0.0
    %1059 = vmatprep.subr.mxu0 0.0
    %1060 = vmatpush1.msra.mxu0 0.0
    %1061 = vmatprep.subr.mxu0 0.0
    %1062 = vmatpush1.msra.mxu0 0.0
    %1063 = vmatprep.subr.mxu0 0.0
    %1064 = vmatpush1.msra.mxu0 0.0
    %1065 = vmatprep.subr.mxu0 0.0
    %1066 = vmatpush1.msra.mxu0 0.0
    %1067 = vmatprep.subr.mxu0 0.0
    %1068 = vmatpush1.msra.mxu0 0.0
    %1069 = vmatprep.subr.mxu0 0.0
    %1070 = vmatpush1.msra.mxu0 0.0
    %1071 = vmatprep.subr.mxu0 0.0
    %1072 = vmatpush1.msra.mxu0 0.0
    %1073 = vmatprep.subr.mxu0 0.0
    %1074 = vmatpush1.msra.mxu0 0.0
    %1075 = vmatprep.subr.mxu0 0.0
    %1076 = vmatpush1.msra.mxu0 0.0
    %1077 = vmatprep.subr.mxu0 0.0
    %1078 = vmatpush1.msra.mxu0 0.0
    %1079 = vmatprep.subr.mxu0 0.0
    %1080 = vmatpush1.msra.mxu0 0.0
    %1081 = vmatprep.subr.mxu0 0.0
    %1082 = vmatpush1.msra.mxu0 %v1013
    %1083 = vmatprep.subr.mxu0 0.0
    %1084 = vmatpush1.msra.mxu0 %v1012
    %1085 = vmatprep.subr.mxu0 0.0
    %1086 = vmatpush1.msra.mxu0 %v1011
    %1087 = vmatprep.subr.mxu0 0.0
    %1088 = vmatpush1.msra.mxu0 %v1010
    %1089 = vmatprep.subr.mxu0 0.0
    %1090 = vmatpush2.msra.mxu0 0.0
    %1091 = vmatprep.subr.mxu0 0.0
    %1092 = vmatpush2.msra.mxu0 0.0
    %1093 = vmatprep.subr.mxu0 0.0
    %1094 = vmatpush2.msra.mxu0 0.0
    %1095 = vmatprep.subr.mxu0 0.0
    %1096 = vmatpush2.msra.mxu0 0.0
    %1097 = vmatprep.subr.mxu0 0.0
    %1098 = vmatpush2.msra.mxu0 0.0
    %1099 = vmatprep.subr.mxu0 0.0
    %1100 = vmatpush2.msra.mxu0 0.0
    %1101 = vmatprep.subr.mxu0 0.0
    %1102 = vmatpush2.msra.mxu0 0.0
    %1103 = vmatprep.subr.mxu0 0.0
    %1104 = vmatpush2.msra.mxu0 0.0
    %1105 = vmatprep.subr.mxu0 0.0
    %1106 = vmatpush2.msra.mxu0 0.0
    %1107 = vmatprep.subr.mxu0 0.0
    %1108 = vmatpush2.msra.mxu0 0.0
    %1109 = vmatprep.subr.mxu0 0.0
    %1110 = vmatpush2.msra.mxu0 0.0
    %1111 = vmatprep.subr.mxu0 0.0
    %1112 = vmatpush2.msra.mxu0 0.0
    %1113 = vmatprep.subr.mxu0 0.0
    %1114 = vmatpush2.msra.mxu0 0.0
    %1115 = vmatprep.subr.mxu0 0.0
    %1116 = vmatpush2.msra.mxu0 0.0
    %1117 = vmatprep.subr.mxu0 0.0
    %1118 = vmatpush2.msra.mxu0 0.0
    %1119 = vmatprep.subr.mxu0 0.0
    %1120 = vmatpush2.msra.mxu0 0.0
    %1121 = vmatprep.mubr.f32.mxu0 0.0
    %1122 = vmatmul.mubr.f32.gmra.mxu0 %v1055
    %v1123 = vpop.f32.mrf.mxu0
    %v1124 = vadd.f32 %v1053, %v1123
    %v1125 = vpop.f32.mrf.mxu0
    %1126 = vdwg.mxu0
    %vm1127 = vcmp.gt.f32.partialorder %v1124, 0.0
    %v1128 = vsel %vm1127, %v1124, 0.0
    %v1129 = vlaneseq
    %v1130 = vshrl.u32 %v1129, 7
    %v1131 = vsub.s32 0, %v1130
    %v1132 = vrot.slane %v1017, %v1131
    %v1133 = vmul.f32 %v1128, %v1132
    %v1134 = vsel %vm90, %v1133, 0.0
    %1135 = vadd.xlane.f32.xlu0 %v1134
    %v1136 = vpop.xlane.xlu0 %1135
    %v1137 = vlaneseq
    %v1138 = vshrl.u32 %v1137, 7
    %v1139 = vsub.s32 0, %v1138
    %v1140 = vrot.slane %v1019, %v1139
    %v1141 = vadd.f32 %v1136, %v1140
    %v1142 = vsub.f32 %v1141, %v28
    %v1143 = vmul.f32 %v1142, 0.25
    %v1144 = vsel %vm181, %v1143, 0.0
    %v1145 = vrot.slane %v1144, 4
    %v1146 = vadd.f32 %v1144, %v1145
    %v1147 = vrot.slane %v1146, 2
    %v1148 = vadd.f32 %v1146, %v1147
    %v1149 = vrot.slane %v1148, 1
    %v1150 = vadd.f32 %v1148, %v1149
    %1152 = vset.pattern.permute.xlu0 0
    %1153 = vperm.xlu0 %1152, %v1143
    %v1154 = vpop.permute.xlu0 %1153
    %v1156 = vmul.f32 %v1154, %v1128
    %v1157 = vsel %vm90, %v1156, 0.0
    %v1158 = vrot.slane %v1157, 4
    %v1159 = vadd.f32 %v1157, %v1158
    %v1160 = vrot.slane %v1159, 2
    %v1161 = vadd.f32 %v1159, %v1160
    %v1162 = vrot.slane %v1161, 1
    %v1163 = vadd.f32 %v1161, %v1162
    %v1164 = vmul.f32 %v1154, %v1132
    %v1165 = vsel %vm1127, %v1164, 0.0
    %1166 = vxpose.xlu0.b32.start [1/16] %v1049, 128
    %1167 = vxpose.xlu0.b32.cont [2/16] 0.0, 128
    %1168 = vxpose.xlu0.b32.cont [3/16] 0.0, 128
    %1169 = vxpose.xlu0.b32.cont [4/16] 0.0, 128
    %1170 = vxpose.xlu0.b32.cont [5/16] 0.0, 128
    %1171 = vxpose.xlu0.b32.cont [6/16] 0.0, 128
    %1172 = vxpose.xlu0.b32.cont [7/16] 0.0, 128
    %1173 = vxpose.xlu0.b32.cont [8/16] 0.0, 128
    %1174 = vxpose.xlu0.b32.cont [9/16] 0.0, 128
    %1175 = vxpose.xlu0.b32.cont [10/16] 0.0, 128
    %1176 = vxpose.xlu0.b32.cont [11/16] 0.0, 128
    %1177 = vxpose.xlu0.b32.cont [12/16] 0.0, 128
    %1178 = vxpose.xlu0.b32.cont [13/16] 0.0, 128
    %1179 = vxpose.xlu0.b32.cont [14/16] 0.0, 128
    %1180 = vxpose.xlu0.b32.cont [15/16] 0.0, 128
    %1181 = vxpose.xlu0.b32.end [16/16] 0.0, 128
    %v1182 = vpop.trf.xlu0
    %v1183 = vpop.trf.xlu0
    %v1184 = vpop.trf.xlu0
    %v1185 = vpop.trf.xlu0
    %v1186 = vpop.trf.xlu0
    %v1187 = vpop.trf.xlu0
    %v1188 = vpop.trf.xlu0
    %v1189 = vpop.trf.xlu0
    %v1190 = vpop.trf.xlu0
    %v1191 = vpop.trf.xlu0
    %v1192 = vpop.trf.xlu0
    %v1193 = vpop.trf.xlu0
    %v1194 = vpop.trf.xlu0
    %v1195 = vpop.trf.xlu0
    %v1196 = vpop.trf.xlu0
    %v1197 = vpop.trf.xlu0
    %v1199 = vsel %vm236, %v1182, 0
    %v1202 = vsel %vm236, %v1183, 0
    %v1205 = vsel %vm236, %v1184, 0
    %v1208 = vsel %vm236, %v1185, 0
    %1210 = vmatprep.subr.mxu0 0.0
    %1211 = vmatpush1.msra.mxu0 0.0
    %1212 = vmatprep.subr.mxu0 0.0
    %1213 = vmatpush1.msra.mxu0 0.0
    %1214 = vmatprep.subr.mxu0 0.0
    %1215 = vmatpush1.msra.mxu0 0.0
    %1216 = vmatprep.subr.mxu0 0.0
    %1217 = vmatpush1.msra.mxu0 0.0
    %1218 = vmatprep.subr.mxu0 0.0
    %1219 = vmatpush1.msra.mxu0 0.0
    %1220 = vmatprep.subr.mxu0 0.0
    %1221 = vmatpush1.msra.mxu0 0.0
    %1222 = vmatprep.subr.mxu0 0.0
    %1223 = vmatpush1.msra.mxu0 0.0
    %1224 = vmatprep.subr.mxu0 0.0
    %1225 = vmatpush1.msra.mxu0 0.0
    %1226 = vmatprep.subr.mxu0 0.0
    %1227 = vmatpush1.msra.mxu0 0.0
    %1228 = vmatprep.subr.mxu0 0.0
    %1229 = vmatpush1.msra.mxu0 0.0
    %1230 = vmatprep.subr.mxu0 0.0
    %1231 = vmatpush1.msra.mxu0 0.0
    %1232 = vmatprep.subr.mxu0 0.0
    %1233 = vmatpush1.msra.mxu0 0.0
    %1234 = vmatprep.subr.mxu0 0.0
    %1235 = vmatpush1.msra.mxu0 0.0
    %1236 = vmatprep.subr.mxu0 0.0
    %1237 = vmatpush1.msra.mxu0 0.0
    %1238 = vmatprep.subr.mxu0 0.0
    %1239 = vmatpush1.msra.mxu0 0.0
    %1240 = vmatprep.subr.mxu0 0.0
    %1241 = vmatpush1.msra.mxu0 %v1165
    %1242 = vmatprep.subr.mxu0 0.0
    %1243 = vmatpush2.msra.mxu0 0.0
    %1244 = vmatprep.subr.mxu0 0.0
    %1245 = vmatpush2.msra.mxu0 0.0
    %1246 = vmatprep.subr.mxu0 0.0
    %1247 = vmatpush2.msra.mxu0 0.0
    %1248 = vmatprep.subr.mxu0 0.0
    %1249 = vmatpush2.msra.mxu0 0.0
    %1250 = vmatprep.subr.mxu0 0.0
    %1251 = vmatpush2.msra.mxu0 0.0
    %1252 = vmatprep.subr.mxu0 0.0
    %1253 = vmatpush2.msra.mxu0 0.0
    %1254 = vmatprep.subr.mxu0 0.0
    %1255 = vmatpush2.msra.mxu0 0.0
    %1256 = vmatprep.subr.mxu0 0.0
    %1257 = vmatpush2.msra.mxu0 0.0
    %1258 = vmatprep.subr.mxu0 0.0
    %1259 = vmatpush2.msra.mxu0 0.0
    %1260 = vmatprep.subr.mxu0 0.0
    %1261 = vmatpush2.msra.mxu0 0.0
    %1262 = vmatprep.subr.mxu0 0.0
    %1263 = vmatpush2.msra.mxu0 0.0
    %1264 = vmatprep.subr.mxu0 0.0
    %1265 = vmatpush2.msra.mxu0 0.0
    %1266 = vmatprep.subr.mxu0 0.0
    %1267 = vmatpush2.msra.mxu0 0.0
    %1268 = vmatprep.subr.mxu0 0.0
    %1269 = vmatpush2.msra.mxu0 0.0
    %1270 = vmatprep.subr.mxu0 0.0
    %1271 = vmatpush2.msra.mxu0 0.0
    %1272 = vmatprep.subr.mxu0 0.0
    %1273 = vmatpush2.msra.mxu0 0.0
    %1274 = vmatprep.mubr.f32.mxu0 0.0
    %1275 = vmatmul.mubr.f32.gmra.mxu0 %v1199
    %v1276 = vpop.f32.mrf.mxu0
    %v1277 = vadd.f32 0.0, %v1276
    %v1278 = vpop.f32.mrf.mxu0
    %1279 = vmatprep.mubr.f32.mxu0 0.0
    %1280 = vmatmul.mubr.f32.gmra.mxu0 %v1202
    %v1281 = vpop.f32.mrf.mxu0
    %v1282 = vadd.f32 0.0, %v1281
    %v1283 = vpop.f32.mrf.mxu0
    %1284 = vmatprep.mubr.f32.mxu0 0.0
    %1285 = vmatmul.mubr.f32.gmra.mxu0 %v1205
    %v1286 = vpop.f32.mrf.mxu0
    %v1287 = vadd.f32 0.0, %v1286
    %v1288 = vpop.f32.mrf.mxu0
    %1289 = vmatprep.mubr.f32.mxu0 0.0
    %1290 = vmatmul.mubr.f32.gmra.mxu0 %v1208
    %v1291 = vpop.f32.mrf.mxu0
    %v1292 = vadd.f32 0.0, %v1291
    %v1293 = vpop.f32.mrf.mxu0
    %1294 = vdwg.mxu0
    %v1295 = vsel %vm90, %v1165, 0.0
    %v1296 = vrot.slane %v1295, 4
    %v1297 = vadd.f32 %v1295, %v1296
    %v1298 = vrot.slane %v1297, 2
    %v1299 = vadd.f32 %v1297, %v1298
    %v1300 = vrot.slane %v1299, 1
    %v1301 = vadd.f32 %v1299, %v1300
    %v1303 = vsel %vm90, %v1165, 0
    %v1306 = vsel %vm90, %v1010, 0
    %v1309 = vsel %vm90, %v1011, 0
    %v1312 = vsel %vm90, %v1012, 0
    %v1315 = vsel %vm90, %v1013, 0
    %1317 = vmatprep.subr.mxu0 0.0
    %1318 = vmatpush1.xpose.msra.mxu0 0.0
    %1319 = vmatprep.subr.mxu0 0.0
    %1320 = vmatpush1.xpose.msra.mxu0 0.0
    %1321 = vmatprep.subr.mxu0 0.0
    %1322 = vmatpush1.xpose.msra.mxu0 0.0
    %1323 = vmatprep.subr.mxu0 0.0
    %1324 = vmatpush1.xpose.msra.mxu0 0.0
    %1325 = vmatprep.subr.mxu0 0.0
    %1326 = vmatpush1.xpose.msra.mxu0 0.0
    %1327 = vmatprep.subr.mxu0 0.0
    %1328 = vmatpush1.xpose.msra.mxu0 0.0
    %1329 = vmatprep.subr.mxu0 0.0
    %1330 = vmatpush1.xpose.msra.mxu0 0.0
    %1331 = vmatprep.subr.mxu0 0.0
    %1332 = vmatpush1.xpose.msra.mxu0 0.0
    %1333 = vmatprep.subr.mxu0 0.0
    %1334 = vmatpush1.xpose.msra.mxu0 0.0
    %1335 = vmatprep.subr.mxu0 0.0
    %1336 = vmatpush1.xpose.msra.mxu0 0.0
    %1337 = vmatprep.subr.mxu0 0.0
    %1338 = vmatpush1.xpose.msra.mxu0 0.0
    %1339 = vmatprep.subr.mxu0 0.0
    %1340 = vmatpush1.xpose.msra.mxu0 0.0
    %1341 = vmatprep.subr.mxu0 0.0
    %1342 = vmatpush1.xpose.msra.mxu0 %v1315
    %1343 = vmatprep.subr.mxu0 0.0
    %1344 = vmatpush1.xpose.msra.mxu0 %v1312
    %1345 = vmatprep.subr.mxu0 0.0
    %1346 = vmatpush1.xpose.msra.mxu0 %v1309
    %1347 = vmatprep.subr.mxu0 0.0
    %1348 = vmatpush1.xpose.msra.mxu0 %v1306
    %1349 = vmatprep.subr.mxu0 0.0
    %1350 = vmatpush2.xpose.msra.mxu0 0.0
    %1351 = vmatprep.subr.mxu0 0.0
    %1352 = vmatpush2.xpose.msra.mxu0 0.0
    %1353 = vmatprep.subr.mxu0 0.0
    %1354 = vmatpush2.xpose.msra.mxu0 0.0
    %1355 = vmatprep.subr.mxu0 0.0
    %1356 = vmatpush2.xpose.msra.mxu0 0.0
    %1357 = vmatprep.subr.mxu0 0.0
    %1358 = vmatpush2.xpose.msra.mxu0 0.0
    %1359 = vmatprep.subr.mxu0 0.0
    %1360 = vmatpush2.xpose.msra.mxu0 0.0
    %1361 = vmatprep.subr.mxu0 0.0
    %1362 = vmatpush2.xpose.msra.mxu0 0.0
    %1363 = vmatprep.subr.mxu0 0.0
    %1364 = vmatpush2.xpose.msra.mxu0 0.0
    %1365 = vmatprep.subr.mxu0 0.0
    %1366 = vmatpush2.xpose.msra.mxu0 0.0
    %1367 = vmatprep.subr.mxu0 0.0
    %1368 = vmatpush2.xpose.msra.mxu0 0.0
    %1369 = vmatprep.subr.mxu0 0.0
    %1370 = vmatpush2.xpose.msra.mxu0 0.0
    %1371 = vmatprep.subr.mxu0 0.0
    %1372 = vmatpush2.xpose.msra.mxu0 0.0
    %1373 = vmatprep.subr.mxu0 0.0
    %1374 = vmatpush2.xpose.msra.mxu0 0.0
    %1375 = vmatprep.subr.mxu0 0.0
    %1376 = vmatpush2.xpose.msra.mxu0 0.0
    %1377 = vmatprep.subr.mxu0 0.0
    %1378 = vmatpush2.xpose.msra.mxu0 0.0
    %1379 = vmatprep.subr.mxu0 0.0
    %1380 = vmatpush2.xpose.msra.mxu0 0.0
    %1381 = vmatprep.mubr.f32.mxu0 0.0
    %1382 = vmatmul.mubr.f32.gmra.mxu0 %v1303
    %v1383 = vpop.f32.mrf.mxu0
    %v1384 = vadd.f32 0.0, %v1383
    %v1385 = vpop.f32.mrf.mxu0
    %1386 = vdwg.mxu0
    %v1387 = vsel %vm1048, %v1384, 0.0
    %1388 = vmatprep.subr.mxu0 0.0
    %1389 = vmatpush1.msra.mxu0 0.0
    %1390 = vmatprep.subr.mxu0 0.0
    %1391 = vmatpush1.msra.mxu0 0.0
    %1392 = vmatprep.subr.mxu0 0.0
    %1393 = vmatpush1.msra.mxu0 0.0
    %1394 = vmatprep.subr.mxu0 0.0
    %1395 = vmatpush1.msra.mxu0 0.0
    %1396 = vmatprep.subr.mxu0 0.0
    %1397 = vmatpush1.msra.mxu0 0.0
    %1398 = vmatprep.subr.mxu0 0.0
    %1399 = vmatpush1.msra.mxu0 0.0
    %1400 = vmatprep.subr.mxu0 0.0
    %1401 = vmatpush1.msra.mxu0 0.0
    %1402 = vmatprep.subr.mxu0 0.0
    %1403 = vmatpush1.msra.mxu0 0.0
    %1404 = vmatprep.subr.mxu0 0.0
    %1405 = vmatpush1.msra.mxu0 0.0
    %1406 = vmatprep.subr.mxu0 0.0
    %1407 = vmatpush1.msra.mxu0 0.0
    %1408 = vmatprep.subr.mxu0 0.0
    %1409 = vmatpush1.msra.mxu0 0.0
    %1410 = vmatprep.subr.mxu0 0.0
    %1411 = vmatpush1.msra.mxu0 0.0
    %1412 = vmatprep.subr.mxu0 0.0
    %1413 = vmatpush1.msra.mxu0 0.0
    %1414 = vmatprep.subr.mxu0 0.0
    %1415 = vmatpush1.msra.mxu0 0.0
    %1416 = vmatprep.subr.mxu0 0.0
    %1417 = vmatpush1.msra.mxu0 0.0
    %1418 = vmatprep.subr.mxu0 0.0
    %1419 = vmatpush1.msra.mxu0 %v1387
    %1420 = vmatprep.subr.mxu0 0.0
    %1421 = vmatpush2.msra.mxu0 0.0
    %1422 = vmatprep.subr.mxu0 0.0
    %1423 = vmatpush2.msra.mxu0 0.0
    %1424 = vmatprep.subr.mxu0 0.0
    %1425 = vmatpush2.msra.mxu0 0.0
    %1426 = vmatprep.subr.mxu0 0.0
    %1427 = vmatpush2.msra.mxu0 0.0
    %1428 = vmatprep.subr.mxu0 0.0
    %1429 = vmatpush2.msra.mxu0 0.0
    %1430 = vmatprep.subr.mxu0 0.0
    %1431 = vmatpush2.msra.mxu0 0.0
    %1432 = vmatprep.subr.mxu0 0.0
    %1433 = vmatpush2.msra.mxu0 0.0
    %1434 = vmatprep.subr.mxu0 0.0
    %1435 = vmatpush2.msra.mxu0 0.0
    %1436 = vmatprep.subr.mxu0 0.0
    %1437 = vmatpush2.msra.mxu0 0.0
    %1438 = vmatprep.subr.mxu0 0.0
    %1439 = vmatpush2.msra.mxu0 0.0
    %1440 = vmatprep.subr.mxu0 0.0
    %1441 = vmatpush2.msra.mxu0 0.0
    %1442 = vmatprep.subr.mxu0 0.0
    %1443 = vmatpush2.msra.mxu0 0.0
    %1444 = vmatprep.subr.mxu0 0.0
    %1445 = vmatpush2.msra.mxu0 0.0
    %1446 = vmatprep.subr.mxu0 0.0
    %1447 = vmatpush2.msra.mxu0 0.0
    %1448 = vmatprep.subr.mxu0 0.0
    %1449 = vmatpush2.msra.mxu0 0.0
    %1450 = vmatprep.subr.mxu0 0.0
    %1451 = vmatpush2.msra.mxu0 0.0
    %1452 = vmatprep.mubr.f32.mxu0 0.0
    %1453 = vmatmul.mubr.f32.gmra.mxu0 %v460
    %v1454 = vpop.f32.mrf.mxu0
    %v1455 = vadd.f32 0.0, %v1454
    %v1456 = vpop.f32.mrf.mxu0
    %1457 = vdwg.mxu0
    %v1458 = vsel %vm90, %v1387, 0.0
    %v1459 = vrot.slane %v1458, 4
    %v1460 = vadd.f32 %v1458, %v1459
    %v1461 = vrot.slane %v1460, 2
    %v1462 = vadd.f32 %v1460, %v1461
    %v1463 = vrot.slane %v1462, 1
    %v1464 = vadd.f32 %v1462, %v1463
    %v1465 = vmul.f32 %v1455, 0.01
    %v1466 = vsub.f32 %v1003, %v1465
    %v1467 = vmul.f32 %v1464, 0.01
    %v1468 = vsub.f32 %v1005, %v1467
    %v1469 = vmul.f32 %v1277, 0.01
    %v1470 = vmul.f32 %v1282, 0.01
    %v1471 = vmul.f32 %v1287, 0.01
    %v1472 = vmul.f32 %v1292, 0.01
    %v1473 = vsub.f32 %v1010, %v1469
    %v1474 = vsub.f32 %v1011, %v1470
    %v1475 = vsub.f32 %v1012, %v1471
    %v1476 = vsub.f32 %v1013, %v1472
    %v1477 = vmul.f32 %v1301, 0.01
    %v1478 = vsub.f32 %v1015, %v1477
    %v1479 = vmul.f32 %v1163, 0.01
    %v1480 = vsub.f32 %v1017, %v1479
    %v1481 = vmul.f32 %v1150, 0.01
    %v1482 = vsub.f32 %v1019, %v1481
    %1484 = vset.pattern.permute.xlu0 0
    %1485 = vperm.xlu0 %1484, %v27
    %v1486 = vpop.permute.xlu0 %1485
    %v1488 = vlaneseq
    %v1489 = vshrl.u32 %v1488, 7
    %v1490 = vsub.s32 0, %v1489
    %v1491 = vrot.slane %v1466, %v1490
    %v1492 = vmul.f32 %v1486, %v1491
    %1493 = vset.pattern.permute.xlu0 1
    %1494 = vperm.xlu0 %1493, %v27
    %v1495 = vpop.permute.xlu0 %1494
    %v1497 = vlaneseq
    %v1498 = vshrl.u32 %v1497, 7
    %v1499 = vsub.s32 1, %v1498
    %v1500 = vrot.slane %v1466, %v1499
    %v1501 = vmul.f32 %v1495, %v1500
    %v1502 = vadd.f32 %v1492, %v1501
    %1503 = vset.pattern.permute.xlu0 2
    %1504 = vperm.xlu0 %1503, %v27
    %v1505 = vpop.permute.xlu0 %1504
    %v1507 = vlaneseq
    %v1508 = vshrl.u32 %v1507, 7
    %v1509 = vsub.s32 2, %v1508
    %v1510 = vrot.slane %v1466, %v1509
    %v1511 = vmul.f32 %v1505, %v1510
    %v1512 = vadd.f32 %v1502, %v1511
    %1513 = vset.pattern.permute.xlu0 3
    %1514 = vperm.xlu0 %1513, %v27
    %v1515 = vpop.permute.xlu0 %1514
    %v1517 = vlaneseq
    %v1518 = vshrl.u32 %v1517, 7
    %v1519 = vsub.s32 3, %v1518
    %v1520 = vrot.slane %v1466, %v1519
    %v1521 = vmul.f32 %v1515, %v1520
    %v1522 = vadd.f32 %v1512, %v1521
    %v1523 = vlaneseq
    %v1524 = vshrl.u32 %v1523, 7
    %v1525 = vsub.s32 0, %v1524
    %v1526 = vrot.slane %v1468, %v1525
    %v1527 = vadd.f32 %v1522, %v1526
    %vm1528 = vcmp.gt.f32.partialorder %v1527, 0.0
    %v1529 = vsel %vm1528, %v1527, 0.0
    %v1530 = vlaneseq
    %v1531 = vshrl.u32 %v1530, 7
    %v1532 = vsub.s32 0, %v1531
    %v1533 = vrot.slane %v1478, %v1532
    %v1535 = vsel %vm90, %v1529, 0
    %1537 = vmatprep.subr.mxu0 0.0
    %1538 = vmatpush1.msra.mxu0 0.0
    %1539 = vmatprep.subr.mxu0 0.0
    %1540 = vmatpush1.msra.mxu0 0.0
    %1541 = vmatprep.subr.mxu0 0.0
    %1542 = vmatpush1.msra.mxu0 0.0
    %1543 = vmatprep.subr.mxu0 0.0
    %1544 = vmatpush1.msra.mxu0 0.0
    %1545 = vmatprep.subr.mxu0 0.0
    %1546 = vmatpush1.msra.mxu0 0.0
    %1547 = vmatprep.subr.mxu0 0.0
    %1548 = vmatpush1.msra.mxu0 0.0
    %1549 = vmatprep.subr.mxu0 0.0
    %1550 = vmatpush1.msra.mxu0 0.0
    %1551 = vmatprep.subr.mxu0 0.0
    %1552 = vmatpush1.msra.mxu0 0.0
    %1553 = vmatprep.subr.mxu0 0.0
    %1554 = vmatpush1.msra.mxu0 0.0
    %1555 = vmatprep.subr.mxu0 0.0
    %1556 = vmatpush1.msra.mxu0 0.0
    %1557 = vmatprep.subr.mxu0 0.0
    %1558 = vmatpush1.msra.mxu0 0.0
    %1559 = vmatprep.subr.mxu0 0.0
    %1560 = vmatpush1.msra.mxu0 0.0
    %1561 = vmatprep.subr.mxu0 0.0
    %1562 = vmatpush1.msra.mxu0 %v1476
    %1563 = vmatprep.subr.mxu0 0.0
    %1564 = vmatpush1.msra.mxu0 %v1475
    %1565 = vmatprep.subr.mxu0 0.0
    %1566 = vmatpush1.msra.mxu0 %v1474
    %1567 = vmatprep.subr.mxu0 0.0
    %1568 = vmatpush1.msra.mxu0 %v1473
    %1569 = vmatprep.subr.mxu0 0.0
    %1570 = vmatpush2.msra.mxu0 0.0
    %1571 = vmatprep.subr.mxu0 0.0
    %1572 = vmatpush2.msra.mxu0 0.0
    %1573 = vmatprep.subr.mxu0 0.0
    %1574 = vmatpush2.msra.mxu0 0.0
    %1575 = vmatprep.subr.mxu0 0.0
    %1576 = vmatpush2.msra.mxu0 0.0
    %1577 = vmatprep.subr.mxu0 0.0
    %1578 = vmatpush2.msra.mxu0 0.0
    %1579 = vmatprep.subr.mxu0 0.0
    %1580 = vmatpush2.msra.mxu0 0.0
    %1581 = vmatprep.subr.mxu0 0.0
    %1582 = vmatpush2.msra.mxu0 0.0
    %1583 = vmatprep.subr.mxu0 0.0
    %1584 = vmatpush2.msra.mxu0 0.0
    %1585 = vmatprep.subr.mxu0 0.0
    %1586 = vmatpush2.msra.mxu0 0.0
    %1587 = vmatprep.subr.mxu0 0.0
    %1588 = vmatpush2.msra.mxu0 0.0
    %1589 = vmatprep.subr.mxu0 0.0
    %1590 = vmatpush2.msra.mxu0 0.0
    %1591 = vmatprep.subr.mxu0 0.0
    %1592 = vmatpush2.msra.mxu0 0.0
    %1593 = vmatprep.subr.mxu0 0.0
    %1594 = vmatpush2.msra.mxu0 0.0
    %1595 = vmatprep.subr.mxu0 0.0
    %1596 = vmatpush2.msra.mxu0 0.0
    %1597 = vmatprep.subr.mxu0 0.0
    %1598 = vmatpush2.msra.mxu0 0.0
    %1599 = vmatprep.subr.mxu0 0.0
    %1600 = vmatpush2.msra.mxu0 0.0
    %1601 = vmatprep.mubr.f32.mxu0 0.0
    %1602 = vmatmul.mubr.f32.gmra.mxu0 %v1535
    %v1603 = vpop.f32.mrf.mxu0
    %v1604 = vadd.f32 %v1533, %v1603
    %v1605 = vpop.f32.mrf.mxu0
    %1606 = vdwg.mxu0
    %vm1607 = vcmp.gt.f32.partialorder %v1604, 0.0
    %v1608 = vsel %vm1607, %v1604, 0.0
    %v1609 = vlaneseq
    %v1610 = vshrl.u32 %v1609, 7
    %v1611 = vsub.s32 0, %v1610
    %v1612 = vrot.slane %v1480, %v1611
    %v1613 = vmul.f32 %v1608, %v1612
    %v1614 = vsel %vm90, %v1613, 0.0
    %1615 = vadd.xlane.f32.xlu0 %v1614
    %v1616 = vpop.xlane.xlu0 %1615
    %v1617 = vlaneseq
    %v1618 = vshrl.u32 %v1617, 7
    %v1619 = vsub.s32 0, %v1618
    %v1620 = vrot.slane %v1482, %v1619
    %v1621 = vadd.f32 %v1616, %v1620
    %v1622 = vsub.f32 %v1621, %v29
    %v1623 = vmul.f32 %v1622, 0.25
    %v1624 = vsel %vm181, %v1623, 0.0
    %v1625 = vrot.slane %v1624, 4
    %v1626 = vadd.f32 %v1624, %v1625
    %v1627 = vrot.slane %v1626, 2
    %v1628 = vadd.f32 %v1626, %v1627
    %v1629 = vrot.slane %v1628, 1
    %v1630 = vadd.f32 %v1628, %v1629
    %1632 = vset.pattern.permute.xlu0 0
    %1633 = vperm.xlu0 %1632, %v1623
    %v1634 = vpop.permute.xlu0 %1633
    %v1636 = vmul.f32 %v1634, %v1608
    %v1637 = vsel %vm90, %v1636, 0.0
    %v1638 = vrot.slane %v1637, 4
    %v1639 = vadd.f32 %v1637, %v1638
    %v1640 = vrot.slane %v1639, 2
    %v1641 = vadd.f32 %v1639, %v1640
    %v1642 = vrot.slane %v1641, 1
    %v1643 = vadd.f32 %v1641, %v1642
    %v1644 = vmul.f32 %v1634, %v1612
    %v1645 = vsel %vm1607, %v1644, 0.0
    %1646 = vxpose.xlu0.b32.start [1/16] %v1529, 128
    %1647 = vxpose.xlu0.b32.cont [2/16] 0.0, 128
    %1648 = vxpose.xlu0.b32.cont [3/16] 0.0, 128
    %1649 = vxpose.xlu0.b32.cont [4/16] 0.0, 128
    %1650 = vxpose.xlu0.b32.cont [5/16] 0.0, 128
    %1651 = vxpose.xlu0.b32.cont [6/16] 0.0, 128
    %1652 = vxpose.xlu0.b32.cont [7/16] 0.0, 128
    %1653 = vxpose.xlu0.b32.cont [8/16] 0.0, 128
    %1654 = vxpose.xlu0.b32.cont [9/16] 0.0, 128
    %1655 = vxpose.xlu0.b32.cont [10/16] 0.0, 128
    %1656 = vxpose.xlu0.b32.cont [11/16] 0.0, 128
    %1657 = vxpose.xlu0.b32.cont [12/16] 0.0, 128
    %1658 = vxpose.xlu0.b32.cont [13/16] 0.0, 128
    %1659 = vxpose.xlu0.b32.cont [14/16] 0.0, 128
    %1660 = vxpose.xlu0.b32.cont [15/16] 0.0, 128
    %1661 = vxpose.xlu0.b32.end [16/16] 0.0, 128
    %v1662 = vpop.trf.xlu0
    %v1663 = vpop.trf.xlu0
    %v1664 = vpop.trf.xlu0
    %v1665 = vpop.trf.xlu0
    %v1666 = vpop.trf.xlu0
    %v1667 = vpop.trf.xlu0
    %v1668 = vpop.trf.xlu0
    %v1669 = vpop.trf.xlu0
    %v1670 = vpop.trf.xlu0
    %v1671 = vpop.trf.xlu0
    %v1672 = vpop.trf.xlu0
    %v1673 = vpop.trf.xlu0
    %v1674 = vpop.trf.xlu0
    %v1675 = vpop.trf.xlu0
    %v1676 = vpop.trf.xlu0
    %v1677 = vpop.trf.xlu0
    %v1679 = vsel %vm236, %v1662, 0
    %v1682 = vsel %vm236, %v1663, 0
    %v1685 = vsel %vm236, %v1664, 0
    %v1688 = vsel %vm236, %v1665, 0
    %1690 = vmatprep.subr.mxu0 0.0
    %1691 = vmatpush1.msra.mxu0 0.0
    %1692 = vmatprep.subr.mxu0 0.0
    %1693 = vmatpush1.msra.mxu0 0.0
    %1694 = vmatprep.subr.mxu0 0.0
    %1695 = vmatpush1.msra.mxu0 0.0
    %1696 = vmatprep.subr.mxu0 0.0
    %1697 = vmatpush1.msra.mxu0 0.0
    %1698 = vmatprep.subr.mxu0 0.0
    %1699 = vmatpush1.msra.mxu0 0.0
    %1700 = vmatprep.subr.mxu0 0.0
    %1701 = vmatpush1.msra.mxu0 0.0
    %1702 = vmatprep.subr.mxu0 0.0
    %1703 = vmatpush1.msra.mxu0 0.0
    %1704 = vmatprep.subr.mxu0 0.0
    %1705 = vmatpush1.msra.mxu0 0.0
    %1706 = vmatprep.subr.mxu0 0.0
    %1707 = vmatpush1.msra.mxu0 0.0
    %1708 = vmatprep.subr.mxu0 0.0
    %1709 = vmatpush1.msra.mxu0 0.0
    %1710 = vmatprep.subr.mxu0 0.0
    %1711 = vmatpush1.msra.mxu0 0.0
    %1712 = vmatprep.subr.mxu0 0.0
    %1713 = vmatpush1.msra.mxu0 0.0
    %1714 = vmatprep.subr.mxu0 0.0
    %1715 = vmatpush1.msra.mxu0 0.0
    %1716 = vmatprep.subr.mxu0 0.0
    %1717 = vmatpush1.msra.mxu0 0.0
    %1718 = vmatprep.subr.mxu0 0.0
    %1719 = vmatpush1.msra.mxu0 0.0
    %1720 = vmatprep.subr.mxu0 0.0
    %1721 = vmatpush1.msra.mxu0 %v1645
    %1722 = vmatprep.subr.mxu0 0.0
    %1723 = vmatpush2.msra.mxu0 0.0
    %1724 = vmatprep.subr.mxu0 0.0
    %1725 = vmatpush2.msra.mxu0 0.0
    %1726 = vmatprep.subr.mxu0 0.0
    %1727 = vmatpush2.msra.mxu0 0.0
    %1728 = vmatprep.subr.mxu0 0.0
    %1729 = vmatpush2.msra.mxu0 0.0
    %1730 = vmatprep.subr.mxu0 0.0
    %1731 = vmatpush2.msra.mxu0 0.0
    %1732 = vmatprep.subr.mxu0 0.0
    %1733 = vmatpush2.msra.mxu0 0.0
    %1734 = vmatprep.subr.mxu0 0.0
    %1735 = vmatpush2.msra.mxu0 0.0
    %1736 = vmatprep.subr.mxu0 0.0
    %1737 = vmatpush2.msra.mxu0 0.0
    %1738 = vmatprep.subr.mxu0 0.0
    %1739 = vmatpush2.msra.mxu0 0.0
    %1740 = vmatprep.subr.mxu0 0.0
    %1741 = vmatpush2.msra.mxu0 0.0
    %1742 = vmatprep.subr.mxu0 0.0
    %1743 = vmatpush2.msra.mxu0 0.0
    %1744 = vmatprep.subr.mxu0 0.0
    %1745 = vmatpush2.msra.mxu0 0.0
    %1746 = vmatprep.subr.mxu0 0.0
    %1747 = vmatpush2.msra.mxu0 0.0
    %1748 = vmatprep.subr.mxu0 0.0
    %1749 = vmatpush2.msra.mxu0 0.0
    %1750 = vmatprep.subr.mxu0 0.0
    %1751 = vmatpush2.msra.mxu0 0.0
    %1752 = vmatprep.subr.mxu0 0.0
    %1753 = vmatpush2.msra.mxu0 0.0
    %1754 = vmatprep.mubr.f32.mxu0 0.0
    %1755 = vmatmul.mubr.f32.gmra.mxu0 %v1679
    %v1756 = vpop.f32.mrf.mxu0
    %v1757 = vadd.f32 0.0, %v1756
    %v1758 = vpop.f32.mrf.mxu0
    %1759 = vmatprep.mubr.f32.mxu0 0.0
    %1760 = vmatmul.mubr.f32.gmra.mxu0 %v1682
    %v1761 = vpop.f32.mrf.mxu0
    %v1762 = vadd.f32 0.0, %v1761
    %v1763 = vpop.f32.mrf.mxu0
    %1764 = vmatprep.mubr.f32.mxu0 0.0
    %1765 = vmatmul.mubr.f32.gmra.mxu0 %v1685
    %v1766 = vpop.f32.mrf.mxu0
    %v1767 = vadd.f32 0.0, %v1766
    %v1768 = vpop.f32.mrf.mxu0
    %1769 = vmatprep.mubr.f32.mxu0 0.0
    %1770 = vmatmul.mubr.f32.gmra.mxu0 %v1688
    %v1771 = vpop.f32.mrf.mxu0
    %v1772 = vadd.f32 0.0, %v1771
    %v1773 = vpop.f32.mrf.mxu0
    %1774 = vdwg.mxu0
    %v1775 = vsel %vm90, %v1645, 0.0
    %v1776 = vrot.slane %v1775, 4
    %v1777 = vadd.f32 %v1775, %v1776
    %v1778 = vrot.slane %v1777, 2
    %v1779 = vadd.f32 %v1777, %v1778
    %v1780 = vrot.slane %v1779, 1
    %v1781 = vadd.f32 %v1779, %v1780
    %v1783 = vsel %vm90, %v1645, 0
    %v1786 = vsel %vm90, %v1473, 0
    %v1789 = vsel %vm90, %v1474, 0
    %v1792 = vsel %vm90, %v1475, 0
    %v1795 = vsel %vm90, %v1476, 0
    %1797 = vmatprep.subr.mxu0 0.0
    %1798 = vmatpush1.xpose.msra.mxu0 0.0
    %1799 = vmatprep.subr.mxu0 0.0
    %1800 = vmatpush1.xpose.msra.mxu0 0.0
    %1801 = vmatprep.subr.mxu0 0.0
    %1802 = vmatpush1.xpose.msra.mxu0 0.0
    %1803 = vmatprep.subr.mxu0 0.0
    %1804 = vmatpush1.xpose.msra.mxu0 0.0
    %1805 = vmatprep.subr.mxu0 0.0
    %1806 = vmatpush1.xpose.msra.mxu0 0.0
    %1807 = vmatprep.subr.mxu0 0.0
    %1808 = vmatpush1.xpose.msra.mxu0 0.0
    %1809 = vmatprep.subr.mxu0 0.0
    %1810 = vmatpush1.xpose.msra.mxu0 0.0
    %1811 = vmatprep.subr.mxu0 0.0
    %1812 = vmatpush1.xpose.msra.mxu0 0.0
    %1813 = vmatprep.subr.mxu0 0.0
    %1814 = vmatpush1.xpose.msra.mxu0 0.0
    %1815 = vmatprep.subr.mxu0 0.0
    %1816 = vmatpush1.xpose.msra.mxu0 0.0
    %1817 = vmatprep.subr.mxu0 0.0
    %1818 = vmatpush1.xpose.msra.mxu0 0.0
    %1819 = vmatprep.subr.mxu0 0.0
    %1820 = vmatpush1.xpose.msra.mxu0 0.0
    %1821 = vmatprep.subr.mxu0 0.0
    %1822 = vmatpush1.xpose.msra.mxu0 %v1795
    %1823 = vmatprep.subr.mxu0 0.0
    %1824 = vmatpush1.xpose.msra.mxu0 %v1792
    %1825 = vmatprep.subr.mxu0 0.0
    %1826 = vmatpush1.xpose.msra.mxu0 %v1789
    %1827 = vmatprep.subr.mxu0 0.0
    %1828 = vmatpush1.xpose.msra.mxu0 %v1786
    %1829 = vmatprep.subr.mxu0 0.0
    %1830 = vmatpush2.xpose.msra.mxu0 0.0
    %1831 = vmatprep.subr.mxu0 0.0
    %1832 = vmatpush2.xpose.msra.mxu0 0.0
    %1833 = vmatprep.subr.mxu0 0.0
    %1834 = vmatpush2.xpose.msra.mxu0 0.0
    %1835 = vmatprep.subr.mxu0 0.0
    %1836 = vmatpush2.xpose.msra.mxu0 0.0
    %1837 = vmatprep.subr.mxu0 0.0
    %1838 = vmatpush2.xpose.msra.mxu0 0.0
    %1839 = vmatprep.subr.mxu0 0.0
    %1840 = vmatpush2.xpose.msra.mxu0 0.0
    %1841 = vmatprep.subr.mxu0 0.0
    %1842 = vmatpush2.xpose.msra.mxu0 0.0
    %1843 = vmatprep.subr.mxu0 0.0
    %1844 = vmatpush2.xpose.msra.mxu0 0.0
    %1845 = vmatprep.subr.mxu0 0.0
    %1846 = vmatpush2.xpose.msra.mxu0 0.0
    %1847 = vmatprep.subr.mxu0 0.0
    %1848 = vmatpush2.xpose.msra.mxu0 0.0
    %1849 = vmatprep.subr.mxu0 0.0
    %1850 = vmatpush2.xpose.msra.mxu0 0.0
    %1851 = vmatprep.subr.mxu0 0.0
    %1852 = vmatpush2.xpose.msra.mxu0 0.0
    %1853 = vmatprep.subr.mxu0 0.0
    %1854 = vmatpush2.xpose.msra.mxu0 0.0
    %1855 = vmatprep.subr.mxu0 0.0
    %1856 = vmatpush2.xpose.msra.mxu0 0.0
    %1857 = vmatprep.subr.mxu0 0.0
    %1858 = vmatpush2.xpose.msra.mxu0 0.0
    %1859 = vmatprep.subr.mxu0 0.0
    %1860 = vmatpush2.xpose.msra.mxu0 0.0
    %1861 = vmatprep.mubr.f32.mxu0 0.0
    %1862 = vmatmul.mubr.f32.gmra.mxu0 %v1783
    %v1863 = vpop.f32.mrf.mxu0
    %v1864 = vadd.f32 0.0, %v1863
    %v1865 = vpop.f32.mrf.mxu0
    %1866 = vdwg.mxu0
    %v1867 = vsel %vm1528, %v1864, 0.0
    %1868 = vxpose.xlu0.b32.start [1/16] %v27, 128
    %1869 = vxpose.xlu0.b32.cont [2/16] 0.0, 128
    %1870 = vxpose.xlu0.b32.cont [3/16] 0.0, 128
    %1871 = vxpose.xlu0.b32.cont [4/16] 0.0, 128
    %1872 = vxpose.xlu0.b32.cont [5/16] 0.0, 128
    %1873 = vxpose.xlu0.b32.cont [6/16] 0.0, 128
    %1874 = vxpose.xlu0.b32.cont [7/16] 0.0, 128
    %1875 = vxpose.xlu0.b32.cont [8/16] 0.0, 128
    %1876 = vxpose.xlu0.b32.cont [9/16] 0.0, 128
    %1877 = vxpose.xlu0.b32.cont [10/16] 0.0, 128
    %1878 = vxpose.xlu0.b32.cont [11/16] 0.0, 128
    %1879 = vxpose.xlu0.b32.cont [12/16] 0.0, 128
    %1880 = vxpose.xlu0.b32.cont [13/16] 0.0, 128
    %1881 = vxpose.xlu0.b32.cont [14/16] 0.0, 128
    %1882 = vxpose.xlu0.b32.cont [15/16] 0.0, 128
    %1883 = vxpose.xlu0.b32.end [16/16] 0.0, 128
    %v1884 = vpop.trf.xlu0
    %v1885 = vpop.trf.xlu0
    %v1886 = vpop.trf.xlu0
    %v1887 = vpop.trf.xlu0
    %v1888 = vpop.trf.xlu0
    %v1889 = vpop.trf.xlu0
    %v1890 = vpop.trf.xlu0
    %v1891 = vpop.trf.xlu0
    %v1892 = vpop.trf.xlu0
    %v1893 = vpop.trf.xlu0
    %v1894 = vpop.trf.xlu0
    %v1895 = vpop.trf.xlu0
    %v1896 = vpop.trf.xlu0
    %v1897 = vpop.trf.xlu0
    %v1898 = vpop.trf.xlu0
    %v1899 = vpop.trf.xlu0
    %v1901 = vsel %vm236, %v1884, 0
    %1903 = vmatprep.subr.mxu0 0.0
    %1904 = vmatpush1.msra.mxu0 0.0
    %1905 = vmatprep.subr.mxu0 0.0
    %1906 = vmatpush1.msra.mxu0 0.0
    %1907 = vmatprep.subr.mxu0 0.0
    %1908 = vmatpush1.msra.mxu0 0.0
    %1909 = vmatprep.subr.mxu0 0.0
    %1910 = vmatpush1.msra.mxu0 0.0
    %1911 = vmatprep.subr.mxu0 0.0
    %1912 = vmatpush1.msra.mxu0 0.0
    %1913 = vmatprep.subr.mxu0 0.0
    %1914 = vmatpush1.msra.mxu0 0.0
    %1915 = vmatprep.subr.mxu0 0.0
    %1916 = vmatpush1.msra.mxu0 0.0
    %1917 = vmatprep.subr.mxu0 0.0
    %1918 = vmatpush1.msra.mxu0 0.0
    %1919 = vmatprep.subr.mxu0 0.0
    %1920 = vmatpush1.msra.mxu0 0.0
    %1921 = vmatprep.subr.mxu0 0.0
    %1922 = vmatpush1.msra.mxu0 0.0
    %1923 = vmatprep.subr.mxu0 0.0
    %1924 = vmatpush1.msra.mxu0 0.0
    %1925 = vmatprep.subr.mxu0 0.0
    %1926 = vmatpush1.msra.mxu0 0.0
    %1927 = vmatprep.subr.mxu0 0.0
    %1928 = vmatpush1.msra.mxu0 0.0
    %1929 = vmatprep.subr.mxu0 0.0
    %1930 = vmatpush1.msra.mxu0 0.0
    %1931 = vmatprep.subr.mxu0 0.0
    %1932 = vmatpush1.msra.mxu0 0.0
    %1933 = vmatprep.subr.mxu0 0.0
    %1934 = vmatpush1.msra.mxu0 %v1867
    %1935 = vmatprep.subr.mxu0 0.0
    %1936 = vmatpush2.msra.mxu0 0.0
    %1937 = vmatprep.subr.mxu0 0.0
    %1938 = vmatpush2.msra.mxu0 0.0
    %1939 = vmatprep.subr.mxu0 0.0
    %1940 = vmatpush2.msra.mxu0 0.0
    %1941 = vmatprep.subr.mxu0 0.0
    %1942 = vmatpush2.msra.mxu0 0.0
    %1943 = vmatprep.subr.mxu0 0.0
    %1944 = vmatpush2.msra.mxu0 0.0
    %1945 = vmatprep.subr.mxu0 0.0
    %1946 = vmatpush2.msra.mxu0 0.0
    %1947 = vmatprep.subr.mxu0 0.0
    %1948 = vmatpush2.msra.mxu0 0.0
    %1949 = vmatprep.subr.mxu0 0.0
    %1950 = vmatpush2.msra.mxu0 0.0
    %1951 = vmatprep.subr.mxu0 0.0
    %1952 = vmatpush2.msra.mxu0 0.0
    %1953 = vmatprep.subr.mxu0 0.0
    %1954 = vmatpush2.msra.mxu0 0.0
    %1955 = vmatprep.subr.mxu0 0.0
    %1956 = vmatpush2.msra.mxu0 0.0
    %1957 = vmatprep.subr.mxu0 0.0
    %1958 = vmatpush2.msra.mxu0 0.0
    %1959 = vmatprep.subr.mxu0 0.0
    %1960 = vmatpush2.msra.mxu0 0.0
    %1961 = vmatprep.subr.mxu0 0.0
    %1962 = vmatpush2.msra.mxu0 0.0
    %1963 = vmatprep.subr.mxu0 0.0
    %1964 = vmatpush2.msra.mxu0 0.0
    %1965 = vmatprep.subr.mxu0 0.0
    %1966 = vmatpush2.msra.mxu0 0.0
    %1967 = vmatprep.mubr.f32.mxu0 0.0
    %1968 = vmatmul.mubr.f32.gmra.mxu0 %v1901
    %v1969 = vpop.f32.mrf.mxu0
    %v1970 = vadd.f32 0.0, %v1969
    %v1971 = vpop.f32.mrf.mxu0
    %1972 = vdwg.mxu0
    %v1973 = vsel %vm90, %v1867, 0.0
    %v1974 = vrot.slane %v1973, 4
    %v1975 = vadd.f32 %v1973, %v1974
    %v1976 = vrot.slane %v1975, 2
    %v1977 = vadd.f32 %v1975, %v1976
    %v1978 = vrot.slane %v1977, 1
    %v1979 = vadd.f32 %v1977, %v1978
    %v1980 = vmul.f32 %v1622, %v1622
    %v1981 = vsel %vm181, %v1980, 0.0
    %v1982 = vrot.slane %v1981, 4
    %v1983 = vadd.f32 %v1981, %v1982
    %v1984 = vrot.slane %v1983, 2
    %v1985 = vadd.f32 %v1983, %v1984
    %v1986 = vrot.slane %v1985, 1
    %v1987 = vadd.f32 %v1985, %v1986
    %v1988 = vmul.f32 %v1987, 0.125
    %vm1989 = vcmask 0
    %1990 = vst.msk [vmem:[#allocation4] sm:$0x1] %vm1989, %v1988
    %v1991 = vlaneseq
    %v1992 = vshrl.u32 %v1991, 7
    %v1993 = vsub.s32 0, %v1992
    %v1994 = vrot.slane %v1970, %v1993
    %v1995 = vmul.f32 %v42, %v1994
    %v1996 = vlaneseq
    %v1997 = vshrl.u32 %v1996, 7
    %v1998 = vsub.s32 1, %v1997
    %v1999 = vrot.slane %v1970, %v1998
    %v2000 = vmul.f32 %v51, %v1999
    %v2001 = vadd.f32 %v1995, %v2000
    %v2002 = vlaneseq
    %v2003 = vshrl.u32 %v2002, 7
    %v2004 = vsub.s32 2, %v2003
    %v2005 = vrot.slane %v1970, %v2004
    %v2006 = vmul.f32 %v61, %v2005
    %v2007 = vadd.f32 %v2001, %v2006
    %v2008 = vlaneseq
    %v2009 = vshrl.u32 %v2008, 7
    %v2010 = vsub.s32 3, %v2009
    %v2011 = vrot.slane %v1970, %v2010
    %v2012 = vmul.f32 %v71, %v2011
    %v2013 = vadd.f32 %v2007, %v2012
    %v2014 = vadd.f32 %v2013, %v1979
    %v2015 = vsel %vm1048, %v2014, 0.0
    %2016 = vmatprep.subr.mxu0 0.0
    %2017 = vmatpush1.msra.mxu0 0.0
    %2018 = vmatprep.subr.mxu0 0.0
    %2019 = vmatpush1.msra.mxu0 0.0
    %2020 = vmatprep.subr.mxu0 0.0
    %2021 = vmatpush1.msra.mxu0 0.0
    %2022 = vmatprep.subr.mxu0 0.0
    %2023 = vmatpush1.msra.mxu0 0.0
    %2024 = vmatprep.subr.mxu0 0.0
    %2025 = vmatpush1.msra.mxu0 0.0
    %2026 = vmatprep.subr.mxu0 0.0
    %2027 = vmatpush1.msra.mxu0 0.0
    %2028 = vmatprep.subr.mxu0 0.0
    %2029 = vmatpush1.msra.mxu0 0.0
    %2030 = vmatprep.subr.mxu0 0.0
    %2031 = vmatpush1.msra.mxu0 0.0
    %2032 = vmatprep.subr.mxu0 0.0
    %2033 = vmatpush1.msra.mxu0 0.0
    %2034 = vmatprep.subr.mxu0 0.0
    %2035 = vmatpush1.msra.mxu0 0.0
    %2036 = vmatprep.subr.mxu0 0.0
    %2037 = vmatpush1.msra.mxu0 0.0
    %2038 = vmatprep.subr.mxu0 0.0
    %2039 = vmatpush1.msra.mxu0 0.0
    %2040 = vmatprep.subr.mxu0 0.0
    %2041 = vmatpush1.msra.mxu0 %v1772
    %2042 = vmatprep.subr.mxu0 0.0
    %2043 = vmatpush1.msra.mxu0 %v1767
    %2044 = vmatprep.subr.mxu0 0.0
    %2045 = vmatpush1.msra.mxu0 %v1762
    %2046 = vmatprep.subr.mxu0 0.0
    %2047 = vmatpush1.msra.mxu0 %v1757
    %2048 = vmatprep.subr.mxu0 0.0
    %2049 = vmatpush2.msra.mxu0 0.0
    %2050 = vmatprep.subr.mxu0 0.0
    %2051 = vmatpush2.msra.mxu0 0.0
    %2052 = vmatprep.subr.mxu0 0.0
    %2053 = vmatpush2.msra.mxu0 0.0
    %2054 = vmatprep.subr.mxu0 0.0
    %2055 = vmatpush2.msra.mxu0 0.0
    %2056 = vmatprep.subr.mxu0 0.0
    %2057 = vmatpush2.msra.mxu0 0.0
    %2058 = vmatprep.subr.mxu0 0.0
    %2059 = vmatpush2.msra.mxu0 0.0
    %2060 = vmatprep.subr.mxu0 0.0
    %2061 = vmatpush2.msra.mxu0 0.0
    %2062 = vmatprep.subr.mxu0 0.0
    %2063 = vmatpush2.msra.mxu0 0.0
    %2064 = vmatprep.subr.mxu0 0.0
    %2065 = vmatpush2.msra.mxu0 0.0
    %2066 = vmatprep.subr.mxu0 0.0
    %2067 = vmatpush2.msra.mxu0 0.0
    %2068 = vmatprep.subr.mxu0 0.0
    %2069 = vmatpush2.msra.mxu0 0.0
    %2070 = vmatprep.subr.mxu0 0.0
    %2071 = vmatpush2.msra.mxu0 0.0
    %2072 = vmatprep.subr.mxu0 0.0
    %2073 = vmatpush2.msra.mxu0 0.0
    %2074 = vmatprep.subr.mxu0 0.0
    %2075 = vmatpush2.msra.mxu0 0.0
    %2076 = vmatprep.subr.mxu0 0.0
    %2077 = vmatpush2.msra.mxu0 0.0
    %2078 = vmatprep.subr.mxu0 0.0
    %2079 = vmatpush2.msra.mxu0 0.0
    %2080 = vmatprep.mubr.f32.mxu0 0.0
    %2081 = vmatmul.mubr.f32.gmra.mxu0 %v1055
    %v2082 = vpop.f32.mrf.mxu0
    %v2083 = vadd.f32 0.0, %v2082
    %v2084 = vpop.f32.mrf.mxu0
    %2085 = vdwg.mxu0
    %v2087 = vsel %vm90, %v2015, 0
    %2089 = vmatprep.subr.mxu0 0.0
    %2090 = vmatpush1.msra.mxu0 0.0
    %2091 = vmatprep.subr.mxu0 0.0
    %2092 = vmatpush1.msra.mxu0 0.0
    %2093 = vmatprep.subr.mxu0 0.0
    %2094 = vmatpush1.msra.mxu0 0.0
    %2095 = vmatprep.subr.mxu0 0.0
    %2096 = vmatpush1.msra.mxu0 0.0
    %2097 = vmatprep.subr.mxu0 0.0
    %2098 = vmatpush1.msra.mxu0 0.0
    %2099 = vmatprep.subr.mxu0 0.0
    %2100 = vmatpush1.msra.mxu0 0.0
    %2101 = vmatprep.subr.mxu0 0.0
    %2102 = vmatpush1.msra.mxu0 0.0
    %2103 = vmatprep.subr.mxu0 0.0
    %2104 = vmatpush1.msra.mxu0 0.0
    %2105 = vmatprep.subr.mxu0 0.0
    %2106 = vmatpush1.msra.mxu0 0.0
    %2107 = vmatprep.subr.mxu0 0.0
    %2108 = vmatpush1.msra.mxu0 0.0
    %2109 = vmatprep.subr.mxu0 0.0
    %2110 = vmatpush1.msra.mxu0 0.0
    %2111 = vmatprep.subr.mxu0 0.0
    %2112 = vmatpush1.msra.mxu0 0.0
    %2113 = vmatprep.subr.mxu0 0.0
    %2114 = vmatpush1.msra.mxu0 %v1013
    %2115 = vmatprep.subr.mxu0 0.0
    %2116 = vmatpush1.msra.mxu0 %v1012
    %2117 = vmatprep.subr.mxu0 0.0
    %2118 = vmatpush1.msra.mxu0 %v1011
    %2119 = vmatprep.subr.mxu0 0.0
    %2120 = vmatpush1.msra.mxu0 %v1010
    %2121 = vmatprep.subr.mxu0 0.0
    %2122 = vmatpush2.msra.mxu0 0.0
    %2123 = vmatprep.subr.mxu0 0.0
    %2124 = vmatpush2.msra.mxu0 0.0
    %2125 = vmatprep.subr.mxu0 0.0
    %2126 = vmatpush2.msra.mxu0 0.0
    %2127 = vmatprep.subr.mxu0 0.0
    %2128 = vmatpush2.msra.mxu0 0.0
    %2129 = vmatprep.subr.mxu0 0.0
    %2130 = vmatpush2.msra.mxu0 0.0
    %2131 = vmatprep.subr.mxu0 0.0
    %2132 = vmatpush2.msra.mxu0 0.0
    %2133 = vmatprep.subr.mxu0 0.0
    %2134 = vmatpush2.msra.mxu0 0.0
    %2135 = vmatprep.subr.mxu0 0.0
    %2136 = vmatpush2.msra.mxu0 0.0
    %2137 = vmatprep.subr.mxu0 0.0
    %2138 = vmatpush2.msra.mxu0 0.0
    %2139 = vmatprep.subr.mxu0 0.0
    %2140 = vmatpush2.msra.mxu0 0.0
    %2141 = vmatprep.subr.mxu0 0.0
    %2142 = vmatpush2.msra.mxu0 0.0
    %2143 = vmatprep.subr.mxu0 0.0
    %2144 = vmatpush2.msra.mxu0 0.0
    %2145 = vmatprep.subr.mxu0 0.0
    %2146 = vmatpush2.msra.mxu0 0.0
    %2147 = vmatprep.subr.mxu0 0.0
    %2148 = vmatpush2.msra.mxu0 0.0
    %2149 = vmatprep.subr.mxu0 0.0
    %2150 = vmatpush2.msra.mxu0 0.0
    %2151 = vmatprep.subr.mxu0 0.0
    %2152 = vmatpush2.msra.mxu0 0.0
    %2153 = vmatprep.mubr.f32.mxu0 0.0
    %2154 = vmatmul.mubr.f32.gmra.mxu0 %v2087
    %v2155 = vpop.f32.mrf.mxu0
    %v2156 = vadd.f32 %v2083, %v2155
    %v2157 = vpop.f32.mrf.mxu0
    %2158 = vdwg.mxu0
    %v2159 = vadd.f32 %v2156, %v1781
    %v2160 = vsel %vm1127, %v2159, 0.0
    %v2161 = vmul.f32 %v2160, %v1132
    %v2162 = vmul.f32 %v1128, %v1643
    %v2163 = vadd.f32 %v2161, %v2162
    %v2164 = vsel %vm90, %v2163, 0.0
    %2165 = vadd.xlane.f32.xlu0 %v2164
    %v2166 = vpop.xlane.xlu0 %2165
    %v2167 = vadd.f32 %v2166, %v1630
    %v2168 = vmul.f32 %v2167, 0.25
    %v2169 = vsel %vm181, %v2168, 0.0
    %v2170 = vrot.slane %v2169, 4
    %v2171 = vadd.f32 %v2169, %v2170
    %v2172 = vrot.slane %v2171, 2
    %v2173 = vadd.f32 %v2171, %v2172
    %v2174 = vrot.slane %v2173, 1
    %v2175 = vadd.f32 %v2173, %v2174
    %2177 = vset.pattern.permute.xlu0 0
    %2178 = vperm.xlu0 %2177, %v2168
    %v2179 = vpop.permute.xlu0 %2178
    %v2181 = vmul.f32 %v2179, %v1128
    %v2182 = vmul.f32 %v1154, %v2160
    %v2183 = vadd.f32 %v2181, %v2182
    %v2184 = vsel %vm90, %v2183, 0.0
    %v2185 = vrot.slane %v2184, 4
    %v2186 = vadd.f32 %v2184, %v2185
    %v2187 = vrot.slane %v2186, 2
    %v2188 = vadd.f32 %v2186, %v2187
    %v2189 = vrot.slane %v2188, 1
    %v2190 = vadd.f32 %v2188, %v2189
    %v2191 = vmul.f32 %v2179, %v1132
    %v2192 = vmul.f32 %v1154, %v1643
    %v2193 = vadd.f32 %v2191, %v2192
    %v2194 = vsel %vm1127, %v2193, 0.0
    %2195 = vxpose.xlu0.b32.start [1/16] %v2015, 128
    %2196 = vxpose.xlu0.b32.cont [2/16] 0.0, 128
    %2197 = vxpose.xlu0.b32.cont [3/16] 0.0, 128
    %2198 = vxpose.xlu0.b32.cont [4/16] 0.0, 128
    %2199 = vxpose.xlu0.b32.cont [5/16] 0.0, 128
    %2200 = vxpose.xlu0.b32.cont [6/16] 0.0, 128
    %2201 = vxpose.xlu0.b32.cont [7/16] 0.0, 128
    %2202 = vxpose.xlu0.b32.cont [8/16] 0.0, 128
    %2203 = vxpose.xlu0.b32.cont [9/16] 0.0, 128
    %2204 = vxpose.xlu0.b32.cont [10/16] 0.0, 128
    %2205 = vxpose.xlu0.b32.cont [11/16] 0.0, 128
    %2206 = vxpose.xlu0.b32.cont [12/16] 0.0, 128
    %2207 = vxpose.xlu0.b32.cont [13/16] 0.0, 128
    %2208 = vxpose.xlu0.b32.cont [14/16] 0.0, 128
    %2209 = vxpose.xlu0.b32.cont [15/16] 0.0, 128
    %2210 = vxpose.xlu0.b32.end [16/16] 0.0, 128
    %v2211 = vpop.trf.xlu0
    %v2212 = vpop.trf.xlu0
    %v2213 = vpop.trf.xlu0
    %v2214 = vpop.trf.xlu0
    %v2215 = vpop.trf.xlu0
    %v2216 = vpop.trf.xlu0
    %v2217 = vpop.trf.xlu0
    %v2218 = vpop.trf.xlu0
    %v2219 = vpop.trf.xlu0
    %v2220 = vpop.trf.xlu0
    %v2221 = vpop.trf.xlu0
    %v2222 = vpop.trf.xlu0
    %v2223 = vpop.trf.xlu0
    %v2224 = vpop.trf.xlu0
    %v2225 = vpop.trf.xlu0
    %v2226 = vpop.trf.xlu0
    %v2228 = vsel %vm236, %v2211, 0
    %v2231 = vsel %vm236, %v2212, 0
    %v2234 = vsel %vm236, %v2213, 0
    %v2237 = vsel %vm236, %v2214, 0
    %2239 = vmatprep.subr.mxu0 0.0
    %2240 = vmatpush1.msra.mxu0 0.0
    %2241 = vmatprep.subr.mxu0 0.0
    %2242 = vmatpush1.msra.mxu0 0.0
    %2243 = vmatprep.subr.mxu0 0.0
    %2244 = vmatpush1.msra.mxu0 0.0
    %2245 = vmatprep.subr.mxu0 0.0
    %2246 = vmatpush1.msra.mxu0 0.0
    %2247 = vmatprep.subr.mxu0 0.0
    %2248 = vmatpush1.msra.mxu0 0.0
    %2249 = vmatprep.subr.mxu0 0.0
    %2250 = vmatpush1.msra.mxu0 0.0
    %2251 = vmatprep.subr.mxu0 0.0
    %2252 = vmatpush1.msra.mxu0 0.0
    %2253 = vmatprep.subr.mxu0 0.0
    %2254 = vmatpush1.msra.mxu0 0.0
    %2255 = vmatprep.subr.mxu0 0.0
    %2256 = vmatpush1.msra.mxu0 0.0
    %2257 = vmatprep.subr.mxu0 0.0
    %2258 = vmatpush1.msra.mxu0 0.0
    %2259 = vmatprep.subr.mxu0 0.0
    %2260 = vmatpush1.msra.mxu0 0.0
    %2261 = vmatprep.subr.mxu0 0.0
    %2262 = vmatpush1.msra.mxu0 0.0
    %2263 = vmatprep.subr.mxu0 0.0
    %2264 = vmatpush1.msra.mxu0 0.0
    %2265 = vmatprep.subr.mxu0 0.0
    %2266 = vmatpush1.msra.mxu0 0.0
    %2267 = vmatprep.subr.mxu0 0.0
    %2268 = vmatpush1.msra.mxu0 0.0
    %2269 = vmatprep.subr.mxu0 0.0
    %2270 = vmatpush1.msra.mxu0 %v1165
    %2271 = vmatprep.subr.mxu0 0.0
    %2272 = vmatpush2.msra.mxu0 0.0
    %2273 = vmatprep.subr.mxu0 0.0
    %2274 = vmatpush2.msra.mxu0 0.0
    %2275 = vmatprep.subr.mxu0 0.0
    %2276 = vmatpush2.msra.mxu0 0.0
    %2277 = vmatprep.subr.mxu0 0.0
    %2278 = vmatpush2.msra.mxu0 0.0
    %2279 = vmatprep.subr.mxu0 0.0
    %2280 = vmatpush2.msra.mxu0 0.0
    %2281 = vmatprep.subr.mxu0 0.0
    %2282 = vmatpush2.msra.mxu0 0.0
    %2283 = vmatprep.subr.mxu0 0.0
    %2284 = vmatpush2.msra.mxu0 0.0
    %2285 = vmatprep.subr.mxu0 0.0
    %2286 = vmatpush2.msra.mxu0 0.0
    %2287 = vmatprep.subr.mxu0 0.0
    %2288 = vmatpush2.msra.mxu0 0.0
    %2289 = vmatprep.subr.mxu0 0.0
    %2290 = vmatpush2.msra.mxu0 0.0
    %2291 = vmatprep.subr.mxu0 0.0
    %2292 = vmatpush2.msra.mxu0 0.0
    %2293 = vmatprep.subr.mxu0 0.0
    %2294 = vmatpush2.msra.mxu0 0.0
    %2295 = vmatprep.subr.mxu0 0.0
    %2296 = vmatpush2.msra.mxu0 0.0
    %2297 = vmatprep.subr.mxu0 0.0
    %2298 = vmatpush2.msra.mxu0 0.0
    %2299 = vmatprep.subr.mxu0 0.0
    %2300 = vmatpush2.msra.mxu0 0.0
    %2301 = vmatprep.subr.mxu0 0.0
    %2302 = vmatpush2.msra.mxu0 0.0
    %2303 = vmatprep.mubr.f32.mxu0 0.0
    %2304 = vmatmul.mubr.f32.gmra.mxu0 %v2228
    %v2305 = vpop.f32.mrf.mxu0
    %v2306 = vadd.f32 0.0, %v2305
    %v2307 = vpop.f32.mrf.mxu0
    %2308 = vmatprep.mubr.f32.mxu0 0.0
    %2309 = vmatmul.mubr.f32.gmra.mxu0 %v2231
    %v2310 = vpop.f32.mrf.mxu0
    %v2311 = vadd.f32 0.0, %v2310
    %v2312 = vpop.f32.mrf.mxu0
    %2313 = vmatprep.mubr.f32.mxu0 0.0
    %2314 = vmatmul.mubr.f32.gmra.mxu0 %v2234
    %v2315 = vpop.f32.mrf.mxu0
    %v2316 = vadd.f32 0.0, %v2315
    %v2317 = vpop.f32.mrf.mxu0
    %2318 = vmatprep.mubr.f32.mxu0 0.0
    %2319 = vmatmul.mubr.f32.gmra.mxu0 %v2237
    %v2320 = vpop.f32.mrf.mxu0
    %v2321 = vadd.f32 0.0, %v2320
    %v2322 = vpop.f32.mrf.mxu0
    %2323 = vdwg.mxu0
    %2324 = vmatprep.subr.mxu0 0.0
    %2325 = vmatpush1.msra.mxu0 0.0
    %2326 = vmatprep.subr.mxu0 0.0
    %2327 = vmatpush1.msra.mxu0 0.0
    %2328 = vmatprep.subr.mxu0 0.0
    %2329 = vmatpush1.msra.mxu0 0.0
    %2330 = vmatprep.subr.mxu0 0.0
    %2331 = vmatpush1.msra.mxu0 0.0
    %2332 = vmatprep.subr.mxu0 0.0
    %2333 = vmatpush1.msra.mxu0 0.0
    %2334 = vmatprep.subr.mxu0 0.0
    %2335 = vmatpush1.msra.mxu0 0.0
    %2336 = vmatprep.subr.mxu0 0.0
    %2337 = vmatpush1.msra.mxu0 0.0
    %2338 = vmatprep.subr.mxu0 0.0
    %2339 = vmatpush1.msra.mxu0 0.0
    %2340 = vmatprep.subr.mxu0 0.0
    %2341 = vmatpush1.msra.mxu0 0.0
    %2342 = vmatprep.subr.mxu0 0.0
    %2343 = vmatpush1.msra.mxu0 0.0
    %2344 = vmatprep.subr.mxu0 0.0
    %2345 = vmatpush1.msra.mxu0 0.0
    %2346 = vmatprep.subr.mxu0 0.0
    %2347 = vmatpush1.msra.mxu0 0.0
    %2348 = vmatprep.subr.mxu0 0.0
    %2349 = vmatpush1.msra.mxu0 0.0
    %2350 = vmatprep.subr.mxu0 0.0
    %2351 = vmatpush1.msra.mxu0 0.0
    %2352 = vmatprep.subr.mxu0 0.0
    %2353 = vmatpush1.msra.mxu0 0.0
    %2354 = vmatprep.subr.mxu0 0.0
    %2355 = vmatpush1.msra.mxu0 %v2194
    %2356 = vmatprep.subr.mxu0 0.0
    %2357 = vmatpush2.msra.mxu0 0.0
    %2358 = vmatprep.subr.mxu0 0.0
    %2359 = vmatpush2.msra.mxu0 0.0
    %2360 = vmatprep.subr.mxu0 0.0
    %2361 = vmatpush2.msra.mxu0 0.0
    %2362 = vmatprep.subr.mxu0 0.0
    %2363 = vmatpush2.msra.mxu0 0.0
    %2364 = vmatprep.subr.mxu0 0.0
    %2365 = vmatpush2.msra.mxu0 0.0
    %2366 = vmatprep.subr.mxu0 0.0
    %2367 = vmatpush2.msra.mxu0 0.0
    %2368 = vmatprep.subr.mxu0 0.0
    %2369 = vmatpush2.msra.mxu0 0.0
    %2370 = vmatprep.subr.mxu0 0.0
    %2371 = vmatpush2.msra.mxu0 0.0
    %2372 = vmatprep.subr.mxu0 0.0
    %2373 = vmatpush2.msra.mxu0 0.0
    %2374 = vmatprep.subr.mxu0 0.0
    %2375 = vmatpush2.msra.mxu0 0.0
    %2376 = vmatprep.subr.mxu0 0.0
    %2377 = vmatpush2.msra.mxu0 0.0
    %2378 = vmatprep.subr.mxu0 0.0
    %2379 = vmatpush2.msra.mxu0 0.0
    %2380 = vmatprep.subr.mxu0 0.0
    %2381 = vmatpush2.msra.mxu0 0.0
    %2382 = vmatprep.subr.mxu0 0.0
    %2383 = vmatpush2.msra.mxu0 0.0
    %2384 = vmatprep.subr.mxu0 0.0
    %2385 = vmatpush2.msra.mxu0 0.0
    %2386 = vmatprep.subr.mxu0 0.0
    %2387 = vmatpush2.msra.mxu0 0.0
    %2388 = vmatprep.mubr.f32.mxu0 0.0
    %2389 = vmatmul.mubr.f32.gmra.mxu0 %v1199
    %v2390 = vpop.f32.mrf.mxu0
    %v2391 = vadd.f32 %v2306, %v2390
    %v2392 = vpop.f32.mrf.mxu0
    %2393 = vmatprep.mubr.f32.mxu0 0.0
    %2394 = vmatmul.mubr.f32.gmra.mxu0 %v1202
    %v2395 = vpop.f32.mrf.mxu0
    %v2396 = vadd.f32 %v2311, %v2395
    %v2397 = vpop.f32.mrf.mxu0
    %2398 = vmatprep.mubr.f32.mxu0 0.0
    %2399 = vmatmul.mubr.f32.gmra.mxu0 %v1205
    %v2400 = vpop.f32.mrf.mxu0
    %v2401 = vadd.f32 %v2316, %v2400
    %v2402 = vpop.f32.mrf.mxu0
    %2403 = vmatprep.mubr.f32.mxu0 0.0
    %2404 = vmatmul.mubr.f32.gmra.mxu0 %v1208
    %v2405 = vpop.f32.mrf.mxu0
    %v2406 = vadd.f32 %v2321, %v2405
    %v2407 = vpop.f32.mrf.mxu0
    %2408 = vdwg.mxu0
    %v2409 = vsel %vm90, %v2194, 0.0
    %v2410 = vrot.slane %v2409, 4
    %v2411 = vadd.f32 %v2409, %v2410
    %v2412 = vrot.slane %v2411, 2
    %v2413 = vadd.f32 %v2411, %v2412
    %v2414 = vrot.slane %v2413, 1
    %v2415 = vadd.f32 %v2413, %v2414
    %v2417 = vsel %vm90, %v1757, 0
    %v2420 = vsel %vm90, %v1762, 0
    %v2423 = vsel %vm90, %v1767, 0
    %v2426 = vsel %vm90, %v1772, 0
    %2428 = vmatprep.subr.mxu0 0.0
    %2429 = vmatpush1.xpose.msra.mxu0 0.0
    %2430 = vmatprep.subr.mxu0 0.0
    %2431 = vmatpush1.xpose.msra.mxu0 0.0
    %2432 = vmatprep.subr.mxu0 0.0
    %2433 = vmatpush1.xpose.msra.mxu0 0.0
    %2434 = vmatprep.subr.mxu0 0.0
    %2435 = vmatpush1.xpose.msra.mxu0 0.0
    %2436 = vmatprep.subr.mxu0 0.0
    %2437 = vmatpush1.xpose.msra.mxu0 0.0
    %2438 = vmatprep.subr.mxu0 0.0
    %2439 = vmatpush1.xpose.msra.mxu0 0.0
    %2440 = vmatprep.subr.mxu0 0.0
    %2441 = vmatpush1.xpose.msra.mxu0 0.0
    %2442 = vmatprep.subr.mxu0 0.0
    %2443 = vmatpush1.xpose.msra.mxu0 0.0
    %2444 = vmatprep.subr.mxu0 0.0
    %2445 = vmatpush1.xpose.msra.mxu0 0.0
    %2446 = vmatprep.subr.mxu0 0.0
    %2447 = vmatpush1.xpose.msra.mxu0 0.0
    %2448 = vmatprep.subr.mxu0 0.0
    %2449 = vmatpush1.xpose.msra.mxu0 0.0
    %2450 = vmatprep.subr.mxu0 0.0
    %2451 = vmatpush1.xpose.msra.mxu0 0.0
    %2452 = vmatprep.subr.mxu0 0.0
    %2453 = vmatpush1.xpose.msra.mxu0 %v2426
    %2454 = vmatprep.subr.mxu0 0.0
    %2455 = vmatpush1.xpose.msra.mxu0 %v2423
    %2456 = vmatprep.subr.mxu0 0.0
    %2457 = vmatpush1.xpose.msra.mxu0 %v2420
    %2458 = vmatprep.subr.mxu0 0.0
    %2459 = vmatpush1.xpose.msra.mxu0 %v2417
    %2460 = vmatprep.subr.mxu0 0.0
    %2461 = vmatpush2.xpose.msra.mxu0 0.0
    %2462 = vmatprep.subr.mxu0 0.0
    %2463 = vmatpush2.xpose.msra.mxu0 0.0
    %2464 = vmatprep.subr.mxu0 0.0
    %2465 = vmatpush2.xpose.msra.mxu0 0.0
    %2466 = vmatprep.subr.mxu0 0.0
    %2467 = vmatpush2.xpose.msra.mxu0 0.0
    %2468 = vmatprep.subr.mxu0 0.0
    %2469 = vmatpush2.xpose.msra.mxu0 0.0
    %2470 = vmatprep.subr.mxu0 0.0
    %2471 = vmatpush2.xpose.msra.mxu0 0.0
    %2472 = vmatprep.subr.mxu0 0.0
    %2473 = vmatpush2.xpose.msra.mxu0 0.0
    %2474 = vmatprep.subr.mxu0 0.0
    %2475 = vmatpush2.xpose.msra.mxu0 0.0
    %2476 = vmatprep.subr.mxu0 0.0
    %2477 = vmatpush2.xpose.msra.mxu0 0.0
    %2478 = vmatprep.subr.mxu0 0.0
    %2479 = vmatpush2.xpose.msra.mxu0 0.0
    %2480 = vmatprep.subr.mxu0 0.0
    %2481 = vmatpush2.xpose.msra.mxu0 0.0
    %2482 = vmatprep.subr.mxu0 0.0
    %2483 = vmatpush2.xpose.msra.mxu0 0.0
    %2484 = vmatprep.subr.mxu0 0.0
    %2485 = vmatpush2.xpose.msra.mxu0 0.0
    %2486 = vmatprep.subr.mxu0 0.0
    %2487 = vmatpush2.xpose.msra.mxu0 0.0
    %2488 = vmatprep.subr.mxu0 0.0
    %2489 = vmatpush2.xpose.msra.mxu0 0.0
    %2490 = vmatprep.subr.mxu0 0.0
    %2491 = vmatpush2.xpose.msra.mxu0 0.0
    %2492 = vmatprep.mubr.f32.mxu0 0.0
    %2493 = vmatmul.mubr.f32.gmra.mxu0 %v1303
    %v2494 = vpop.f32.mrf.mxu0
    %v2495 = vadd.f32 0.0, %v2494
    %v2496 = vpop.f32.mrf.mxu0
    %2497 = vdwg.mxu0
    %v2499 = vsel %vm90, %v2194, 0
    %2501 = vmatprep.subr.mxu0 0.0
    %2502 = vmatpush1.xpose.msra.mxu0 0.0
    %2503 = vmatprep.subr.mxu0 0.0
    %2504 = vmatpush1.xpose.msra.mxu0 0.0
    %2505 = vmatprep.subr.mxu0 0.0
    %2506 = vmatpush1.xpose.msra.mxu0 0.0
    %2507 = vmatprep.subr.mxu0 0.0
    %2508 = vmatpush1.xpose.msra.mxu0 0.0
    %2509 = vmatprep.subr.mxu0 0.0
    %2510 = vmatpush1.xpose.msra.mxu0 0.0
    %2511 = vmatprep.subr.mxu0 0.0
    %2512 = vmatpush1.xpose.msra.mxu0 0.0
    %2513 = vmatprep.subr.mxu0 0.0
    %2514 = vmatpush1.xpose.msra.mxu0 0.0
    %2515 = vmatprep.subr.mxu0 0.0
    %2516 = vmatpush1.xpose.msra.mxu0 0.0
    %2517 = vmatprep.subr.mxu0 0.0
    %2518 = vmatpush1.xpose.msra.mxu0 0.0
    %2519 = vmatprep.subr.mxu0 0.0
    %2520 = vmatpush1.xpose.msra.mxu0 0.0
    %2521 = vmatprep.subr.mxu0 0.0
    %2522 = vmatpush1.xpose.msra.mxu0 0.0
    %2523 = vmatprep.subr.mxu0 0.0
    %2524 = vmatpush1.xpose.msra.mxu0 0.0
    %2525 = vmatprep.subr.mxu0 0.0
    %2526 = vmatpush1.xpose.msra.mxu0 %v1315
    %2527 = vmatprep.subr.mxu0 0.0
    %2528 = vmatpush1.xpose.msra.mxu0 %v1312
    %2529 = vmatprep.subr.mxu0 0.0
    %2530 = vmatpush1.xpose.msra.mxu0 %v1309
    %2531 = vmatprep.subr.mxu0 0.0
    %2532 = vmatpush1.xpose.msra.mxu0 %v1306
    %2533 = vmatprep.subr.mxu0 0.0
    %2534 = vmatpush2.xpose.msra.mxu0 0.0
    %2535 = vmatprep.subr.mxu0 0.0
    %2536 = vmatpush2.xpose.msra.mxu0 0.0
    %2537 = vmatprep.subr.mxu0 0.0
    %2538 = vmatpush2.xpose.msra.mxu0 0.0
    %2539 = vmatprep.subr.mxu0 0.0
    %2540 = vmatpush2.xpose.msra.mxu0 0.0
    %2541 = vmatprep.subr.mxu0 0.0
    %2542 = vmatpush2.xpose.msra.mxu0 0.0
    %2543 = vmatprep.subr.mxu0 0.0
    %2544 = vmatpush2.xpose.msra.mxu0 0.0
    %2545 = vmatprep.subr.mxu0 0.0
    %2546 = vmatpush2.xpose.msra.mxu0 0.0
    %2547 = vmatprep.subr.mxu0 0.0
    %2548 = vmatpush2.xpose.msra.mxu0 0.0
    %2549 = vmatprep.subr.mxu0 0.0
    %2550 = vmatpush2.xpose.msra.mxu0 0.0
    %2551 = vmatprep.subr.mxu0 0.0
    %2552 = vmatpush2.xpose.msra.mxu0 0.0
    %2553 = vmatprep.subr.mxu0 0.0
    %2554 = vmatpush2.xpose.msra.mxu0 0.0
    %2555 = vmatprep.subr.mxu0 0.0
    %2556 = vmatpush2.xpose.msra.mxu0 0.0
    %2557 = vmatprep.subr.mxu0 0.0
    %2558 = vmatpush2.xpose.msra.mxu0 0.0
    %2559 = vmatprep.subr.mxu0 0.0
    %2560 = vmatpush2.xpose.msra.mxu0 0.0
    %2561 = vmatprep.subr.mxu0 0.0
    %2562 = vmatpush2.xpose.msra.mxu0 0.0
    %2563 = vmatprep.subr.mxu0 0.0
    %2564 = vmatpush2.xpose.msra.mxu0 0.0
    %2565 = vmatprep.mubr.f32.mxu0 0.0
    %2566 = vmatmul.mubr.f32.gmra.mxu0 %v2499
    %v2567 = vpop.f32.mrf.mxu0
    %v2568 = vadd.f32 %v2495, %v2567
    %v2569 = vpop.f32.mrf.mxu0
    %2570 = vdwg.mxu0
    %v2571 = vsel %vm1048, %v2568, 0.0
    %2572 = vmatprep.subr.mxu0 0.0
    %2573 = vmatpush1.msra.mxu0 0.0
    %2574 = vmatprep.subr.mxu0 0.0
    %2575 = vmatpush1.msra.mxu0 0.0
    %2576 = vmatprep.subr.mxu0 0.0
    %2577 = vmatpush1.msra.mxu0 0.0
    %2578 = vmatprep.subr.mxu0 0.0
    %2579 = vmatpush1.msra.mxu0 0.0
    %2580 = vmatprep.subr.mxu0 0.0
    %2581 = vmatpush1.msra.mxu0 0.0
    %2582 = vmatprep.subr.mxu0 0.0
    %2583 = vmatpush1.msra.mxu0 0.0
    %2584 = vmatprep.subr.mxu0 0.0
    %2585 = vmatpush1.msra.mxu0 0.0
    %2586 = vmatprep.subr.mxu0 0.0
    %2587 = vmatpush1.msra.mxu0 0.0
    %2588 = vmatprep.subr.mxu0 0.0
    %2589 = vmatpush1.msra.mxu0 0.0
    %2590 = vmatprep.subr.mxu0 0.0
    %2591 = vmatpush1.msra.mxu0 0.0
    %2592 = vmatprep.subr.mxu0 0.0
    %2593 = vmatpush1.msra.mxu0 0.0
    %2594 = vmatprep.subr.mxu0 0.0
    %2595 = vmatpush1.msra.mxu0 0.0
    %2596 = vmatprep.subr.mxu0 0.0
    %2597 = vmatpush1.msra.mxu0 0.0
    %2598 = vmatprep.subr.mxu0 0.0
    %2599 = vmatpush1.msra.mxu0 0.0
    %2600 = vmatprep.subr.mxu0 0.0
    %2601 = vmatpush1.msra.mxu0 0.0
    %2602 = vmatprep.subr.mxu0 0.0
    %2603 = vmatpush1.msra.mxu0 %v2571
    %2604 = vmatprep.subr.mxu0 0.0
    %2605 = vmatpush2.msra.mxu0 0.0
    %2606 = vmatprep.subr.mxu0 0.0
    %2607 = vmatpush2.msra.mxu0 0.0
    %2608 = vmatprep.subr.mxu0 0.0
    %2609 = vmatpush2.msra.mxu0 0.0
    %2610 = vmatprep.subr.mxu0 0.0
    %2611 = vmatpush2.msra.mxu0 0.0
    %2612 = vmatprep.subr.mxu0 0.0
    %2613 = vmatpush2.msra.mxu0 0.0
    %2614 = vmatprep.subr.mxu0 0.0
    %2615 = vmatpush2.msra.mxu0 0.0
    %2616 = vmatprep.subr.mxu0 0.0
    %2617 = vmatpush2.msra.mxu0 0.0
    %2618 = vmatprep.subr.mxu0 0.0
    %2619 = vmatpush2.msra.mxu0 0.0
    %2620 = vmatprep.subr.mxu0 0.0
    %2621 = vmatpush2.msra.mxu0 0.0
    %2622 = vmatprep.subr.mxu0 0.0
    %2623 = vmatpush2.msra.mxu0 0.0
    %2624 = vmatprep.subr.mxu0 0.0
    %2625 = vmatpush2.msra.mxu0 0.0
    %2626 = vmatprep.subr.mxu0 0.0
    %2627 = vmatpush2.msra.mxu0 0.0
    %2628 = vmatprep.subr.mxu0 0.0
    %2629 = vmatpush2.msra.mxu0 0.0
    %2630 = vmatprep.subr.mxu0 0.0
    %2631 = vmatpush2.msra.mxu0 0.0
    %2632 = vmatprep.subr.mxu0 0.0
    %2633 = vmatpush2.msra.mxu0 0.0
    %2634 = vmatprep.subr.mxu0 0.0
    %2635 = vmatpush2.msra.mxu0 0.0
    %2636 = vmatprep.mubr.f32.mxu0 0.0
    %2637 = vmatmul.mubr.f32.gmra.mxu0 %v460
    %v2638 = vpop.f32.mrf.mxu0
    %v2639 = vadd.f32 0.0, %v2638
    %v2640 = vpop.f32.mrf.mxu0
    %2641 = vdwg.mxu0
    %v2642 = vsel %vm90, %v2571, 0.0
    %v2643 = vrot.slane %v2642, 4
    %v2644 = vadd.f32 %v2642, %v2643
    %v2645 = vrot.slane %v2644, 2
    %v2646 = vadd.f32 %v2644, %v2645
    %v2647 = vrot.slane %v2646, 1
    %v2648 = vadd.f32 %v2646, %v2647
    %v2649 = vmul.f32 %v2639, 0.01
    %v2650 = vsub.f32 %v1970, %v2649
    %v2651 = vmul.f32 %v2648, 0.01
    %v2652 = vsub.f32 %v1979, %v2651
    %v2653 = vmul.f32 %v2391, 0.01
    %v2654 = vmul.f32 %v2396, 0.01
    %v2655 = vmul.f32 %v2401, 0.01
    %v2656 = vmul.f32 %v2406, 0.01
    %v2657 = vsub.f32 %v1757, %v2653
    %v2658 = vsub.f32 %v1762, %v2654
    %v2659 = vsub.f32 %v1767, %v2655
    %v2660 = vsub.f32 %v1772, %v2656
    %v2661 = vmul.f32 %v2415, 0.01
    %v2662 = vsub.f32 %v1781, %v2661
    %v2663 = vmul.f32 %v2190, 0.01
    %v2664 = vsub.f32 %v1643, %v2663
    %v2665 = vmul.f32 %v2175, 0.01
    %v2666 = vsub.f32 %v1630, %v2665
    %v2667 = vlaneseq
    %v2668 = vshrl.u32 %v2667, 7
    %v2669 = vsub.s32 0, %v2668
    %v2670 = vrot.slane %v2650, %v2669
    %v2671 = vmul.f32 %v42, %v2670
    %v2672 = vlaneseq
    %v2673 = vshrl.u32 %v2672, 7
    %v2674 = vsub.s32 1, %v2673
    %v2675 = vrot.slane %v2650, %v2674
    %v2676 = vmul.f32 %v51, %v2675
    %v2677 = vadd.f32 %v2671, %v2676
    %v2678 = vlaneseq
    %v2679 = vshrl.u32 %v2678, 7
    %v2680 = vsub.s32 2, %v2679
    %v2681 = vrot.slane %v2650, %v2680
    %v2682 = vmul.f32 %v61, %v2681
    %v2683 = vadd.f32 %v2677, %v2682
    %v2684 = vlaneseq
    %v2685 = vshrl.u32 %v2684, 7
    %v2686 = vsub.s32 3, %v2685
    %v2687 = vrot.slane %v2650, %v2686
    %v2688 = vmul.f32 %v71, %v2687
    %v2689 = vadd.f32 %v2683, %v2688
    %v2690 = vadd.f32 %v2689, %v2652
    %v2691 = vsel %vm585, %v2690, 0.0
    %2692 = vmatprep.subr.mxu0 0.0
    %2693 = vmatpush1.msra.mxu0 0.0
    %2694 = vmatprep.subr.mxu0 0.0
    %2695 = vmatpush1.msra.mxu0 0.0
    %2696 = vmatprep.subr.mxu0 0.0
    %2697 = vmatpush1.msra.mxu0 0.0
    %2698 = vmatprep.subr.mxu0 0.0
    %2699 = vmatpush1.msra.mxu0 0.0
    %2700 = vmatprep.subr.mxu0 0.0
    %2701 = vmatpush1.msra.mxu0 0.0
    %2702 = vmatprep.subr.mxu0 0.0
    %2703 = vmatpush1.msra.mxu0 0.0
    %2704 = vmatprep.subr.mxu0 0.0
    %2705 = vmatpush1.msra.mxu0 0.0
    %2706 = vmatprep.subr.mxu0 0.0
    %2707 = vmatpush1.msra.mxu0 0.0
    %2708 = vmatprep.subr.mxu0 0.0
    %2709 = vmatpush1.msra.mxu0 0.0
    %2710 = vmatprep.subr.mxu0 0.0
    %2711 = vmatpush1.msra.mxu0 0.0
    %2712 = vmatprep.subr.mxu0 0.0
    %2713 = vmatpush1.msra.mxu0 0.0
    %2714 = vmatprep.subr.mxu0 0.0
    %2715 = vmatpush1.msra.mxu0 0.0
    %2716 = vmatprep.subr.mxu0 0.0
    %2717 = vmatpush1.msra.mxu0 %v2660
    %2718 = vmatprep.subr.mxu0 0.0
    %2719 = vmatpush1.msra.mxu0 %v2659
    %2720 = vmatprep.subr.mxu0 0.0
    %2721 = vmatpush1.msra.mxu0 %v2658
    %2722 = vmatprep.subr.mxu0 0.0
    %2723 = vmatpush1.msra.mxu0 %v2657
    %2724 = vmatprep.subr.mxu0 0.0
    %2725 = vmatpush2.msra.mxu0 0.0
    %2726 = vmatprep.subr.mxu0 0.0
    %2727 = vmatpush2.msra.mxu0 0.0
    %2728 = vmatprep.subr.mxu0 0.0
    %2729 = vmatpush2.msra.mxu0 0.0
    %2730 = vmatprep.subr.mxu0 0.0
    %2731 = vmatpush2.msra.mxu0 0.0
    %2732 = vmatprep.subr.mxu0 0.0
    %2733 = vmatpush2.msra.mxu0 0.0
    %2734 = vmatprep.subr.mxu0 0.0
    %2735 = vmatpush2.msra.mxu0 0.0
    %2736 = vmatprep.subr.mxu0 0.0
    %2737 = vmatpush2.msra.mxu0 0.0
    %2738 = vmatprep.subr.mxu0 0.0
    %2739 = vmatpush2.msra.mxu0 0.0
    %2740 = vmatprep.subr.mxu0 0.0
    %2741 = vmatpush2.msra.mxu0 0.0
    %2742 = vmatprep.subr.mxu0 0.0
    %2743 = vmatpush2.msra.mxu0 0.0
    %2744 = vmatprep.subr.mxu0 0.0
    %2745 = vmatpush2.msra.mxu0 0.0
    %2746 = vmatprep.subr.mxu0 0.0
    %2747 = vmatpush2.msra.mxu0 0.0
    %2748 = vmatprep.subr.mxu0 0.0
    %2749 = vmatpush2.msra.mxu0 0.0
    %2750 = vmatprep.subr.mxu0 0.0
    %2751 = vmatpush2.msra.mxu0 0.0
    %2752 = vmatprep.subr.mxu0 0.0
    %2753 = vmatpush2.msra.mxu0 0.0
    %2754 = vmatprep.subr.mxu0 0.0
    %2755 = vmatpush2.msra.mxu0 0.0
    %2756 = vmatprep.mubr.f32.mxu0 0.0
    %2757 = vmatmul.mubr.f32.gmra.mxu0 %v592
    %v2758 = vpop.f32.mrf.mxu0
    %v2759 = vadd.f32 0.0, %v2758
    %v2760 = vpop.f32.mrf.mxu0
    %2761 = vdwg.mxu0
    %v2763 = vsel %vm90, %v2691, 0
    %2765 = vmatprep.subr.mxu0 0.0
    %2766 = vmatpush1.msra.mxu0 0.0
    %2767 = vmatprep.subr.mxu0 0.0
    %2768 = vmatpush1.msra.mxu0 0.0
    %2769 = vmatprep.subr.mxu0 0.0
    %2770 = vmatpush1.msra.mxu0 0.0
    %2771 = vmatprep.subr.mxu0 0.0
    %2772 = vmatpush1.msra.mxu0 0.0
    %2773 = vmatprep.subr.mxu0 0.0
    %2774 = vmatpush1.msra.mxu0 0.0
    %2775 = vmatprep.subr.mxu0 0.0
    %2776 = vmatpush1.msra.mxu0 0.0
    %2777 = vmatprep.subr.mxu0 0.0
    %2778 = vmatpush1.msra.mxu0 0.0
    %2779 = vmatprep.subr.mxu0 0.0
    %2780 = vmatpush1.msra.mxu0 0.0
    %2781 = vmatprep.subr.mxu0 0.0
    %2782 = vmatpush1.msra.mxu0 0.0
    %2783 = vmatprep.subr.mxu0 0.0
    %2784 = vmatpush1.msra.mxu0 0.0
    %2785 = vmatprep.subr.mxu0 0.0
    %2786 = vmatpush1.msra.mxu0 0.0
    %2787 = vmatprep.subr.mxu0 0.0
    %2788 = vmatpush1.msra.mxu0 0.0
    %2789 = vmatprep.subr.mxu0 0.0
    %2790 = vmatpush1.msra.mxu0 %v550
    %2791 = vmatprep.subr.mxu0 0.0
    %2792 = vmatpush1.msra.mxu0 %v549
    %2793 = vmatprep.subr.mxu0 0.0
    %2794 = vmatpush1.msra.mxu0 %v548
    %2795 = vmatprep.subr.mxu0 0.0
    %2796 = vmatpush1.msra.mxu0 %v547
    %2797 = vmatprep.subr.mxu0 0.0
    %2798 = vmatpush2.msra.mxu0 0.0
    %2799 = vmatprep.subr.mxu0 0.0
    %2800 = vmatpush2.msra.mxu0 0.0
    %2801 = vmatprep.subr.mxu0 0.0
    %2802 = vmatpush2.msra.mxu0 0.0
    %2803 = vmatprep.subr.mxu0 0.0
    %2804 = vmatpush2.msra.mxu0 0.0
    %2805 = vmatprep.subr.mxu0 0.0
    %2806 = vmatpush2.msra.mxu0 0.0
    %2807 = vmatprep.subr.mxu0 0.0
    %2808 = vmatpush2.msra.mxu0 0.0
    %2809 = vmatprep.subr.mxu0 0.0
    %2810 = vmatpush2.msra.mxu0 0.0
    %2811 = vmatprep.subr.mxu0 0.0
    %2812 = vmatpush2.msra.mxu0 0.0
    %2813 = vmatprep.subr.mxu0 0.0
    %2814 = vmatpush2.msra.mxu0 0.0
    %2815 = vmatprep.subr.mxu0 0.0
    %2816 = vmatpush2.msra.mxu0 0.0
    %2817 = vmatprep.subr.mxu0 0.0
    %2818 = vmatpush2.msra.mxu0 0.0
    %2819 = vmatprep.subr.mxu0 0.0
    %2820 = vmatpush2.msra.mxu0 0.0
    %2821 = vmatprep.subr.mxu0 0.0
    %2822 = vmatpush2.msra.mxu0 0.0
    %2823 = vmatprep.subr.mxu0 0.0
    %2824 = vmatpush2.msra.mxu0 0.0
    %2825 = vmatprep.subr.mxu0 0.0
    %2826 = vmatpush2.msra.mxu0 0.0
    %2827 = vmatprep.subr.mxu0 0.0
    %2828 = vmatpush2.msra.mxu0 0.0
    %2829 = vmatprep.mubr.f32.mxu0 0.0
    %2830 = vmatmul.mubr.f32.gmra.mxu0 %v2763
    %v2831 = vpop.f32.mrf.mxu0
    %v2832 = vadd.f32 %v2759, %v2831
    %v2833 = vpop.f32.mrf.mxu0
    %2834 = vdwg.mxu0
    %v2835 = vadd.f32 %v2832, %v2662
    %v2836 = vsel %vm664, %v2835, 0.0
    %v2837 = vmul.f32 %v2836, %v669
    %v2838 = vmul.f32 %v665, %v2664
    %v2839 = vadd.f32 %v2837, %v2838
    %v2840 = vsel %vm90, %v2839, 0.0
    %2841 = vadd.xlane.f32.xlu0 %v2840
    %v2842 = vpop.xlane.xlu0 %2841
    %v2843 = vadd.f32 %v2842, %v2666
    %v2844 = vmul.f32 %v2843, 0.25
    %v2845 = vsel %vm181, %v2844, 0.0
    %v2846 = vrot.slane %v2845, 4
    %v2847 = vadd.f32 %v2845, %v2846
    %v2848 = vrot.slane %v2847, 2
    %v2849 = vadd.f32 %v2847, %v2848
    %v2850 = vrot.slane %v2849, 1
    %v2851 = vadd.f32 %v2849, %v2850
    %2853 = vset.pattern.permute.xlu0 0
    %2854 = vperm.xlu0 %2853, %v2844
    %v2855 = vpop.permute.xlu0 %2854
    %v2857 = vmul.f32 %v2855, %v665
    %v2858 = vmul.f32 %v691, %v2836
    %v2859 = vadd.f32 %v2857, %v2858
    %v2860 = vsel %vm90, %v2859, 0.0
    %v2861 = vrot.slane %v2860, 4
    %v2862 = vadd.f32 %v2860, %v2861
    %v2863 = vrot.slane %v2862, 2
    %v2864 = vadd.f32 %v2862, %v2863
    %v2865 = vrot.slane %v2864, 1
    %v2866 = vadd.f32 %v2864, %v2865
    %v2867 = vmul.f32 %v2855, %v669
    %v2868 = vmul.f32 %v691, %v2664
    %v2869 = vadd.f32 %v2867, %v2868
    %v2870 = vsel %vm664, %v2869, 0.0
    %2871 = vxpose.xlu0.b32.start [1/16] %v2691, 128
    %2872 = vxpose.xlu0.b32.cont [2/16] 0.0, 128
    %2873 = vxpose.xlu0.b32.cont [3/16] 0.0, 128
    %2874 = vxpose.xlu0.b32.cont [4/16] 0.0, 128
    %2875 = vxpose.xlu0.b32.cont [5/16] 0.0, 128
    %2876 = vxpose.xlu0.b32.cont [6/16] 0.0, 128
    %2877 = vxpose.xlu0.b32.cont [7/16] 0.0, 128
    %2878 = vxpose.xlu0.b32.cont [8/16] 0.0, 128
    %2879 = vxpose.xlu0.b32.cont [9/16] 0.0, 128
    %2880 = vxpose.xlu0.b32.cont [10/16] 0.0, 128
    %2881 = vxpose.xlu0.b32.cont [11/16] 0.0, 128
    %2882 = vxpose.xlu0.b32.cont [12/16] 0.0, 128
    %2883 = vxpose.xlu0.b32.cont [13/16] 0.0, 128
    %2884 = vxpose.xlu0.b32.cont [14/16] 0.0, 128
    %2885 = vxpose.xlu0.b32.cont [15/16] 0.0, 128
    %2886 = vxpose.xlu0.b32.end [16/16] 0.0, 128
    %v2887 = vpop.trf.xlu0
    %v2888 = vpop.trf.xlu0
    %v2889 = vpop.trf.xlu0
    %v2890 = vpop.trf.xlu0
    %v2891 = vpop.trf.xlu0
    %v2892 = vpop.trf.xlu0
    %v2893 = vpop.trf.xlu0
    %v2894 = vpop.trf.xlu0
    %v2895 = vpop.trf.xlu0
    %v2896 = vpop.trf.xlu0
    %v2897 = vpop.trf.xlu0
    %v2898 = vpop.trf.xlu0
    %v2899 = vpop.trf.xlu0
    %v2900 = vpop.trf.xlu0
    %v2901 = vpop.trf.xlu0
    %v2902 = vpop.trf.xlu0
    %v2904 = vsel %vm236, %v2887, 0
    %v2907 = vsel %vm236, %v2888, 0
    %v2910 = vsel %vm236, %v2889, 0
    %v2913 = vsel %vm236, %v2890, 0
    %2915 = vmatprep.subr.mxu0 0.0
    %2916 = vmatpush1.msra.mxu0 0.0
    %2917 = vmatprep.subr.mxu0 0.0
    %2918 = vmatpush1.msra.mxu0 0.0
    %2919 = vmatprep.subr.mxu0 0.0
    %2920 = vmatpush1.msra.mxu0 0.0
    %2921 = vmatprep.subr.mxu0 0.0
    %2922 = vmatpush1.msra.mxu0 0.0
    %2923 = vmatprep.subr.mxu0 0.0
    %2924 = vmatpush1.msra.mxu0 0.0
    %2925 = vmatprep.subr.mxu0 0.0
    %2926 = vmatpush1.msra.mxu0 0.0
    %2927 = vmatprep.subr.mxu0 0.0
    %2928 = vmatpush1.msra.mxu0 0.0
    %2929 = vmatprep.subr.mxu0 0.0
    %2930 = vmatpush1.msra.mxu0 0.0
    %2931 = vmatprep.subr.mxu0 0.0
    %2932 = vmatpush1.msra.mxu0 0.0
    %2933 = vmatprep.subr.mxu0 0.0
    %2934 = vmatpush1.msra.mxu0 0.0
    %2935 = vmatprep.subr.mxu0 0.0
    %2936 = vmatpush1.msra.mxu0 0.0
    %2937 = vmatprep.subr.mxu0 0.0
    %2938 = vmatpush1.msra.mxu0 0.0
    %2939 = vmatprep.subr.mxu0 0.0
    %2940 = vmatpush1.msra.mxu0 0.0
    %2941 = vmatprep.subr.mxu0 0.0
    %2942 = vmatpush1.msra.mxu0 0.0
    %2943 = vmatprep.subr.mxu0 0.0
    %2944 = vmatpush1.msra.mxu0 0.0
    %2945 = vmatprep.subr.mxu0 0.0
    %2946 = vmatpush1.msra.mxu0 %v702
    %2947 = vmatprep.subr.mxu0 0.0
    %2948 = vmatpush2.msra.mxu0 0.0
    %2949 = vmatprep.subr.mxu0 0.0
    %2950 = vmatpush2.msra.mxu0 0.0
    %2951 = vmatprep.subr.mxu0 0.0
    %2952 = vmatpush2.msra.mxu0 0.0
    %2953 = vmatprep.subr.mxu0 0.0
    %2954 = vmatpush2.msra.mxu0 0.0
    %2955 = vmatprep.subr.mxu0 0.0
    %2956 = vmatpush2.msra.mxu0 0.0
    %2957 = vmatprep.subr.mxu0 0.0
    %2958 = vmatpush2.msra.mxu0 0.0
    %2959 = vmatprep.subr.mxu0 0.0
    %2960 = vmatpush2.msra.mxu0 0.0
    %2961 = vmatprep.subr.mxu0 0.0
    %2962 = vmatpush2.msra.mxu0 0.0
    %2963 = vmatprep.subr.mxu0 0.0
    %2964 = vmatpush2.msra.mxu0 0.0
    %2965 = vmatprep.subr.mxu0 0.0
    %2966 = vmatpush2.msra.mxu0 0.0
    %2967 = vmatprep.subr.mxu0 0.0
    %2968 = vmatpush2.msra.mxu0 0.0
    %2969 = vmatprep.subr.mxu0 0.0
    %2970 = vmatpush2.msra.mxu0 0.0
    %2971 = vmatprep.subr.mxu0 0.0
    %2972 = vmatpush2.msra.mxu0 0.0
    %2973 = vmatprep.subr.mxu0 0.0
    %2974 = vmatpush2.msra.mxu0 0.0
    %2975 = vmatprep.subr.mxu0 0.0
    %2976 = vmatpush2.msra.mxu0 0.0
    %2977 = vmatprep.subr.mxu0 0.0
    %2978 = vmatpush2.msra.mxu0 0.0
    %2979 = vmatprep.mubr.f32.mxu0 0.0
    %2980 = vmatmul.mubr.f32.gmra.mxu0 %v2904
    %v2981 = vpop.f32.mrf.mxu0
    %v2982 = vadd.f32 0.0, %v2981
    %v2983 = vpop.f32.mrf.mxu0
    %2984 = vmatprep.mubr.f32.mxu0 0.0
    %2985 = vmatmul.mubr.f32.gmra.mxu0 %v2907
    %v2986 = vpop.f32.mrf.mxu0
    %v2987 = vadd.f32 0.0, %v2986
    %v2988 = vpop.f32.mrf.mxu0
    %2989 = vmatprep.mubr.f32.mxu0 0.0
    %2990 = vmatmul.mubr.f32.gmra.mxu0 %v2910
    %v2991 = vpop.f32.mrf.mxu0
    %v2992 = vadd.f32 0.0, %v2991
    %v2993 = vpop.f32.mrf.mxu0
    %2994 = vmatprep.mubr.f32.mxu0 0.0
    %2995 = vmatmul.mubr.f32.gmra.mxu0 %v2913
    %v2996 = vpop.f32.mrf.mxu0
    %v2997 = vadd.f32 0.0, %v2996
    %v2998 = vpop.f32.mrf.mxu0
    %2999 = vdwg.mxu0
    %3000 = vmatprep.subr.mxu0 0.0
    %3001 = vmatpush1.msra.mxu0 0.0
    %3002 = vmatprep.subr.mxu0 0.0
    %3003 = vmatpush1.msra.mxu0 0.0
    %3004 = vmatprep.subr.mxu0 0.0
    %3005 = vmatpush1.msra.mxu0 0.0
    %3006 = vmatprep.subr.mxu0 0.0
    %3007 = vmatpush1.msra.mxu0 0.0
    %3008 = vmatprep.subr.mxu0 0.0
    %3009 = vmatpush1.msra.mxu0 0.0
    %3010 = vmatprep.subr.mxu0 0.0
    %3011 = vmatpush1.msra.mxu0 0.0
    %3012 = vmatprep.subr.mxu0 0.0
    %3013 = vmatpush1.msra.mxu0 0.0
    %3014 = vmatprep.subr.mxu0 0.0
    %3015 = vmatpush1.msra.mxu0 0.0
    %3016 = vmatprep.subr.mxu0 0.0
    %3017 = vmatpush1.msra.mxu0 0.0
    %3018 = vmatprep.subr.mxu0 0.0
    %3019 = vmatpush1.msra.mxu0 0.0
    %3020 = vmatprep.subr.mxu0 0.0
    %3021 = vmatpush1.msra.mxu0 0.0
    %3022 = vmatprep.subr.mxu0 0.0
    %3023 = vmatpush1.msra.mxu0 0.0
    %3024 = vmatprep.subr.mxu0 0.0
    %3025 = vmatpush1.msra.mxu0 0.0
    %3026 = vmatprep.subr.mxu0 0.0
    %3027 = vmatpush1.msra.mxu0 0.0
    %3028 = vmatprep.subr.mxu0 0.0
    %3029 = vmatpush1.msra.mxu0 0.0
    %3030 = vmatprep.subr.mxu0 0.0
    %3031 = vmatpush1.msra.mxu0 %v2870
    %3032 = vmatprep.subr.mxu0 0.0
    %3033 = vmatpush2.msra.mxu0 0.0
    %3034 = vmatprep.subr.mxu0 0.0
    %3035 = vmatpush2.msra.mxu0 0.0
    %3036 = vmatprep.subr.mxu0 0.0
    %3037 = vmatpush2.msra.mxu0 0.0
    %3038 = vmatprep.subr.mxu0 0.0
    %3039 = vmatpush2.msra.mxu0 0.0
    %3040 = vmatprep.subr.mxu0 0.0
    %3041 = vmatpush2.msra.mxu0 0.0
    %3042 = vmatprep.subr.mxu0 0.0
    %3043 = vmatpush2.msra.mxu0 0.0
    %3044 = vmatprep.subr.mxu0 0.0
    %3045 = vmatpush2.msra.mxu0 0.0
    %3046 = vmatprep.subr.mxu0 0.0
    %3047 = vmatpush2.msra.mxu0 0.0
    %3048 = vmatprep.subr.mxu0 0.0
    %3049 = vmatpush2.msra.mxu0 0.0
    %3050 = vmatprep.subr.mxu0 0.0
    %3051 = vmatpush2.msra.mxu0 0.0
    %3052 = vmatprep.subr.mxu0 0.0
    %3053 = vmatpush2.msra.mxu0 0.0
    %3054 = vmatprep.subr.mxu0 0.0
    %3055 = vmatpush2.msra.mxu0 0.0
    %3056 = vmatprep.subr.mxu0 0.0
    %3057 = vmatpush2.msra.mxu0 0.0
    %3058 = vmatprep.subr.mxu0 0.0
    %3059 = vmatpush2.msra.mxu0 0.0
    %3060 = vmatprep.subr.mxu0 0.0
    %3061 = vmatpush2.msra.mxu0 0.0
    %3062 = vmatprep.subr.mxu0 0.0
    %3063 = vmatpush2.msra.mxu0 0.0
    %3064 = vmatprep.mubr.f32.mxu0 0.0
    %3065 = vmatmul.mubr.f32.gmra.mxu0 %v736
    %v3066 = vpop.f32.mrf.mxu0
    %v3067 = vadd.f32 %v2982, %v3066
    %v3068 = vpop.f32.mrf.mxu0
    %3069 = vmatprep.mubr.f32.mxu0 0.0
    %3070 = vmatmul.mubr.f32.gmra.mxu0 %v739
    %v3071 = vpop.f32.mrf.mxu0
    %v3072 = vadd.f32 %v2987, %v3071
    %v3073 = vpop.f32.mrf.mxu0
    %3074 = vmatprep.mubr.f32.mxu0 0.0
    %3075 = vmatmul.mubr.f32.gmra.mxu0 %v742
    %v3076 = vpop.f32.mrf.mxu0
    %v3077 = vadd.f32 %v2992, %v3076
    %v3078 = vpop.f32.mrf.mxu0
    %3079 = vmatprep.mubr.f32.mxu0 0.0
    %3080 = vmatmul.mubr.f32.gmra.mxu0 %v745
    %v3081 = vpop.f32.mrf.mxu0
    %v3082 = vadd.f32 %v2997, %v3081
    %v3083 = vpop.f32.mrf.mxu0
    %3084 = vdwg.mxu0
    %v3085 = vsel %vm90, %v2870, 0.0
    %v3086 = vrot.slane %v3085, 4
    %v3087 = vadd.f32 %v3085, %v3086
    %v3088 = vrot.slane %v3087, 2
    %v3089 = vadd.f32 %v3087, %v3088
    %v3090 = vrot.slane %v3089, 1
    %v3091 = vadd.f32 %v3089, %v3090
    %v3093 = vsel %vm90, %v2657, 0
    %v3096 = vsel %vm90, %v2658, 0
    %v3099 = vsel %vm90, %v2659, 0
    %v3102 = vsel %vm90, %v2660, 0
    %3104 = vmatprep.subr.mxu0 0.0
    %3105 = vmatpush1.xpose.msra.mxu0 0.0
    %3106 = vmatprep.subr.mxu0 0.0
    %3107 = vmatpush1.xpose.msra.mxu0 0.0
    %3108 = vmatprep.subr.mxu0 0.0
    %3109 = vmatpush1.xpose.msra.mxu0 0.0
    %3110 = vmatprep.subr.mxu0 0.0
    %3111 = vmatpush1.xpose.msra.mxu0 0.0
    %3112 = vmatprep.subr.mxu0 0.0
    %3113 = vmatpush1.xpose.msra.mxu0 0.0
    %3114 = vmatprep.subr.mxu0 0.0
    %3115 = vmatpush1.xpose.msra.mxu0 0.0
    %3116 = vmatprep.subr.mxu0 0.0
    %3117 = vmatpush1.xpose.msra.mxu0 0.0
    %3118 = vmatprep.subr.mxu0 0.0
    %3119 = vmatpush1.xpose.msra.mxu0 0.0
    %3120 = vmatprep.subr.mxu0 0.0
    %3121 = vmatpush1.xpose.msra.mxu0 0.0
    %3122 = vmatprep.subr.mxu0 0.0
    %3123 = vmatpush1.xpose.msra.mxu0 0.0
    %3124 = vmatprep.subr.mxu0 0.0
    %3125 = vmatpush1.xpose.msra.mxu0 0.0
    %3126 = vmatprep.subr.mxu0 0.0
    %3127 = vmatpush1.xpose.msra.mxu0 0.0
    %3128 = vmatprep.subr.mxu0 0.0
    %3129 = vmatpush1.xpose.msra.mxu0 %v3102
    %3130 = vmatprep.subr.mxu0 0.0
    %3131 = vmatpush1.xpose.msra.mxu0 %v3099
    %3132 = vmatprep.subr.mxu0 0.0
    %3133 = vmatpush1.xpose.msra.mxu0 %v3096
    %3134 = vmatprep.subr.mxu0 0.0
    %3135 = vmatpush1.xpose.msra.mxu0 %v3093
    %3136 = vmatprep.subr.mxu0 0.0
    %3137 = vmatpush2.xpose.msra.mxu0 0.0
    %3138 = vmatprep.subr.mxu0 0.0
    %3139 = vmatpush2.xpose.msra.mxu0 0.0
    %3140 = vmatprep.subr.mxu0 0.0
    %3141 = vmatpush2.xpose.msra.mxu0 0.0
    %3142 = vmatprep.subr.mxu0 0.0
    %3143 = vmatpush2.xpose.msra.mxu0 0.0
    %3144 = vmatprep.subr.mxu0 0.0
    %3145 = vmatpush2.xpose.msra.mxu0 0.0
    %3146 = vmatprep.subr.mxu0 0.0
    %3147 = vmatpush2.xpose.msra.mxu0 0.0
    %3148 = vmatprep.subr.mxu0 0.0
    %3149 = vmatpush2.xpose.msra.mxu0 0.0
    %3150 = vmatprep.subr.mxu0 0.0
    %3151 = vmatpush2.xpose.msra.mxu0 0.0
    %3152 = vmatprep.subr.mxu0 0.0
    %3153 = vmatpush2.xpose.msra.mxu0 0.0
    %3154 = vmatprep.subr.mxu0 0.0
    %3155 = vmatpush2.xpose.msra.mxu0 0.0
    %3156 = vmatprep.subr.mxu0 0.0
    %3157 = vmatpush2.xpose.msra.mxu0 0.0
    %3158 = vmatprep.subr.mxu0 0.0
    %3159 = vmatpush2.xpose.msra.mxu0 0.0
    %3160 = vmatprep.subr.mxu0 0.0
    %3161 = vmatpush2.xpose.msra.mxu0 0.0
    %3162 = vmatprep.subr.mxu0 0.0
    %3163 = vmatpush2.xpose.msra.mxu0 0.0
    %3164 = vmatprep.subr.mxu0 0.0
    %3165 = vmatpush2.xpose.msra.mxu0 0.0
    %3166 = vmatprep.subr.mxu0 0.0
    %3167 = vmatpush2.xpose.msra.mxu0 0.0
    %3168 = vmatprep.mubr.f32.mxu0 0.0
    %3169 = vmatmul.mubr.f32.gmra.mxu0 %v840
    %v3170 = vpop.f32.mrf.mxu0
    %v3171 = vadd.f32 0.0, %v3170
    %v3172 = vpop.f32.mrf.mxu0
    %3173 = vdwg.mxu0
    %v3175 = vsel %vm90, %v2870, 0
    %3177 = vmatprep.subr.mxu0 0.0
    %3178 = vmatpush1.xpose.msra.mxu0 0.0
    %3179 = vmatprep.subr.mxu0 0.0
    %3180 = vmatpush1.xpose.msra.mxu0 0.0
    %3181 = vmatprep.subr.mxu0 0.0
    %3182 = vmatpush1.xpose.msra.mxu0 0.0
    %3183 = vmatprep.subr.mxu0 0.0
    %3184 = vmatpush1.xpose.msra.mxu0 0.0
    %3185 = vmatprep.subr.mxu0 0.0
    %3186 = vmatpush1.xpose.msra.mxu0 0.0
    %3187 = vmatprep.subr.mxu0 0.0
    %3188 = vmatpush1.xpose.msra.mxu0 0.0
    %3189 = vmatprep.subr.mxu0 0.0
    %3190 = vmatpush1.xpose.msra.mxu0 0.0
    %3191 = vmatprep.subr.mxu0 0.0
    %3192 = vmatpush1.xpose.msra.mxu0 0.0
    %3193 = vmatprep.subr.mxu0 0.0
    %3194 = vmatpush1.xpose.msra.mxu0 0.0
    %3195 = vmatprep.subr.mxu0 0.0
    %3196 = vmatpush1.xpose.msra.mxu0 0.0
    %3197 = vmatprep.subr.mxu0 0.0
    %3198 = vmatpush1.xpose.msra.mxu0 0.0
    %3199 = vmatprep.subr.mxu0 0.0
    %3200 = vmatpush1.xpose.msra.mxu0 0.0
    %3201 = vmatprep.subr.mxu0 0.0
    %3202 = vmatpush1.xpose.msra.mxu0 %v852
    %3203 = vmatprep.subr.mxu0 0.0
    %3204 = vmatpush1.xpose.msra.mxu0 %v849
    %3205 = vmatprep.subr.mxu0 0.0
    %3206 = vmatpush1.xpose.msra.mxu0 %v846
    %3207 = vmatprep.subr.mxu0 0.0
    %3208 = vmatpush1.xpose.msra.mxu0 %v843
    %3209 = vmatprep.subr.mxu0 0.0
    %3210 = vmatpush2.xpose.msra.mxu0 0.0
    %3211 = vmatprep.subr.mxu0 0.0
    %3212 = vmatpush2.xpose.msra.mxu0 0.0
    %3213 = vmatprep.subr.mxu0 0.0
    %3214 = vmatpush2.xpose.msra.mxu0 0.0
    %3215 = vmatprep.subr.mxu0 0.0
    %3216 = vmatpush2.xpose.msra.mxu0 0.0
    %3217 = vmatprep.subr.mxu0 0.0
    %3218 = vmatpush2.xpose.msra.mxu0 0.0
    %3219 = vmatprep.subr.mxu0 0.0
    %3220 = vmatpush2.xpose.msra.mxu0 0.0
    %3221 = vmatprep.subr.mxu0 0.0
    %3222 = vmatpush2.xpose.msra.mxu0 0.0
    %3223 = vmatprep.subr.mxu0 0.0
    %3224 = vmatpush2.xpose.msra.mxu0 0.0
    %3225 = vmatprep.subr.mxu0 0.0
    %3226 = vmatpush2.xpose.msra.mxu0 0.0
    %3227 = vmatprep.subr.mxu0 0.0
    %3228 = vmatpush2.xpose.msra.mxu0 0.0
    %3229 = vmatprep.subr.mxu0 0.0
    %3230 = vmatpush2.xpose.msra.mxu0 0.0
    %3231 = vmatprep.subr.mxu0 0.0
    %3232 = vmatpush2.xpose.msra.mxu0 0.0
    %3233 = vmatprep.subr.mxu0 0.0
    %3234 = vmatpush2.xpose.msra.mxu0 0.0
    %3235 = vmatprep.subr.mxu0 0.0
    %3236 = vmatpush2.xpose.msra.mxu0 0.0
    %3237 = vmatprep.subr.mxu0 0.0
    %3238 = vmatpush2.xpose.msra.mxu0 0.0
    %3239 = vmatprep.subr.mxu0 0.0
    %3240 = vmatpush2.xpose.msra.mxu0 0.0
    %3241 = vmatprep.mubr.f32.mxu0 0.0
    %3242 = vmatmul.mubr.f32.gmra.mxu0 %v3175
    %v3243 = vpop.f32.mrf.mxu0
    %v3244 = vadd.f32 %v3171, %v3243
    %v3245 = vpop.f32.mrf.mxu0
    %3246 = vdwg.mxu0
    %v3247 = vsel %vm585, %v3244, 0.0
    %3248 = vmatprep.subr.mxu0 0.0
    %3249 = vmatpush1.msra.mxu0 0.0
    %3250 = vmatprep.subr.mxu0 0.0
    %3251 = vmatpush1.msra.mxu0 0.0
    %3252 = vmatprep.subr.mxu0 0.0
    %3253 = vmatpush1.msra.mxu0 0.0
    %3254 = vmatprep.subr.mxu0 0.0
    %3255 = vmatpush1.msra.mxu0 0.0
    %3256 = vmatprep.subr.mxu0 0.0
    %3257 = vmatpush1.msra.mxu0 0.0
    %3258 = vmatprep.subr.mxu0 0.0
    %3259 = vmatpush1.msra.mxu0 0.0
    %3260 = vmatprep.subr.mxu0 0.0
    %3261 = vmatpush1.msra.mxu0 0.0
    %3262 = vmatprep.subr.mxu0 0.0
    %3263 = vmatpush1.msra.mxu0 0.0
    %3264 = vmatprep.subr.mxu0 0.0
    %3265 = vmatpush1.msra.mxu0 0.0
    %3266 = vmatprep.subr.mxu0 0.0
    %3267 = vmatpush1.msra.mxu0 0.0
    %3268 = vmatprep.subr.mxu0 0.0
    %3269 = vmatpush1.msra.mxu0 0.0
    %3270 = vmatprep.subr.mxu0 0.0
    %3271 = vmatpush1.msra.mxu0 0.0
    %3272 = vmatprep.subr.mxu0 0.0
    %3273 = vmatpush1.msra.mxu0 0.0
    %3274 = vmatprep.subr.mxu0 0.0
    %3275 = vmatpush1.msra.mxu0 0.0
    %3276 = vmatprep.subr.mxu0 0.0
    %3277 = vmatpush1.msra.mxu0 0.0
    %3278 = vmatprep.subr.mxu0 0.0
    %3279 = vmatpush1.msra.mxu0 %v3247
    %3280 = vmatprep.subr.mxu0 0.0
    %3281 = vmatpush2.msra.mxu0 0.0
    %3282 = vmatprep.subr.mxu0 0.0
    %3283 = vmatpush2.msra.mxu0 0.0
    %3284 = vmatprep.subr.mxu0 0.0
    %3285 = vmatpush2.msra.mxu0 0.0
    %3286 = vmatprep.subr.mxu0 0.0
    %3287 = vmatpush2.msra.mxu0 0.0
    %3288 = vmatprep.subr.mxu0 0.0
    %3289 = vmatpush2.msra.mxu0 0.0
    %3290 = vmatprep.subr.mxu0 0.0
    %3291 = vmatpush2.msra.mxu0 0.0
    %3292 = vmatprep.subr.mxu0 0.0
    %3293 = vmatpush2.msra.mxu0 0.0
    %3294 = vmatprep.subr.mxu0 0.0
    %3295 = vmatpush2.msra.mxu0 0.0
    %3296 = vmatprep.subr.mxu0 0.0
    %3297 = vmatpush2.msra.mxu0 0.0
    %3298 = vmatprep.subr.mxu0 0.0
    %3299 = vmatpush2.msra.mxu0 0.0
    %3300 = vmatprep.subr.mxu0 0.0
    %3301 = vmatpush2.msra.mxu0 0.0
    %3302 = vmatprep.subr.mxu0 0.0
    %3303 = vmatpush2.msra.mxu0 0.0
    %3304 = vmatprep.subr.mxu0 0.0
    %3305 = vmatpush2.msra.mxu0 0.0
    %3306 = vmatprep.subr.mxu0 0.0
    %3307 = vmatpush2.msra.mxu0 0.0
    %3308 = vmatprep.subr.mxu0 0.0
    %3309 = vmatpush2.msra.mxu0 0.0
    %3310 = vmatprep.subr.mxu0 0.0
    %3311 = vmatpush2.msra.mxu0 0.0
    %3312 = vmatprep.mubr.f32.mxu0 0.0
    %3313 = vmatmul.mubr.f32.gmra.mxu0 %v460
    %v3314 = vpop.f32.mrf.mxu0
    %v3315 = vadd.f32 0.0, %v3314
    %v3316 = vpop.f32.mrf.mxu0
    %3317 = vdwg.mxu0
    %v3318 = vsel %vm90, %v3247, 0.0
    %v3319 = vrot.slane %v3318, 4
    %v3320 = vadd.f32 %v3318, %v3319
    %v3321 = vrot.slane %v3320, 2
    %v3322 = vadd.f32 %v3320, %v3321
    %v3323 = vrot.slane %v3322, 1
    %v3324 = vadd.f32 %v3322, %v3323
    %v3325 = vmul.f32 %v3315, 0.01
    %v3326 = vsub.f32 %v2650, %v3325
    %v3327 = vmul.f32 %v3324, 0.01
    %v3328 = vsub.f32 %v2652, %v3327
    %v3329 = vmul.f32 %v3067, 0.01
    %v3330 = vmul.f32 %v3072, 0.01
    %v3331 = vmul.f32 %v3077, 0.01
    %v3332 = vmul.f32 %v3082, 0.01
    %v3333 = vsub.f32 %v2657, %v3329
    %v3334 = vsub.f32 %v2658, %v3330
    %v3335 = vsub.f32 %v2659, %v3331
    %v3336 = vsub.f32 %v2660, %v3332
    %v3337 = vmul.f32 %v3091, 0.01
    %v3338 = vsub.f32 %v2662, %v3337
    %v3339 = vmul.f32 %v2866, 0.01
    %v3340 = vsub.f32 %v2664, %v3339
    %v3341 = vmul.f32 %v2851, 0.01
    %v3342 = vsub.f32 %v2666, %v3341
    %v3343 = vlaneseq
    %v3344 = vshrl.u32 %v3343, 7
    %v3345 = vsub.s32 0, %v3344
    %v3346 = vrot.slane %v3326, %v3345
    %v3347 = vmul.f32 %v42, %v3346
    %v3348 = vlaneseq
    %v3349 = vshrl.u32 %v3348, 7
    %v3350 = vsub.s32 1, %v3349
    %v3351 = vrot.slane %v3326, %v3350
    %v3352 = vmul.f32 %v51, %v3351
    %v3353 = vadd.f32 %v3347, %v3352
    %v3354 = vlaneseq
    %v3355 = vshrl.u32 %v3354, 7
    %v3356 = vsub.s32 2, %v3355
    %v3357 = vrot.slane %v3326, %v3356
    %v3358 = vmul.f32 %v61, %v3357
    %v3359 = vadd.f32 %v3353, %v3358
    %v3360 = vlaneseq
    %v3361 = vshrl.u32 %v3360, 7
    %v3362 = vsub.s32 3, %v3361
    %v3363 = vrot.slane %v3326, %v3362
    %v3364 = vmul.f32 %v71, %v3363
    %v3365 = vadd.f32 %v3359, %v3364
    %v3366 = vadd.f32 %v3365, %v3328
    %v3367 = vsel %vm84, %v3366, 0.0
    %3368 = vmatprep.subr.mxu0 0.0
    %3369 = vmatpush1.msra.mxu0 0.0
    %3370 = vmatprep.subr.mxu0 0.0
    %3371 = vmatpush1.msra.mxu0 0.0
    %3372 = vmatprep.subr.mxu0 0.0
    %3373 = vmatpush1.msra.mxu0 0.0
    %3374 = vmatprep.subr.mxu0 0.0
    %3375 = vmatpush1.msra.mxu0 0.0
    %3376 = vmatprep.subr.mxu0 0.0
    %3377 = vmatpush1.msra.mxu0 0.0
    %3378 = vmatprep.subr.mxu0 0.0
    %3379 = vmatpush1.msra.mxu0 0.0
    %3380 = vmatprep.subr.mxu0 0.0
    %3381 = vmatpush1.msra.mxu0 0.0
    %3382 = vmatprep.subr.mxu0 0.0
    %3383 = vmatpush1.msra.mxu0 0.0
    %3384 = vmatprep.subr.mxu0 0.0
    %3385 = vmatpush1.msra.mxu0 0.0
    %3386 = vmatprep.subr.mxu0 0.0
    %3387 = vmatpush1.msra.mxu0 0.0
    %3388 = vmatprep.subr.mxu0 0.0
    %3389 = vmatpush1.msra.mxu0 0.0
    %3390 = vmatprep.subr.mxu0 0.0
    %3391 = vmatpush1.msra.mxu0 0.0
    %3392 = vmatprep.subr.mxu0 0.0
    %3393 = vmatpush1.msra.mxu0 %v3336
    %3394 = vmatprep.subr.mxu0 0.0
    %3395 = vmatpush1.msra.mxu0 %v3335
    %3396 = vmatprep.subr.mxu0 0.0
    %3397 = vmatpush1.msra.mxu0 %v3334
    %3398 = vmatprep.subr.mxu0 0.0
    %3399 = vmatpush1.msra.mxu0 %v3333
    %3400 = vmatprep.subr.mxu0 0.0
    %3401 = vmatpush2.msra.mxu0 0.0
    %3402 = vmatprep.subr.mxu0 0.0
    %3403 = vmatpush2.msra.mxu0 0.0
    %3404 = vmatprep.subr.mxu0 0.0
    %3405 = vmatpush2.msra.mxu0 0.0
    %3406 = vmatprep.subr.mxu0 0.0
    %3407 = vmatpush2.msra.mxu0 0.0
    %3408 = vmatprep.subr.mxu0 0.0
    %3409 = vmatpush2.msra.mxu0 0.0
    %3410 = vmatprep.subr.mxu0 0.0
    %3411 = vmatpush2.msra.mxu0 0.0
    %3412 = vmatprep.subr.mxu0 0.0
    %3413 = vmatpush2.msra.mxu0 0.0
    %3414 = vmatprep.subr.mxu0 0.0
    %3415 = vmatpush2.msra.mxu0 0.0
    %3416 = vmatprep.subr.mxu0 0.0
    %3417 = vmatpush2.msra.mxu0 0.0
    %3418 = vmatprep.subr.mxu0 0.0
    %3419 = vmatpush2.msra.mxu0 0.0
    %3420 = vmatprep.subr.mxu0 0.0
    %3421 = vmatpush2.msra.mxu0 0.0
    %3422 = vmatprep.subr.mxu0 0.0
    %3423 = vmatpush2.msra.mxu0 0.0
    %3424 = vmatprep.subr.mxu0 0.0
    %3425 = vmatpush2.msra.mxu0 0.0
    %3426 = vmatprep.subr.mxu0 0.0
    %3427 = vmatpush2.msra.mxu0 0.0
    %3428 = vmatprep.subr.mxu0 0.0
    %3429 = vmatpush2.msra.mxu0 0.0
    %3430 = vmatprep.subr.mxu0 0.0
    %3431 = vmatpush2.msra.mxu0 0.0
    %3432 = vmatprep.mubr.f32.mxu0 0.0
    %3433 = vmatmul.mubr.f32.gmra.mxu0 %v92
    %v3434 = vpop.f32.mrf.mxu0
    %v3435 = vadd.f32 0.0, %v3434
    %v3436 = vpop.f32.mrf.mxu0
    %3437 = vdwg.mxu0
    %v3439 = vsel %vm90, %v3367, 0
    %3441 = vmatprep.subr.mxu0 0.0
    %3442 = vmatpush1.msra.mxu0 0.0
    %3443 = vmatprep.subr.mxu0 0.0
    %3444 = vmatpush1.msra.mxu0 0.0
    %3445 = vmatprep.subr.mxu0 0.0
    %3446 = vmatpush1.msra.mxu0 0.0
    %3447 = vmatprep.subr.mxu0 0.0
    %3448 = vmatpush1.msra.mxu0 0.0
    %3449 = vmatprep.subr.mxu0 0.0
    %3450 = vmatpush1.msra.mxu0 0.0
    %3451 = vmatprep.subr.mxu0 0.0
    %3452 = vmatpush1.msra.mxu0 0.0
    %3453 = vmatprep.subr.mxu0 0.0
    %3454 = vmatpush1.msra.mxu0 0.0
    %3455 = vmatprep.subr.mxu0 0.0
    %3456 = vmatpush1.msra.mxu0 0.0
    %3457 = vmatprep.subr.mxu0 0.0
    %3458 = vmatpush1.msra.mxu0 0.0
    %3459 = vmatprep.subr.mxu0 0.0
    %3460 = vmatpush1.msra.mxu0 0.0
    %3461 = vmatprep.subr.mxu0 0.0
    %3462 = vmatpush1.msra.mxu0 0.0
    %3463 = vmatprep.subr.mxu0 0.0
    %3464 = vmatpush1.msra.mxu0 0.0
    %3465 = vmatprep.subr.mxu0 0.0
    %3466 = vmatpush1.msra.mxu0 %v34
    %3467 = vmatprep.subr.mxu0 0.0
    %3468 = vmatpush1.msra.mxu0 %v33
    %3469 = vmatprep.subr.mxu0 0.0
    %3470 = vmatpush1.msra.mxu0 %v32
    %3471 = vmatprep.subr.mxu0 0.0
    %3472 = vmatpush1.msra.mxu0 %v31
    %3473 = vmatprep.subr.mxu0 0.0
    %3474 = vmatpush2.msra.mxu0 0.0
    %3475 = vmatprep.subr.mxu0 0.0
    %3476 = vmatpush2.msra.mxu0 0.0
    %3477 = vmatprep.subr.mxu0 0.0
    %3478 = vmatpush2.msra.mxu0 0.0
    %3479 = vmatprep.subr.mxu0 0.0
    %3480 = vmatpush2.msra.mxu0 0.0
    %3481 = vmatprep.subr.mxu0 0.0
    %3482 = vmatpush2.msra.mxu0 0.0
    %3483 = vmatprep.subr.mxu0 0.0
    %3484 = vmatpush2.msra.mxu0 0.0
    %3485 = vmatprep.subr.mxu0 0.0
    %3486 = vmatpush2.msra.mxu0 0.0
    %3487 = vmatprep.subr.mxu0 0.0
    %3488 = vmatpush2.msra.mxu0 0.0
    %3489 = vmatprep.subr.mxu0 0.0
    %3490 = vmatpush2.msra.mxu0 0.0
    %3491 = vmatprep.subr.mxu0 0.0
    %3492 = vmatpush2.msra.mxu0 0.0
    %3493 = vmatprep.subr.mxu0 0.0
    %3494 = vmatpush2.msra.mxu0 0.0
    %3495 = vmatprep.subr.mxu0 0.0
    %3496 = vmatpush2.msra.mxu0 0.0
    %3497 = vmatprep.subr.mxu0 0.0
    %3498 = vmatpush2.msra.mxu0 0.0
    %3499 = vmatprep.subr.mxu0 0.0
    %3500 = vmatpush2.msra.mxu0 0.0
    %3501 = vmatprep.subr.mxu0 0.0
    %3502 = vmatpush2.msra.mxu0 0.0
    %3503 = vmatprep.subr.mxu0 0.0
    %3504 = vmatpush2.msra.mxu0 0.0
    %3505 = vmatprep.mubr.f32.mxu0 0.0
    %3506 = vmatmul.mubr.f32.gmra.mxu0 %v3439
    %v3507 = vpop.f32.mrf.mxu0
    %v3508 = vadd.f32 %v3435, %v3507
    %v3509 = vpop.f32.mrf.mxu0
    %3510 = vdwg.mxu0
    %v3511 = vadd.f32 %v3508, %v3338
    %v3512 = vsel %vm164, %v3511, 0.0
    %v3513 = vmul.f32 %v3512, %v169
    %v3514 = vmul.f32 %v165, %v3340
    %v3515 = vadd.f32 %v3513, %v3514
    %v3516 = vsel %vm90, %v3515, 0.0
    %3517 = vadd.xlane.f32.xlu0 %v3516
    %v3518 = vpop.xlane.xlu0 %3517
    %v3519 = vadd.f32 %v3518, %v3342
    %v3520 = vmul.f32 %v3519, 0.25
    %v3521 = vsel %vm181, %v3520, 0.0
    %v3522 = vrot.slane %v3521, 4
    %v3523 = vadd.f32 %v3521, %v3522
    %v3524 = vrot.slane %v3523, 2
    %v3525 = vadd.f32 %v3523, %v3524
    %v3526 = vrot.slane %v3525, 1
    %v3527 = vadd.f32 %v3525, %v3526
    %3529 = vset.pattern.permute.xlu0 0
    %3530 = vperm.xlu0 %3529, %v3520
    %v3531 = vpop.permute.xlu0 %3530
    %v3533 = vmul.f32 %v3531, %v165
    %v3534 = vmul.f32 %v192, %v3512
    %v3535 = vadd.f32 %v3533, %v3534
    %v3536 = vsel %vm90, %v3535, 0.0
    %v3537 = vrot.slane %v3536, 4
    %v3538 = vadd.f32 %v3536, %v3537
    %v3539 = vrot.slane %v3538, 2
    %v3540 = vadd.f32 %v3538, %v3539
    %v3541 = vrot.slane %v3540, 1
    %v3542 = vadd.f32 %v3540, %v3541
    %v3543 = vmul.f32 %v3531, %v169
    %v3544 = vmul.f32 %v192, %v3340
    %v3545 = vadd.f32 %v3543, %v3544
    %v3546 = vsel %vm164, %v3545, 0.0
    %3547 = vxpose.xlu0.b32.start [1/16] %v3367, 128
    %3548 = vxpose.xlu0.b32.cont [2/16] 0.0, 128
    %3549 = vxpose.xlu0.b32.cont [3/16] 0.0, 128
    %3550 = vxpose.xlu0.b32.cont [4/16] 0.0, 128
    %3551 = vxpose.xlu0.b32.cont [5/16] 0.0, 128
    %3552 = vxpose.xlu0.b32.cont [6/16] 0.0, 128
    %3553 = vxpose.xlu0.b32.cont [7/16] 0.0, 128
    %3554 = vxpose.xlu0.b32.cont [8/16] 0.0, 128
    %3555 = vxpose.xlu0.b32.cont [9/16] 0.0, 128
    %3556 = vxpose.xlu0.b32.cont [10/16] 0.0, 128
    %3557 = vxpose.xlu0.b32.cont [11/16] 0.0, 128
    %3558 = vxpose.xlu0.b32.cont [12/16] 0.0, 128
    %3559 = vxpose.xlu0.b32.cont [13/16] 0.0, 128
    %3560 = vxpose.xlu0.b32.cont [14/16] 0.0, 128
    %3561 = vxpose.xlu0.b32.cont [15/16] 0.0, 128
    %3562 = vxpose.xlu0.b32.end [16/16] 0.0, 128
    %v3563 = vpop.trf.xlu0
    %v3564 = vpop.trf.xlu0
    %v3565 = vpop.trf.xlu0
    %v3566 = vpop.trf.xlu0
    %v3567 = vpop.trf.xlu0
    %v3568 = vpop.trf.xlu0
    %v3569 = vpop.trf.xlu0
    %v3570 = vpop.trf.xlu0
    %v3571 = vpop.trf.xlu0
    %v3572 = vpop.trf.xlu0
    %v3573 = vpop.trf.xlu0
    %v3574 = vpop.trf.xlu0
    %v3575 = vpop.trf.xlu0
    %v3576 = vpop.trf.xlu0
    %v3577 = vpop.trf.xlu0
    %v3578 = vpop.trf.xlu0
    %v3580 = vsel %vm236, %v3563, 0
    %v3583 = vsel %vm236, %v3564, 0
    %v3586 = vsel %vm236, %v3565, 0
    %v3589 = vsel %vm236, %v3566, 0
    %3591 = vmatprep.subr.mxu0 0.0
    %3592 = vmatpush1.msra.mxu0 0.0
    %3593 = vmatprep.subr.mxu0 0.0
    %3594 = vmatpush1.msra.mxu0 0.0
    %3595 = vmatprep.subr.mxu0 0.0
    %3596 = vmatpush1.msra.mxu0 0.0
    %3597 = vmatprep.subr.mxu0 0.0
    %3598 = vmatpush1.msra.mxu0 0.0
    %3599 = vmatprep.subr.mxu0 0.0
    %3600 = vmatpush1.msra.mxu0 0.0
    %3601 = vmatprep.subr.mxu0 0.0
    %3602 = vmatpush1.msra.mxu0 0.0
    %3603 = vmatprep.subr.mxu0 0.0
    %3604 = vmatpush1.msra.mxu0 0.0
    %3605 = vmatprep.subr.mxu0 0.0
    %3606 = vmatpush1.msra.mxu0 0.0
    %3607 = vmatprep.subr.mxu0 0.0
    %3608 = vmatpush1.msra.mxu0 0.0
    %3609 = vmatprep.subr.mxu0 0.0
    %3610 = vmatpush1.msra.mxu0 0.0
    %3611 = vmatprep.subr.mxu0 0.0
    %3612 = vmatpush1.msra.mxu0 0.0
    %3613 = vmatprep.subr.mxu0 0.0
    %3614 = vmatpush1.msra.mxu0 0.0
    %3615 = vmatprep.subr.mxu0 0.0
    %3616 = vmatpush1.msra.mxu0 0.0
    %3617 = vmatprep.subr.mxu0 0.0
    %3618 = vmatpush1.msra.mxu0 0.0
    %3619 = vmatprep.subr.mxu0 0.0
    %3620 = vmatpush1.msra.mxu0 0.0
    %3621 = vmatprep.subr.mxu0 0.0
    %3622 = vmatpush1.msra.mxu0 %v203
    %3623 = vmatprep.subr.mxu0 0.0
    %3624 = vmatpush2.msra.mxu0 0.0
    %3625 = vmatprep.subr.mxu0 0.0
    %3626 = vmatpush2.msra.mxu0 0.0
    %3627 = vmatprep.subr.mxu0 0.0
    %3628 = vmatpush2.msra.mxu0 0.0
    %3629 = vmatprep.subr.mxu0 0.0
    %3630 = vmatpush2.msra.mxu0 0.0
    %3631 = vmatprep.subr.mxu0 0.0
    %3632 = vmatpush2.msra.mxu0 0.0
    %3633 = vmatprep.subr.mxu0 0.0
    %3634 = vmatpush2.msra.mxu0 0.0
    %3635 = vmatprep.subr.mxu0 0.0
    %3636 = vmatpush2.msra.mxu0 0.0
    %3637 = vmatprep.subr.mxu0 0.0
    %3638 = vmatpush2.msra.mxu0 0.0
    %3639 = vmatprep.subr.mxu0 0.0
    %3640 = vmatpush2.msra.mxu0 0.0
    %3641 = vmatprep.subr.mxu0 0.0
    %3642 = vmatpush2.msra.mxu0 0.0
    %3643 = vmatprep.subr.mxu0 0.0
    %3644 = vmatpush2.msra.mxu0 0.0
    %3645 = vmatprep.subr.mxu0 0.0
    %3646 = vmatpush2.msra.mxu0 0.0
    %3647 = vmatprep.subr.mxu0 0.0
    %3648 = vmatpush2.msra.mxu0 0.0
    %3649 = vmatprep.subr.mxu0 0.0
    %3650 = vmatpush2.msra.mxu0 0.0
    %3651 = vmatprep.subr.mxu0 0.0
    %3652 = vmatpush2.msra.mxu0 0.0
    %3653 = vmatprep.subr.mxu0 0.0
    %3654 = vmatpush2.msra.mxu0 0.0
    %3655 = vmatprep.mubr.f32.mxu0 0.0
    %3656 = vmatmul.mubr.f32.gmra.mxu0 %v3580
    %v3657 = vpop.f32.mrf.mxu0
    %v3658 = vadd.f32 0.0, %v3657
    %v3659 = vpop.f32.mrf.mxu0
    %3660 = vmatprep.mubr.f32.mxu0 0.0
    %3661 = vmatmul.mubr.f32.gmra.mxu0 %v3583
    %v3662 = vpop.f32.mrf.mxu0
    %v3663 = vadd.f32 0.0, %v3662
    %v3664 = vpop.f32.mrf.mxu0
    %3665 = vmatprep.mubr.f32.mxu0 0.0
    %3666 = vmatmul.mubr.f32.gmra.mxu0 %v3586
    %v3667 = vpop.f32.mrf.mxu0
    %v3668 = vadd.f32 0.0, %v3667
    %v3669 = vpop.f32.mrf.mxu0
    %3670 = vmatprep.mubr.f32.mxu0 0.0
    %3671 = vmatmul.mubr.f32.gmra.mxu0 %v3589
    %v3672 = vpop.f32.mrf.mxu0
    %v3673 = vadd.f32 0.0, %v3672
    %v3674 = vpop.f32.mrf.mxu0
    %3675 = vdwg.mxu0
    %3676 = vmatprep.subr.mxu0 0.0
    %3677 = vmatpush1.msra.mxu0 0.0
    %3678 = vmatprep.subr.mxu0 0.0
    %3679 = vmatpush1.msra.mxu0 0.0
    %3680 = vmatprep.subr.mxu0 0.0
    %3681 = vmatpush1.msra.mxu0 0.0
    %3682 = vmatprep.subr.mxu0 0.0
    %3683 = vmatpush1.msra.mxu0 0.0
    %3684 = vmatprep.subr.mxu0 0.0
    %3685 = vmatpush1.msra.mxu0 0.0
    %3686 = vmatprep.subr.mxu0 0.0
    %3687 = vmatpush1.msra.mxu0 0.0
    %3688 = vmatprep.subr.mxu0 0.0
    %3689 = vmatpush1.msra.mxu0 0.0
    %3690 = vmatprep.subr.mxu0 0.0
    %3691 = vmatpush1.msra.mxu0 0.0
    %3692 = vmatprep.subr.mxu0 0.0
    %3693 = vmatpush1.msra.mxu0 0.0
    %3694 = vmatprep.subr.mxu0 0.0
    %3695 = vmatpush1.msra.mxu0 0.0
    %3696 = vmatprep.subr.mxu0 0.0
    %3697 = vmatpush1.msra.mxu0 0.0
    %3698 = vmatprep.subr.mxu0 0.0
    %3699 = vmatpush1.msra.mxu0 0.0
    %3700 = vmatprep.subr.mxu0 0.0
    %3701 = vmatpush1.msra.mxu0 0.0
    %3702 = vmatprep.subr.mxu0 0.0
    %3703 = vmatpush1.msra.mxu0 0.0
    %3704 = vmatprep.subr.mxu0 0.0
    %3705 = vmatpush1.msra.mxu0 0.0
    %3706 = vmatprep.subr.mxu0 0.0
    %3707 = vmatpush1.msra.mxu0 %v3546
    %3708 = vmatprep.subr.mxu0 0.0
    %3709 = vmatpush2.msra.mxu0 0.0
    %3710 = vmatprep.subr.mxu0 0.0
    %3711 = vmatpush2.msra.mxu0 0.0
    %3712 = vmatprep.subr.mxu0 0.0
    %3713 = vmatpush2.msra.mxu0 0.0
    %3714 = vmatprep.subr.mxu0 0.0
    %3715 = vmatpush2.msra.mxu0 0.0
    %3716 = vmatprep.subr.mxu0 0.0
    %3717 = vmatpush2.msra.mxu0 0.0
    %3718 = vmatprep.subr.mxu0 0.0
    %3719 = vmatpush2.msra.mxu0 0.0
    %3720 = vmatprep.subr.mxu0 0.0
    %3721 = vmatpush2.msra.mxu0 0.0
    %3722 = vmatprep.subr.mxu0 0.0
    %3723 = vmatpush2.msra.mxu0 0.0
    %3724 = vmatprep.subr.mxu0 0.0
    %3725 = vmatpush2.msra.mxu0 0.0
    %3726 = vmatprep.subr.mxu0 0.0
    %3727 = vmatpush2.msra.mxu0 0.0
    %3728 = vmatprep.subr.mxu0 0.0
    %3729 = vmatpush2.msra.mxu0 0.0
    %3730 = vmatprep.subr.mxu0 0.0
    %3731 = vmatpush2.msra.mxu0 0.0
    %3732 = vmatprep.subr.mxu0 0.0
    %3733 = vmatpush2.msra.mxu0 0.0
    %3734 = vmatprep.subr.mxu0 0.0
    %3735 = vmatpush2.msra.mxu0 0.0
    %3736 = vmatprep.subr.mxu0 0.0
    %3737 = vmatpush2.msra.mxu0 0.0
    %3738 = vmatprep.subr.mxu0 0.0
    %3739 = vmatpush2.msra.mxu0 0.0
    %3740 = vmatprep.mubr.f32.mxu0 0.0
    %3741 = vmatmul.mubr.f32.gmra.mxu0 %v238
    %v3742 = vpop.f32.mrf.mxu0
    %v3743 = vadd.f32 %v3658, %v3742
    %v3744 = vpop.f32.mrf.mxu0
    %3745 = vmatprep.mubr.f32.mxu0 0.0
    %3746 = vmatmul.mubr.f32.gmra.mxu0 %v241
    %v3747 = vpop.f32.mrf.mxu0
    %v3748 = vadd.f32 %v3663, %v3747
    %v3749 = vpop.f32.mrf.mxu0
    %3750 = vmatprep.mubr.f32.mxu0 0.0
    %3751 = vmatmul.mubr.f32.gmra.mxu0 %v244
    %v3752 = vpop.f32.mrf.mxu0
    %v3753 = vadd.f32 %v3668, %v3752
    %v3754 = vpop.f32.mrf.mxu0
    %3755 = vmatprep.mubr.f32.mxu0 0.0
    %3756 = vmatmul.mubr.f32.gmra.mxu0 %v247
    %v3757 = vpop.f32.mrf.mxu0
    %v3758 = vadd.f32 %v3673, %v3757
    %v3759 = vpop.f32.mrf.mxu0
    %3760 = vdwg.mxu0
    %v3761 = vsel %vm90, %v3546, 0.0
    %v3762 = vrot.slane %v3761, 4
    %v3763 = vadd.f32 %v3761, %v3762
    %v3764 = vrot.slane %v3763, 2
    %v3765 = vadd.f32 %v3763, %v3764
    %v3766 = vrot.slane %v3765, 1
    %v3767 = vadd.f32 %v3765, %v3766
    %v3769 = vsel %vm90, %v3333, 0
    %v3772 = vsel %vm90, %v3334, 0
    %v3775 = vsel %vm90, %v3335, 0
    %v3778 = vsel %vm90, %v3336, 0
    %3780 = vmatprep.subr.mxu0 0.0
    %3781 = vmatpush1.xpose.msra.mxu0 0.0
    %3782 = vmatprep.subr.mxu0 0.0
    %3783 = vmatpush1.xpose.msra.mxu0 0.0
    %3784 = vmatprep.subr.mxu0 0.0
    %3785 = vmatpush1.xpose.msra.mxu0 0.0
    %3786 = vmatprep.subr.mxu0 0.0
    %3787 = vmatpush1.xpose.msra.mxu0 0.0
    %3788 = vmatprep.subr.mxu0 0.0
    %3789 = vmatpush1.xpose.msra.mxu0 0.0
    %3790 = vmatprep.subr.mxu0 0.0
    %3791 = vmatpush1.xpose.msra.mxu0 0.0
    %3792 = vmatprep.subr.mxu0 0.0
    %3793 = vmatpush1.xpose.msra.mxu0 0.0
    %3794 = vmatprep.subr.mxu0 0.0
    %3795 = vmatpush1.xpose.msra.mxu0 0.0
    %3796 = vmatprep.subr.mxu0 0.0
    %3797 = vmatpush1.xpose.msra.mxu0 0.0
    %3798 = vmatprep.subr.mxu0 0.0
    %3799 = vmatpush1.xpose.msra.mxu0 0.0
    %3800 = vmatprep.subr.mxu0 0.0
    %3801 = vmatpush1.xpose.msra.mxu0 0.0
    %3802 = vmatprep.subr.mxu0 0.0
    %3803 = vmatpush1.xpose.msra.mxu0 0.0
    %3804 = vmatprep.subr.mxu0 0.0
    %3805 = vmatpush1.xpose.msra.mxu0 %v3778
    %3806 = vmatprep.subr.mxu0 0.0
    %3807 = vmatpush1.xpose.msra.mxu0 %v3775
    %3808 = vmatprep.subr.mxu0 0.0
    %3809 = vmatpush1.xpose.msra.mxu0 %v3772
    %3810 = vmatprep.subr.mxu0 0.0
    %3811 = vmatpush1.xpose.msra.mxu0 %v3769
    %3812 = vmatprep.subr.mxu0 0.0
    %3813 = vmatpush2.xpose.msra.mxu0 0.0
    %3814 = vmatprep.subr.mxu0 0.0
    %3815 = vmatpush2.xpose.msra.mxu0 0.0
    %3816 = vmatprep.subr.mxu0 0.0
    %3817 = vmatpush2.xpose.msra.mxu0 0.0
    %3818 = vmatprep.subr.mxu0 0.0
    %3819 = vmatpush2.xpose.msra.mxu0 0.0
    %3820 = vmatprep.subr.mxu0 0.0
    %3821 = vmatpush2.xpose.msra.mxu0 0.0
    %3822 = vmatprep.subr.mxu0 0.0
    %3823 = vmatpush2.xpose.msra.mxu0 0.0
    %3824 = vmatprep.subr.mxu0 0.0
    %3825 = vmatpush2.xpose.msra.mxu0 0.0
    %3826 = vmatprep.subr.mxu0 0.0
    %3827 = vmatpush2.xpose.msra.mxu0 0.0
    %3828 = vmatprep.subr.mxu0 0.0
    %3829 = vmatpush2.xpose.msra.mxu0 0.0
    %3830 = vmatprep.subr.mxu0 0.0
    %3831 = vmatpush2.xpose.msra.mxu0 0.0
    %3832 = vmatprep.subr.mxu0 0.0
    %3833 = vmatpush2.xpose.msra.mxu0 0.0
    %3834 = vmatprep.subr.mxu0 0.0
    %3835 = vmatpush2.xpose.msra.mxu0 0.0
    %3836 = vmatprep.subr.mxu0 0.0
    %3837 = vmatpush2.xpose.msra.mxu0 0.0
    %3838 = vmatprep.subr.mxu0 0.0
    %3839 = vmatpush2.xpose.msra.mxu0 0.0
    %3840 = vmatprep.subr.mxu0 0.0
    %3841 = vmatpush2.xpose.msra.mxu0 0.0
    %3842 = vmatprep.subr.mxu0 0.0
    %3843 = vmatpush2.xpose.msra.mxu0 0.0
    %3844 = vmatprep.mubr.f32.mxu0 0.0
    %3845 = vmatmul.mubr.f32.gmra.mxu0 %v342
    %v3846 = vpop.f32.mrf.mxu0
    %v3847 = vadd.f32 0.0, %v3846
    %v3848 = vpop.f32.mrf.mxu0
    %3849 = vdwg.mxu0
    %v3851 = vsel %vm90, %v3546, 0
    %3853 = vmatprep.subr.mxu0 0.0
    %3854 = vmatpush1.xpose.msra.mxu0 0.0
    %3855 = vmatprep.subr.mxu0 0.0
    %3856 = vmatpush1.xpose.msra.mxu0 0.0
    %3857 = vmatprep.subr.mxu0 0.0
    %3858 = vmatpush1.xpose.msra.mxu0 0.0
    %3859 = vmatprep.subr.mxu0 0.0
    %3860 = vmatpush1.xpose.msra.mxu0 0.0
    %3861 = vmatprep.subr.mxu0 0.0
    %3862 = vmatpush1.xpose.msra.mxu0 0.0
    %3863 = vmatprep.subr.mxu0 0.0
    %3864 = vmatpush1.xpose.msra.mxu0 0.0
    %3865 = vmatprep.subr.mxu0 0.0
    %3866 = vmatpush1.xpose.msra.mxu0 0.0
    %3867 = vmatprep.subr.mxu0 0.0
    %3868 = vmatpush1.xpose.msra.mxu0 0.0
    %3869 = vmatprep.subr.mxu0 0.0
    %3870 = vmatpush1.xpose.msra.mxu0 0.0
    %3871 = vmatprep.subr.mxu0 0.0
    %3872 = vmatpush1.xpose.msra.mxu0 0.0
    %3873 = vmatprep.subr.mxu0 0.0
    %3874 = vmatpush1.xpose.msra.mxu0 0.0
    %3875 = vmatprep.subr.mxu0 0.0
    %3876 = vmatpush1.xpose.msra.mxu0 0.0
    %3877 = vmatprep.subr.mxu0 0.0
    %3878 = vmatpush1.xpose.msra.mxu0 %v354
    %3879 = vmatprep.subr.mxu0 0.0
    %3880 = vmatpush1.xpose.msra.mxu0 %v351
    %3881 = vmatprep.subr.mxu0 0.0
    %3882 = vmatpush1.xpose.msra.mxu0 %v348
    %3883 = vmatprep.subr.mxu0 0.0
    %3884 = vmatpush1.xpose.msra.mxu0 %v345
    %3885 = vmatprep.subr.mxu0 0.0
    %3886 = vmatpush2.xpose.msra.mxu0 0.0
    %3887 = vmatprep.subr.mxu0 0.0
    %3888 = vmatpush2.xpose.msra.mxu0 0.0
    %3889 = vmatprep.subr.mxu0 0.0
    %3890 = vmatpush2.xpose.msra.mxu0 0.0
    %3891 = vmatprep.subr.mxu0 0.0
    %3892 = vmatpush2.xpose.msra.mxu0 0.0
    %3893 = vmatprep.subr.mxu0 0.0
    %3894 = vmatpush2.xpose.msra.mxu0 0.0
    %3895 = vmatprep.subr.mxu0 0.0
    %3896 = vmatpush2.xpose.msra.mxu0 0.0
    %3897 = vmatprep.subr.mxu0 0.0
    %3898 = vmatpush2.xpose.msra.mxu0 0.0
    %3899 = vmatprep.subr.mxu0 0.0
    %3900 = vmatpush2.xpose.msra.mxu0 0.0
    %3901 = vmatprep.subr.mxu0 0.0
    %3902 = vmatpush2.xpose.msra.mxu0 0.0
    %3903 = vmatprep.subr.mxu0 0.0
    %3904 = vmatpush2.xpose.msra.mxu0 0.0
    %3905 = vmatprep.subr.mxu0 0.0
    %3906 = vmatpush2.xpose.msra.mxu0 0.0
    %3907 = vmatprep.subr.mxu0 0.0
    %3908 = vmatpush2.xpose.msra.mxu0 0.0
    %3909 = vmatprep.subr.mxu0 0.0
    %3910 = vmatpush2.xpose.msra.mxu0 0.0
    %3911 = vmatprep.subr.mxu0 0.0
    %3912 = vmatpush2.xpose.msra.mxu0 0.0
    %3913 = vmatprep.subr.mxu0 0.0
    %3914 = vmatpush2.xpose.msra.mxu0 0.0
    %3915 = vmatprep.subr.mxu0 0.0
    %3916 = vmatpush2.xpose.msra.mxu0 0.0
    %3917 = vmatprep.mubr.f32.mxu0 0.0
    %3918 = vmatmul.mubr.f32.gmra.mxu0 %v3851
    %v3919 = vpop.f32.mrf.mxu0
    %v3920 = vadd.f32 %v3847, %v3919
    %v3921 = vpop.f32.mrf.mxu0
    %3922 = vdwg.mxu0
    %v3923 = vsel %vm84, %v3920, 0.0
    %3924 = vmatprep.subr.mxu0 0.0
    %3925 = vmatpush1.msra.mxu0 0.0
    %3926 = vmatprep.subr.mxu0 0.0
    %3927 = vmatpush1.msra.mxu0 0.0
    %3928 = vmatprep.subr.mxu0 0.0
    %3929 = vmatpush1.msra.mxu0 0.0
    %3930 = vmatprep.subr.mxu0 0.0
    %3931 = vmatpush1.msra.mxu0 0.0
    %3932 = vmatprep.subr.mxu0 0.0
    %3933 = vmatpush1.msra.mxu0 0.0
    %3934 = vmatprep.subr.mxu0 0.0
    %3935 = vmatpush1.msra.mxu0 0.0
    %3936 = vmatprep.subr.mxu0 0.0
    %3937 = vmatpush1.msra.mxu0 0.0
    %3938 = vmatprep.subr.mxu0 0.0
    %3939 = vmatpush1.msra.mxu0 0.0
    %3940 = vmatprep.subr.mxu0 0.0
    %3941 = vmatpush1.msra.mxu0 0.0
    %3942 = vmatprep.subr.mxu0 0.0
    %3943 = vmatpush1.msra.mxu0 0.0
    %3944 = vmatprep.subr.mxu0 0.0
    %3945 = vmatpush1.msra.mxu0 0.0
    %3946 = vmatprep.subr.mxu0 0.0
    %3947 = vmatpush1.msra.mxu0 0.0
    %3948 = vmatprep.subr.mxu0 0.0
    %3949 = vmatpush1.msra.mxu0 0.0
    %3950 = vmatprep.subr.mxu0 0.0
    %3951 = vmatpush1.msra.mxu0 0.0
    %3952 = vmatprep.subr.mxu0 0.0
    %3953 = vmatpush1.msra.mxu0 0.0
    %3954 = vmatprep.subr.mxu0 0.0
    %3955 = vmatpush1.msra.mxu0 %v3923
    %3956 = vmatprep.subr.mxu0 0.0
    %3957 = vmatpush2.msra.mxu0 0.0
    %3958 = vmatprep.subr.mxu0 0.0
    %3959 = vmatpush2.msra.mxu0 0.0
    %3960 = vmatprep.subr.mxu0 0.0
    %3961 = vmatpush2.msra.mxu0 0.0
    %3962 = vmatprep.subr.mxu0 0.0
    %3963 = vmatpush2.msra.mxu0 0.0
    %3964 = vmatprep.subr.mxu0 0.0
    %3965 = vmatpush2.msra.mxu0 0.0
    %3966 = vmatprep.subr.mxu0 0.0
    %3967 = vmatpush2.msra.mxu0 0.0
    %3968 = vmatprep.subr.mxu0 0.0
    %3969 = vmatpush2.msra.mxu0 0.0
    %3970 = vmatprep.subr.mxu0 0.0
    %3971 = vmatpush2.msra.mxu0 0.0
    %3972 = vmatprep.subr.mxu0 0.0
    %3973 = vmatpush2.msra.mxu0 0.0
    %3974 = vmatprep.subr.mxu0 0.0
    %3975 = vmatpush2.msra.mxu0 0.0
    %3976 = vmatprep.subr.mxu0 0.0
    %3977 = vmatpush2.msra.mxu0 0.0
    %3978 = vmatprep.subr.mxu0 0.0
    %3979 = vmatpush2.msra.mxu0 0.0
    %3980 = vmatprep.subr.mxu0 0.0
    %3981 = vmatpush2.msra.mxu0 0.0
    %3982 = vmatprep.subr.mxu0 0.0
    %3983 = vmatpush2.msra.mxu0 0.0
    %3984 = vmatprep.subr.mxu0 0.0
    %3985 = vmatpush2.msra.mxu0 0.0
    %3986 = vmatprep.subr.mxu0 0.0
    %3987 = vmatpush2.msra.mxu0 0.0
    %3988 = vmatprep.mubr.f32.mxu0 0.0
    %3989 = vmatmul.mubr.f32.gmra.mxu0 %v460
    %v3990 = vpop.f32.mrf.mxu0
    %v3991 = vadd.f32 0.0, %v3990
    %v3992 = vpop.f32.mrf.mxu0
    %3993 = vdwg.mxu0
    %v3994 = vsel %vm90, %v3923, 0.0
    %v3995 = vrot.slane %v3994, 4
    %v3996 = vadd.f32 %v3994, %v3995
    %v3997 = vrot.slane %v3996, 2
    %v3998 = vadd.f32 %v3996, %v3997
    %v3999 = vrot.slane %v3998, 1
    %v4000 = vadd.f32 %v3998, %v3999
    %v4001 = vmul.f32 %v3991, 0.01
    %v4002 = vsub.f32 %v3326, %v4001
    %v4003 = vmul.f32 %v4000, 0.01
    %v4004 = vsub.f32 %v3328, %v4003
    %v4005 = vmul.f32 %v3743, 0.01
    %v4006 = vmul.f32 %v3748, 0.01
    %v4007 = vmul.f32 %v3753, 0.01
    %v4008 = vmul.f32 %v3758, 0.01
    %v4009 = vsub.f32 %v3333, %v4005
    %v4010 = vsub.f32 %v3334, %v4006
    %v4011 = vsub.f32 %v3335, %v4007
    %v4012 = vsub.f32 %v3336, %v4008
    %v4013 = vmul.f32 %v3767, 0.01
    %v4014 = vsub.f32 %v3338, %v4013
    %v4015 = vmul.f32 %v3542, 0.01
    %v4016 = vsub.f32 %v3340, %v4015
    %v4017 = vmul.f32 %v3527, 0.01
    %v4018 = vsub.f32 %v3342, %v4017
    %v4019 = vmul.f32 %v4002, 0.25
    %vm4020 = vcmask 257024
    %4021 = vst.msk [vmem:[#allocation2] sm:$0xf] %vm4020, %v4019
    %v4022 = vmul.f32 %v4009, 0.25
    %v4023 = vmul.f32 %v4010, 0.25
    %v4024 = vmul.f32 %v4011, 0.25
    %v4025 = vmul.f32 %v4012, 0.25
    %4026 = vst.msk [vmem:[%s6] sm:$0xff] %vm90, %v4022
    %4027 = vst.msk [vmem:[%s6 + $0x8] sm:$0xff] %vm90, %v4023
    %4028 = vst.msk [vmem:[%s6 + $0x10] sm:$0xff] %vm90, %v4024
    %4029 = vst.msk [vmem:[%s6 + $0x18] sm:$0xff] %vm90, %v4025
    %v4030 = vmul.f32 %v4004, 0.25
    %vm4031 = vcmask 253952
    %4032 = vst.msk [vmem:[%s7] sm:$0x1] %vm4031, %v4030
    %v4033 = vmul.f32 %v4014, 0.25
    %4034 = vst.msk [vmem:[%s7 + $0x1] sm:$0x1] %vm4031, %v4033
    %v4035 = vmul.f32 %v4016, 0.25
    %4036 = vst.msk [vmem:[%s7 + $0x2] sm:$0x1] %vm4031, %v4035
    %v4037 = vmul.f32 %v4018, 0.25
    %4039 = vset.pattern.permute.xlu0 0
    %4040 = vperm.xlu0 %4039, %v4037
    %v4041 = vpop.permute.xlu0 %4040
    %v4043 = vadd.f32 %v4041, 0.0
    %4044 = vst.msk [vmem:[%s7 + $0x3] sm:$0x1] %vm4031, %v4043
    // Predicated region
    $region22: #{inner_loop_forward.1} parent=1 // pred_check
      _
    $region23: #{inner_loop_forward.1} parent=1 // pred_check_branch
      %4046 = sbr.rel (0) target = $region25
    $region24: #{inner_loop_forward.1} parent=1 // pred_region
      %s4048 = ssub.s32 64, 64
      %4049 = vsyncadd [#allocation3], %s4048
      %s4051 = sshll.u32 [#allocation2], 4
      %s4052 = int_to_ptr.vmem [resolvable:$true] %s4051
      %4054 = dma.vmem_to_hbm [thread:$0]  %s4052, 64, %s5, [#allocation3]
    $region25: #{inner_loop_forward.1} parent=1 // pred_fallthru
      _
    // Predicated region
    $region26: #{inner_loop_forward.1} parent=1 // pred_check
      _
    $region27: #{inner_loop_forward.1} parent=1 // pred_check_branch
      %4056 = sbr.rel (0) target = $region29
    $region28: #{inner_loop_forward.1} parent=1 // pred_region
      _
    $region29: #{inner_loop_forward.1} parent=1 // pred_fallthru
      _
    // Predicated region
    $region30: #{inner_loop_forward.1} parent=1 // pred_check
      _
    $region31: #{inner_loop_forward.1} parent=1 // pred_check_branch
      %4058 = sbr.rel (0) target = $region33
    $region32: #{inner_loop_forward.1} parent=1 // pred_region
      _
    $region33: #{inner_loop_forward.1} parent=1 // pred_fallthru
      _
    // Predicated region
    $region34: #{inner_loop_forward.1} parent=1 // pred_check
      _
    $region35: #{inner_loop_forward.1} parent=1 // pred_check_branch
      %4060 = sbr.rel (0) target = $region37
    $region36: #{inner_loop_forward.1} parent=1 // pred_region
      %s4062 = ssub.s32 16, 16
      %4063 = vsyncadd [#allocation5], %s4062
      %s4065 = sshll.u32 [#allocation4], 4
      %s4066 = int_to_ptr.vmem [resolvable:$true] %s4065
      %4068 = dma.vmem_to_hbm [thread:$0]  %s4066, 16, %s8, [#allocation5]
    $region37: #{inner_loop_forward.1} parent=1 // pred_fallthru
      _
    // Predicated region
    $region38: #{inner_loop_forward.1} parent=1 // pred_check
      _
    $region39: #{inner_loop_forward.1} parent=1 // pred_check_branch
      %4070 = sbr.rel (0) target = $region41
    $region40: #{inner_loop_forward.1} parent=1 // pred_region
      %4071 = dma.done [#allocation3], 64
    $region41: #{inner_loop_forward.1} parent=1 // pred_fallthru
      _
    // Predicated region
    $region42: #{inner_loop_forward.1} parent=1 // pred_check
      _
    $region43: #{inner_loop_forward.1} parent=1 // pred_check_branch
      %4073 = sbr.rel (0) target = $region45
    $region44: #{inner_loop_forward.1} parent=1 // pred_region
      _
    $region45: #{inner_loop_forward.1} parent=1 // pred_fallthru
      _
    // Predicated region
    $region46: #{inner_loop_forward.1} parent=1 // pred_check
      _
    $region47: #{inner_loop_forward.1} parent=1 // pred_check_branch
      %4075 = sbr.rel (0) target = $region49
    $region48: #{inner_loop_forward.1} parent=1 // pred_region
      _
    $region49: #{inner_loop_forward.1} parent=1 // pred_fallthru
      _
    // Predicated region
    $region50: #{inner_loop_forward.1} parent=1 // pred_check
      _
    $region51: #{inner_loop_forward.1} parent=1 // pred_check_branch
      %4077 = sbr.rel (0) target = $region53
    $region52: #{inner_loop_forward.1} parent=1 // pred_region
      %4078 = dma.done [#allocation5], 16
    $region53: #{inner_loop_forward.1} parent=1 // pred_fallthru
      _
    %4079 = vsyncpa [#allocation3], 1
    %4080 = vsyncpa [#allocation5], 1

</llo_original>
